<compile_context>
chip_gen: v7x
topology: tpu7x:2x2x1
jax: 0.10.0
libtpu: 0.0.40
codegen_flags: <defaults>
</compile_context>

<pallas_src>
import jax
import jax.numpy as jnp
from jax.experimental import pallas as pl
from jax.experimental.pallas import tpu as pltpu


def _cnn_lstm_kernel(taps_ref, wg_ref, wf_ref, out_ref):
    # taps_ref: (L*Bp, 8)     row r = t*Bp + b : [x[t-1], x[t], x[t+1], 1, 0, 0, 0, 0]
    # wg_ref:   (2*Hp, 4*Hp)  rows 0:Hp  = padded W_ih^T (row 16 carries the LSTM bias),
    #                         rows Hp:2Hp = padded W_hh^T ; gate order (i, f, o, g),
    #                         each gate in its own 128-lane group.
    # wf_ref:   (8+Hp+8, 128) rows 0:8   = conv taps->channels weights (row 3 = conv bias
    #                                      + ones pass-through in column 16),
    #                         rows 8:8+Hp = padded W_fc^T, row 8+Hp = fc bias.
    # out_ref:  (Bp, 128)     lane-dense output tile; real result in [:B, :O].
    LBp = taps_ref.shape[0]
    Bp = out_ref.shape[0]
    L = LBp // Bp
    Hp = wg_ref.shape[1] // 4

    # --- Conv1d(1,16,k=3,p=1) + bias + ReLU as one lane-dense MXU matmul ----------
    wc = wf_ref[0:8, :]                                            # (8, 128)
    act = jnp.maximum(
        jnp.dot(taps_ref[...], wc, preferred_element_type=jnp.float32), 0.0
    )                                                              # (L*Bp, 128); col16 == 1

    wih = wg_ref[0:Hp, :]                                          # (Hp, 4Hp)
    whh = wg_ref[Hp:2 * Hp, :]                                     # (Hp, 4Hp), loop invariant

    # --- LSTM input projection (and bias, via the constant-1 column) hoisted ------
    gates_in = jnp.dot(act, wih, preferred_element_type=jnp.float32)   # (L*Bp, 4Hp)

    h = jnp.zeros((Bp, Hp), jnp.float32)
    c = jnp.zeros((Bp, Hp), jnp.float32)

    # --- LSTM recurrence, fully unrolled; every slice is vreg/tile aligned --------
    for t in range(L):
        g = gates_in[t * Bp:(t + 1) * Bp, :] + jnp.dot(
            h, whh, preferred_element_type=jnp.float32)            # (Bp, 4Hp)
        i_g = jax.nn.sigmoid(g[:, 0:Hp])
        f_g = jax.nn.sigmoid(g[:, Hp:2 * Hp])
        o_g = jax.nn.sigmoid(g[:, 2 * Hp:3 * Hp])
        g_g = jnp.tanh(g[:, 3 * Hp:4 * Hp])
        c = f_g * c + i_g * g_g
        h = o_g * jnp.tanh(c)

    # --- fc1 on the last hidden state; full-tile unmasked store --------------------
    wfc = wf_ref[8:8 + Hp, :]                                      # (Hp, 128)
    bfc = wf_ref[8 + Hp:8 + Hp + 1, :]                             # (1, 128)
    out_ref[...] = (jnp.dot(h, wfc, preferred_element_type=jnp.float32) + bfc)


def cnn_lstm_forward(x, params):
    """x: (B, L) float32 -> (B, O) float32."""
    B, L = x.shape
    H = params["whh"].shape[1]
    O = params["wfc"].shape[0]
    Bp = max(8, -(-B // 8) * 8)      # pad batch to a full sublane tile
    Hp = 128                         # pad hidden so each gate is a full 128-lane group

    def reorder(w):
        # PyTorch stacks gate rows as (i, f, g, o); reorder to (i, f, o, g).
        return jnp.concatenate(
            [w[0:H], w[H:2 * H], w[3 * H:4 * H], w[2 * H:3 * H]], axis=0)

    def expand_gate_cols(m):
        # (rows, 4H) with gates at H-strides -> (rows, 4Hp) with gates at Hp-strides.
        out = jnp.zeros((m.shape[0], 4 * Hp), jnp.float32)
        for gidx in range(4):
            out = out.at[:, gidx * Hp:gidx * Hp + H].set(m[:, gidx * H:(gidx + 1) * H])
        return out

    # --- conv taps built in the wrapper (layout plumbing, not compute) ------------
    xp = jnp.zeros((Bp, L), jnp.float32).at[:B].set(x)             # (Bp, L)
    xpad = jnp.pad(xp, ((0, 0), (1, 1)))                           # (Bp, L+2)
    x_prev = xpad[:, 0:L].T.reshape(L * Bp, 1)
    x_cur = xpad[:, 1:L + 1].T.reshape(L * Bp, 1)
    x_next = xpad[:, 2:L + 2].T.reshape(L * Bp, 1)
    ones = jnp.ones((L * Bp, 1), jnp.float32)
    taps = jnp.concatenate(
        [x_prev, x_cur, x_next, ones, jnp.zeros((L * Bp, 4), jnp.float32)], axis=1)

    # --- packed gate slab: [wih_pad ; whh_pad] -> (2Hp, 4Hp) -----------------------
    wih_r = reorder(params["wih"])                                 # (4H, 16)
    whh_r = reorder(params["whh"])                                 # (4H, H)
    bl_r = reorder((params["bih"] + params["bhh"]).reshape(4 * H, 1))[:, 0]  # (4H,)

    wih_pad = jnp.zeros((Hp, 4 * Hp), jnp.float32)
    wih_pad = wih_pad.at[0:16, :].set(expand_gate_cols(wih_r.T))
    wih_pad = wih_pad.at[16:17, :].set(expand_gate_cols(bl_r.reshape(1, 4 * H)))
    whh_pad = jnp.zeros((Hp, 4 * Hp), jnp.float32)
    whh_pad = whh_pad.at[0:H, :].set(expand_gate_cols(whh_r.T))
    wg = jnp.concatenate([wih_pad, whh_pad], axis=0)               # (2Hp, 4Hp)

    # --- packed conv / fc slab: [wc_pad ; wfc_pad ; bfc_pad] -> (8+Hp+8, 128) ------
    wc_pad = jnp.zeros((8, 128), jnp.float32)
    wc_pad = wc_pad.at[0:3, 0:16].set(params["wconv"][:, 0, :].T)  # taps (x[t-1],x[t],x[t+1])
    wc_pad = wc_pad.at[3, 0:16].set(params["bconv"])               # conv bias via ones column
    wc_pad = wc_pad.at[3, 16].set(1.0)                             # constant-1 activation lane
    wfc_pad = jnp.zeros((Hp, 128), jnp.float32).at[0:H, 0:O].set(params["wfc"].T)
    bfc_pad = jnp.zeros((8, 128), jnp.float32).at[0, 0:O].set(params["bfc"])
    wf = jnp.concatenate([wc_pad, wfc_pad, bfc_pad], axis=0)       # (144, 128)

    vmem = pl.BlockSpec(memory_space=pltpu.MemorySpace.VMEM)
    out = pl.pallas_call(
        _cnn_lstm_kernel,
        out_shape=jax.ShapeDtypeStruct((Bp, 128), jnp.float32),
        in_specs=[vmem, vmem, vmem],
        out_specs=vmem,
    )(taps, wg, wf)
    return out[:B, :O]


def reference_forward(x, params):
    """Pure-JAX reference matching the PyTorch forward semantics."""
    B, L = x.shape
    H = params["whh"].shape[1]
    wc = params["wconv"]          # (16, 1, 3)
    xpad = jnp.pad(x, ((0, 0), (1, 1)))
    conv = (wc[None, :, 0, 0][..., None] * xpad[:, None, 0:L]
            + wc[None, :, 0, 1][..., None] * xpad[:, None, 1:L + 1]
            + wc[None, :, 0, 2][..., None] * xpad[:, None, 2:L + 2]
            + params["bconv"][None, :, None])
    seq = jnp.maximum(conv, 0.0).transpose(0, 2, 1)    # (B, L, 16)

    wih, whh = params["wih"], params["whh"]
    b = params["bih"] + params["bhh"]
    h = jnp.zeros((B, H), jnp.float32)
    c = jnp.zeros((B, H), jnp.float32)
    for t in range(L):
        gates = seq[:, t, :] @ wih.T + h @ whh.T + b
        i_g = jax.nn.sigmoid(gates[:, 0:H])
        f_g = jax.nn.sigmoid(gates[:, H:2 * H])
        g_g = jnp.tanh(gates[:, 2 * H:3 * H])
        o_g = jax.nn.sigmoid(gates[:, 3 * H:4 * H])
        c = f_g * c + i_g * g_g
        h = o_g * jnp.tanh(c)
    return h @ params["wfc"].T + params["bfc"]


def init_params(key, hidden_size, output_size):
    ks = jax.random.split(key, 8)
    s = 0.1
    return {
        "wconv": s * jax.random.normal(ks[0], (16, 1, 3), jnp.float32),
        "bconv": s * jax.random.normal(ks[1], (16,), jnp.float32),
        "wih":   s * jax.random.normal(ks[2], (4 * hidden_size, 16), jnp.float32),
        "whh":   s * jax.random.normal(ks[3], (4 * hidden_size, hidden_size), jnp.float32),
        "bih":   s * jax.random.normal(ks[4], (4 * hidden_size,), jnp.float32),
        "bhh":   s * jax.random.normal(ks[5], (4 * hidden_size,), jnp.float32),
        "wfc":   s * jax.random.normal(ks[6], (output_size, hidden_size), jnp.float32),
        "bfc":   s * jax.random.normal(ks[7], (output_size,), jnp.float32),
    }


if __name__ == "__main__":
    B, L = 2, 16          # batch, sequence length (== input_size of the module)
    H, O = 32, 4          # hidden_size, output_size

    key = jax.random.PRNGKey(0)
    k_x, k_p = jax.random.split(key)
    x = jax.random.normal(k_x, (B, L), jnp.float32)
    params = init_params(k_p, H, O)

    out = cnn_lstm_forward(x, params)
    out = jax.block_until_ready(out)

    ref = reference_forward(x, params)
    assert out.shape == (B, O)
    assert jnp.allclose(out, ref, atol=1e-4, rtol=1e-4), (out, ref)

    print("KERNEL_OK")
</pallas_src>

<mosaic_0001>
module attributes {stable_mosaic.version = 11 : i64} {
  func.func @_cnn_lstm_kernel(%arg0: memref<128x8xf32, #tpu.memory_space<vmem>>, %arg1: memref<256x512xf32, #tpu.memory_space<vmem>>, %arg2: memref<144x128xf32, #tpu.memory_space<vmem>>, %arg3: memref<8x128xf32, #tpu.memory_space<vmem>>) attributes {dimension_semantics = [], scalar_prefetch = 0 : i64, scratch_operands = 0 : i64, tpu.core_type = #tpu.core_type<tc>} {
    %c0 = arith.constant 0 : index
    %c0_0 = arith.constant 0 : index
    %0 = vector.load %arg2[%c0, %c0_0] : memref<144x128xf32, #tpu.memory_space<vmem>>, vector<8x128xf32>
    %c0_1 = arith.constant 0 : index
    %c0_2 = arith.constant 0 : index
    %1 = vector.load %arg0[%c0_1, %c0_2] : memref<128x8xf32, #tpu.memory_space<vmem>>, vector<128x8xf32>
    %cst = arith.constant dense<0.000000e+00> : vector<128x128xf32>
    %2 = tpu.matmul %1, %0, %cst {dimension_numbers = #tpu.dot_dimension_numbers<[1], [0], [0], [1], [0, 0, 1, 1], [], []>} : vector<128x8xf32>, vector<8x128xf32>, vector<128x128xf32> -> vector<128x128xf32>
    %cst_3 = arith.constant 0.000000e+00 : f32
    %3 = vector.broadcast %cst_3 : f32 to vector<128x128xf32>
    %4 = arith.maximumf %2, %3 : vector<128x128xf32>
    %c0_4 = arith.constant 0 : index
    %c0_5 = arith.constant 0 : index
    %5 = vector.load %arg1[%c0_4, %c0_5] : memref<256x512xf32, #tpu.memory_space<vmem>>, vector<128x512xf32>
    %c128 = arith.constant 128 : index
    %c0_6 = arith.constant 0 : index
    %6 = vector.load %arg1[%c128, %c0_6] : memref<256x512xf32, #tpu.memory_space<vmem>>, vector<128x512xf32>
    %cst_7 = arith.constant dense<0.000000e+00> : vector<128x512xf32>
    %7 = tpu.matmul %4, %5, %cst_7 {dimension_numbers = #tpu.dot_dimension_numbers<[1], [0], [0], [1], [0, 0, 1, 1], [], []>} : vector<128x128xf32>, vector<128x512xf32>, vector<128x512xf32> -> vector<128x512xf32>
    %cst_8 = arith.constant 0.000000e+00 : f32
    %8 = vector.broadcast %cst_8 : f32 to vector<8x128xf32>
    %cst_9 = arith.constant 0.000000e+00 : f32
    %9 = vector.broadcast %cst_9 : f32 to vector<8x128xf32>
    %10 = vector.extract_strided_slice %7 {offsets = [0, 0], sizes = [8, 512], strides = [1, 1]} : vector<128x512xf32> to vector<8x512xf32>
    %cst_10 = arith.constant dense<0.000000e+00> : vector<8x512xf32>
    %11 = tpu.matmul %8, %6, %cst_10 {dimension_numbers = #tpu.dot_dimension_numbers<[1], [0], [0], [1], [0, 0, 1, 1], [], []>} : vector<8x128xf32>, vector<128x512xf32>, vector<8x512xf32> -> vector<8x512xf32>
    %12 = arith.addf %10, %11 : vector<8x512xf32>
    %13 = vector.extract_strided_slice %12 {offsets = [0, 0], sizes = [8, 128], strides = [1, 1]} : vector<8x512xf32> to vector<8x128xf32>
    %14 = arith.negf %13 : vector<8x128xf32>
    %15 = math.exp %14 : vector<8x128xf32>
    %cst_11 = arith.constant 1.000000e+00 : f32
    %16 = vector.broadcast %cst_11 : f32 to vector<8x128xf32>
    %17 = arith.addf %16, %15 : vector<8x128xf32>
    %18 = arith.divf %16, %17 : vector<8x128xf32>
    %19 = vector.extract_strided_slice %12 {offsets = [0, 128], sizes = [8, 128], strides = [1, 1]} : vector<8x512xf32> to vector<8x128xf32>
    %20 = arith.negf %19 : vector<8x128xf32>
    %21 = math.exp %20 : vector<8x128xf32>
    %cst_12 = arith.constant 1.000000e+00 : f32
    %22 = vector.broadcast %cst_12 : f32 to vector<8x128xf32>
    %23 = arith.addf %22, %21 : vector<8x128xf32>
    %24 = arith.divf %22, %23 : vector<8x128xf32>
    %25 = vector.extract_strided_slice %12 {offsets = [0, 256], sizes = [8, 128], strides = [1, 1]} : vector<8x512xf32> to vector<8x128xf32>
    %26 = arith.negf %25 : vector<8x128xf32>
    %27 = math.exp %26 : vector<8x128xf32>
    %cst_13 = arith.constant 1.000000e+00 : f32
    %28 = vector.broadcast %cst_13 : f32 to vector<8x128xf32>
    %29 = arith.addf %28, %27 : vector<8x128xf32>
    %30 = arith.divf %28, %29 : vector<8x128xf32>
    %31 = vector.extract_strided_slice %12 {offsets = [0, 384], sizes = [8, 128], strides = [1, 1]} : vector<8x512xf32> to vector<8x128xf32>
    %32 = math.tanh %31 : vector<8x128xf32>
    %33 = arith.mulf %24, %9 : vector<8x128xf32>
    %34 = arith.mulf %18, %32 : vector<8x128xf32>
    %35 = arith.addf %33, %34 : vector<8x128xf32>
    %36 = math.tanh %35 : vector<8x128xf32>
    %37 = arith.mulf %30, %36 : vector<8x128xf32>
    %38 = vector.extract_strided_slice %7 {offsets = [8, 0], sizes = [8, 512], strides = [1, 1]} : vector<128x512xf32> to vector<8x512xf32>
    %cst_14 = arith.constant dense<0.000000e+00> : vector<8x512xf32>
    %39 = tpu.matmul %37, %6, %cst_14 {dimension_numbers = #tpu.dot_dimension_numbers<[1], [0], [0], [1], [0, 0, 1, 1], [], []>} : vector<8x128xf32>, vector<128x512xf32>, vector<8x512xf32> -> vector<8x512xf32>
    %40 = arith.addf %38, %39 : vector<8x512xf32>
    %41 = vector.extract_strided_slice %40 {offsets = [0, 0], sizes = [8, 128], strides = [1, 1]} : vector<8x512xf32> to vector<8x128xf32>
    %42 = arith.negf %41 : vector<8x128xf32>
    %43 = math.exp %42 : vector<8x128xf32>
    %cst_15 = arith.constant 1.000000e+00 : f32
    %44 = vector.broadcast %cst_15 : f32 to vector<8x128xf32>
    %45 = arith.addf %44, %43 : vector<8x128xf32>
    %46 = arith.divf %44, %45 : vector<8x128xf32>
    %47 = vector.extract_strided_slice %40 {offsets = [0, 128], sizes = [8, 128], strides = [1, 1]} : vector<8x512xf32> to vector<8x128xf32>
    %48 = arith.negf %47 : vector<8x128xf32>
    %49 = math.exp %48 : vector<8x128xf32>
    %cst_16 = arith.constant 1.000000e+00 : f32
    %50 = vector.broadcast %cst_16 : f32 to vector<8x128xf32>
    %51 = arith.addf %50, %49 : vector<8x128xf32>
    %52 = arith.divf %50, %51 : vector<8x128xf32>
    %53 = vector.extract_strided_slice %40 {offsets = [0, 256], sizes = [8, 128], strides = [1, 1]} : vector<8x512xf32> to vector<8x128xf32>
    %54 = arith.negf %53 : vector<8x128xf32>
    %55 = math.exp %54 : vector<8x128xf32>
    %cst_17 = arith.constant 1.000000e+00 : f32
    %56 = vector.broadcast %cst_17 : f32 to vector<8x128xf32>
    %57 = arith.addf %56, %55 : vector<8x128xf32>
    %58 = arith.divf %56, %57 : vector<8x128xf32>
    %59 = vector.extract_strided_slice %40 {offsets = [0, 384], sizes = [8, 128], strides = [1, 1]} : vector<8x512xf32> to vector<8x128xf32>
    %60 = math.tanh %59 : vector<8x128xf32>
    %61 = arith.mulf %52, %35 : vector<8x128xf32>
    %62 = arith.mulf %46, %60 : vector<8x128xf32>
    %63 = arith.addf %61, %62 : vector<8x128xf32>
    %64 = math.tanh %63 : vector<8x128xf32>
    %65 = arith.mulf %58, %64 : vector<8x128xf32>
    %66 = vector.extract_strided_slice %7 {offsets = [16, 0], sizes = [8, 512], strides = [1, 1]} : vector<128x512xf32> to vector<8x512xf32>
    %cst_18 = arith.constant dense<0.000000e+00> : vector<8x512xf32>
    %67 = tpu.matmul %65, %6, %cst_18 {dimension_numbers = #tpu.dot_dimension_numbers<[1], [0], [0], [1], [0, 0, 1, 1], [], []>} : vector<8x128xf32>, vector<128x512xf32>, vector<8x512xf32> -> vector<8x512xf32>
    %68 = arith.addf %66, %67 : vector<8x512xf32>
    %69 = vector.extract_strided_slice %68 {offsets = [0, 0], sizes = [8, 128], strides = [1, 1]} : vector<8x512xf32> to vector<8x128xf32>
    %70 = arith.negf %69 : vector<8x128xf32>
    %71 = math.exp %70 : vector<8x128xf32>
    %cst_19 = arith.constant 1.000000e+00 : f32
    %72 = vector.broadcast %cst_19 : f32 to vector<8x128xf32>
    %73 = arith.addf %72, %71 : vector<8x128xf32>
    %74 = arith.divf %72, %73 : vector<8x128xf32>
    %75 = vector.extract_strided_slice %68 {offsets = [0, 128], sizes = [8, 128], strides = [1, 1]} : vector<8x512xf32> to vector<8x128xf32>
    %76 = arith.negf %75 : vector<8x128xf32>
    %77 = math.exp %76 : vector<8x128xf32>
    %cst_20 = arith.constant 1.000000e+00 : f32
    %78 = vector.broadcast %cst_20 : f32 to vector<8x128xf32>
    %79 = arith.addf %78, %77 : vector<8x128xf32>
    %80 = arith.divf %78, %79 : vector<8x128xf32>
    %81 = vector.extract_strided_slice %68 {offsets = [0, 256], sizes = [8, 128], strides = [1, 1]} : vector<8x512xf32> to vector<8x128xf32>
    %82 = arith.negf %81 : vector<8x128xf32>
    %83 = math.exp %82 : vector<8x128xf32>
    %cst_21 = arith.constant 1.000000e+00 : f32
    %84 = vector.broadcast %cst_21 : f32 to vector<8x128xf32>
    %85 = arith.addf %84, %83 : vector<8x128xf32>
    %86 = arith.divf %84, %85 : vector<8x128xf32>
    %87 = vector.extract_strided_slice %68 {offsets = [0, 384], sizes = [8, 128], strides = [1, 1]} : vector<8x512xf32> to vector<8x128xf32>
    %88 = math.tanh %87 : vector<8x128xf32>
    %89 = arith.mulf %80, %63 : vector<8x128xf32>
    %90 = arith.mulf %74, %88 : vector<8x128xf32>
    %91 = arith.addf %89, %90 : vector<8x128xf32>
    %92 = math.tanh %91 : vector<8x128xf32>
    %93 = arith.mulf %86, %92 : vector<8x128xf32>
    %94 = vector.extract_strided_slice %7 {offsets = [24, 0], sizes = [8, 512], strides = [1, 1]} : vector<128x512xf32> to vector<8x512xf32>
    %cst_22 = arith.constant dense<0.000000e+00> : vector<8x512xf32>
    %95 = tpu.matmul %93, %6, %cst_22 {dimension_numbers = #tpu.dot_dimension_numbers<[1], [0], [0], [1], [0, 0, 1, 1], [], []>} : vector<8x128xf32>, vector<128x512xf32>, vector<8x512xf32> -> vector<8x512xf32>
    %96 = arith.addf %94, %95 : vector<8x512xf32>
    %97 = vector.extract_strided_slice %96 {offsets = [0, 0], sizes = [8, 128], strides = [1, 1]} : vector<8x512xf32> to vector<8x128xf32>
    %98 = arith.negf %97 : vector<8x128xf32>
    %99 = math.exp %98 : vector<8x128xf32>
    %cst_23 = arith.constant 1.000000e+00 : f32
    %100 = vector.broadcast %cst_23 : f32 to vector<8x128xf32>
    %101 = arith.addf %100, %99 : vector<8x128xf32>
    %102 = arith.divf %100, %101 : vector<8x128xf32>
    %103 = vector.extract_strided_slice %96 {offsets = [0, 128], sizes = [8, 128], strides = [1, 1]} : vector<8x512xf32> to vector<8x128xf32>
    %104 = arith.negf %103 : vector<8x128xf32>
    %105 = math.exp %104 : vector<8x128xf32>
    %cst_24 = arith.constant 1.000000e+00 : f32
    %106 = vector.broadcast %cst_24 : f32 to vector<8x128xf32>
    %107 = arith.addf %106, %105 : vector<8x128xf32>
    %108 = arith.divf %106, %107 : vector<8x128xf32>
    %109 = vector.extract_strided_slice %96 {offsets = [0, 256], sizes = [8, 128], strides = [1, 1]} : vector<8x512xf32> to vector<8x128xf32>
    %110 = arith.negf %109 : vector<8x128xf32>
    %111 = math.exp %110 : vector<8x128xf32>
    %cst_25 = arith.constant 1.000000e+00 : f32
    %112 = vector.broadcast %cst_25 : f32 to vector<8x128xf32>
    %113 = arith.addf %112, %111 : vector<8x128xf32>
    %114 = arith.divf %112, %113 : vector<8x128xf32>
    %115 = vector.extract_strided_slice %96 {offsets = [0, 384], sizes = [8, 128], strides = [1, 1]} : vector<8x512xf32> to vector<8x128xf32>
    %116 = math.tanh %115 : vector<8x128xf32>
    %117 = arith.mulf %108, %91 : vector<8x128xf32>
    %118 = arith.mulf %102, %116 : vector<8x128xf32>
    %119 = arith.addf %117, %118 : vector<8x128xf32>
    %120 = math.tanh %119 : vector<8x128xf32>
    %121 = arith.mulf %114, %120 : vector<8x128xf32>
    %122 = vector.extract_strided_slice %7 {offsets = [32, 0], sizes = [8, 512], strides = [1, 1]} : vector<128x512xf32> to vector<8x512xf32>
    %cst_26 = arith.constant dense<0.000000e+00> : vector<8x512xf32>
    %123 = tpu.matmul %121, %6, %cst_26 {dimension_numbers = #tpu.dot_dimension_numbers<[1], [0], [0], [1], [0, 0, 1, 1], [], []>} : vector<8x128xf32>, vector<128x512xf32>, vector<8x512xf32> -> vector<8x512xf32>
    %124 = arith.addf %122, %123 : vector<8x512xf32>
    %125 = vector.extract_strided_slice %124 {offsets = [0, 0], sizes = [8, 128], strides = [1, 1]} : vector<8x512xf32> to vector<8x128xf32>
    %126 = arith.negf %125 : vector<8x128xf32>
    %127 = math.exp %126 : vector<8x128xf32>
    %cst_27 = arith.constant 1.000000e+00 : f32
    %128 = vector.broadcast %cst_27 : f32 to vector<8x128xf32>
    %129 = arith.addf %128, %127 : vector<8x128xf32>
    %130 = arith.divf %128, %129 : vector<8x128xf32>
    %131 = vector.extract_strided_slice %124 {offsets = [0, 128], sizes = [8, 128], strides = [1, 1]} : vector<8x512xf32> to vector<8x128xf32>
    %132 = arith.negf %131 : vector<8x128xf32>
    %133 = math.exp %132 : vector<8x128xf32>
    %cst_28 = arith.constant 1.000000e+00 : f32
    %134 = vector.broadcast %cst_28 : f32 to vector<8x128xf32>
    %135 = arith.addf %134, %133 : vector<8x128xf32>
    %136 = arith.divf %134, %135 : vector<8x128xf32>
    %137 = vector.extract_strided_slice %124 {offsets = [0, 256], sizes = [8, 128], strides = [1, 1]} : vector<8x512xf32> to vector<8x128xf32>
    %138 = arith.negf %137 : vector<8x128xf32>
    %139 = math.exp %138 : vector<8x128xf32>
    %cst_29 = arith.constant 1.000000e+00 : f32
    %140 = vector.broadcast %cst_29 : f32 to vector<8x128xf32>
    %141 = arith.addf %140, %139 : vector<8x128xf32>
    %142 = arith.divf %140, %141 : vector<8x128xf32>
    %143 = vector.extract_strided_slice %124 {offsets = [0, 384], sizes = [8, 128], strides = [1, 1]} : vector<8x512xf32> to vector<8x128xf32>
    %144 = math.tanh %143 : vector<8x128xf32>
    %145 = arith.mulf %136, %119 : vector<8x128xf32>
    %146 = arith.mulf %130, %144 : vector<8x128xf32>
    %147 = arith.addf %145, %146 : vector<8x128xf32>
    %148 = math.tanh %147 : vector<8x128xf32>
    %149 = arith.mulf %142, %148 : vector<8x128xf32>
    %150 = vector.extract_strided_slice %7 {offsets = [40, 0], sizes = [8, 512], strides = [1, 1]} : vector<128x512xf32> to vector<8x512xf32>
    %cst_30 = arith.constant dense<0.000000e+00> : vector<8x512xf32>
    %151 = tpu.matmul %149, %6, %cst_30 {dimension_numbers = #tpu.dot_dimension_numbers<[1], [0], [0], [1], [0, 0, 1, 1], [], []>} : vector<8x128xf32>, vector<128x512xf32>, vector<8x512xf32> -> vector<8x512xf32>
    %152 = arith.addf %150, %151 : vector<8x512xf32>
    %153 = vector.extract_strided_slice %152 {offsets = [0, 0], sizes = [8, 128], strides = [1, 1]} : vector<8x512xf32> to vector<8x128xf32>
    %154 = arith.negf %153 : vector<8x128xf32>
    %155 = math.exp %154 : vector<8x128xf32>
    %cst_31 = arith.constant 1.000000e+00 : f32
    %156 = vector.broadcast %cst_31 : f32 to vector<8x128xf32>
    %157 = arith.addf %156, %155 : vector<8x128xf32>
    %158 = arith.divf %156, %157 : vector<8x128xf32>
    %159 = vector.extract_strided_slice %152 {offsets = [0, 128], sizes = [8, 128], strides = [1, 1]} : vector<8x512xf32> to vector<8x128xf32>
    %160 = arith.negf %159 : vector<8x128xf32>
    %161 = math.exp %160 : vector<8x128xf32>
    %cst_32 = arith.constant 1.000000e+00 : f32
    %162 = vector.broadcast %cst_32 : f32 to vector<8x128xf32>
    %163 = arith.addf %162, %161 : vector<8x128xf32>
    %164 = arith.divf %162, %163 : vector<8x128xf32>
    %165 = vector.extract_strided_slice %152 {offsets = [0, 256], sizes = [8, 128], strides = [1, 1]} : vector<8x512xf32> to vector<8x128xf32>
    %166 = arith.negf %165 : vector<8x128xf32>
    %167 = math.exp %166 : vector<8x128xf32>
    %cst_33 = arith.constant 1.000000e+00 : f32
    %168 = vector.broadcast %cst_33 : f32 to vector<8x128xf32>
    %169 = arith.addf %168, %167 : vector<8x128xf32>
    %170 = arith.divf %168, %169 : vector<8x128xf32>
    %171 = vector.extract_strided_slice %152 {offsets = [0, 384], sizes = [8, 128], strides = [1, 1]} : vector<8x512xf32> to vector<8x128xf32>
    %172 = math.tanh %171 : vector<8x128xf32>
    %173 = arith.mulf %164, %147 : vector<8x128xf32>
    %174 = arith.mulf %158, %172 : vector<8x128xf32>
    %175 = arith.addf %173, %174 : vector<8x128xf32>
    %176 = math.tanh %175 : vector<8x128xf32>
    %177 = arith.mulf %170, %176 : vector<8x128xf32>
    %178 = vector.extract_strided_slice %7 {offsets = [48, 0], sizes = [8, 512], strides = [1, 1]} : vector<128x512xf32> to vector<8x512xf32>
    %cst_34 = arith.constant dense<0.000000e+00> : vector<8x512xf32>
    %179 = tpu.matmul %177, %6, %cst_34 {dimension_numbers = #tpu.dot_dimension_numbers<[1], [0], [0], [1], [0, 0, 1, 1], [], []>} : vector<8x128xf32>, vector<128x512xf32>, vector<8x512xf32> -> vector<8x512xf32>
    %180 = arith.addf %178, %179 : vector<8x512xf32>
    %181 = vector.extract_strided_slice %180 {offsets = [0, 0], sizes = [8, 128], strides = [1, 1]} : vector<8x512xf32> to vector<8x128xf32>
    %182 = arith.negf %181 : vector<8x128xf32>
    %183 = math.exp %182 : vector<8x128xf32>
    %cst_35 = arith.constant 1.000000e+00 : f32
    %184 = vector.broadcast %cst_35 : f32 to vector<8x128xf32>
    %185 = arith.addf %184, %183 : vector<8x128xf32>
    %186 = arith.divf %184, %185 : vector<8x128xf32>
    %187 = vector.extract_strided_slice %180 {offsets = [0, 128], sizes = [8, 128], strides = [1, 1]} : vector<8x512xf32> to vector<8x128xf32>
    %188 = arith.negf %187 : vector<8x128xf32>
    %189 = math.exp %188 : vector<8x128xf32>
    %cst_36 = arith.constant 1.000000e+00 : f32
    %190 = vector.broadcast %cst_36 : f32 to vector<8x128xf32>
    %191 = arith.addf %190, %189 : vector<8x128xf32>
    %192 = arith.divf %190, %191 : vector<8x128xf32>
    %193 = vector.extract_strided_slice %180 {offsets = [0, 256], sizes = [8, 128], strides = [1, 1]} : vector<8x512xf32> to vector<8x128xf32>
    %194 = arith.negf %193 : vector<8x128xf32>
    %195 = math.exp %194 : vector<8x128xf32>
    %cst_37 = arith.constant 1.000000e+00 : f32
    %196 = vector.broadcast %cst_37 : f32 to vector<8x128xf32>
    %197 = arith.addf %196, %195 : vector<8x128xf32>
    %198 = arith.divf %196, %197 : vector<8x128xf32>
    %199 = vector.extract_strided_slice %180 {offsets = [0, 384], sizes = [8, 128], strides = [1, 1]} : vector<8x512xf32> to vector<8x128xf32>
    %200 = math.tanh %199 : vector<8x128xf32>
    %201 = arith.mulf %192, %175 : vector<8x128xf32>
    %202 = arith.mulf %186, %200 : vector<8x128xf32>
    %203 = arith.addf %201, %202 : vector<8x128xf32>
    %204 = math.tanh %203 : vector<8x128xf32>
    %205 = arith.mulf %198, %204 : vector<8x128xf32>
    %206 = vector.extract_strided_slice %7 {offsets = [56, 0], sizes = [8, 512], strides = [1, 1]} : vector<128x512xf32> to vector<8x512xf32>
    %cst_38 = arith.constant dense<0.000000e+00> : vector<8x512xf32>
    %207 = tpu.matmul %205, %6, %cst_38 {dimension_numbers = #tpu.dot_dimension_numbers<[1], [0], [0], [1], [0, 0, 1, 1], [], []>} : vector<8x128xf32>, vector<128x512xf32>, vector<8x512xf32> -> vector<8x512xf32>
    %208 = arith.addf %206, %207 : vector<8x512xf32>
    %209 = vector.extract_strided_slice %208 {offsets = [0, 0], sizes = [8, 128], strides = [1, 1]} : vector<8x512xf32> to vector<8x128xf32>
    %210 = arith.negf %209 : vector<8x128xf32>
    %211 = math.exp %210 : vector<8x128xf32>
    %cst_39 = arith.constant 1.000000e+00 : f32
    %212 = vector.broadcast %cst_39 : f32 to vector<8x128xf32>
    %213 = arith.addf %212, %211 : vector<8x128xf32>
    %214 = arith.divf %212, %213 : vector<8x128xf32>
    %215 = vector.extract_strided_slice %208 {offsets = [0, 128], sizes = [8, 128], strides = [1, 1]} : vector<8x512xf32> to vector<8x128xf32>
    %216 = arith.negf %215 : vector<8x128xf32>
    %217 = math.exp %216 : vector<8x128xf32>
    %cst_40 = arith.constant 1.000000e+00 : f32
    %218 = vector.broadcast %cst_40 : f32 to vector<8x128xf32>
    %219 = arith.addf %218, %217 : vector<8x128xf32>
    %220 = arith.divf %218, %219 : vector<8x128xf32>
    %221 = vector.extract_strided_slice %208 {offsets = [0, 256], sizes = [8, 128], strides = [1, 1]} : vector<8x512xf32> to vector<8x128xf32>
    %222 = arith.negf %221 : vector<8x128xf32>
    %223 = math.exp %222 : vector<8x128xf32>
    %cst_41 = arith.constant 1.000000e+00 : f32
    %224 = vector.broadcast %cst_41 : f32 to vector<8x128xf32>
    %225 = arith.addf %224, %223 : vector<8x128xf32>
    %226 = arith.divf %224, %225 : vector<8x128xf32>
    %227 = vector.extract_strided_slice %208 {offsets = [0, 384], sizes = [8, 128], strides = [1, 1]} : vector<8x512xf32> to vector<8x128xf32>
    %228 = math.tanh %227 : vector<8x128xf32>
    %229 = arith.mulf %220, %203 : vector<8x128xf32>
    %230 = arith.mulf %214, %228 : vector<8x128xf32>
    %231 = arith.addf %229, %230 : vector<8x128xf32>
    %232 = math.tanh %231 : vector<8x128xf32>
    %233 = arith.mulf %226, %232 : vector<8x128xf32>
    %234 = vector.extract_strided_slice %7 {offsets = [64, 0], sizes = [8, 512], strides = [1, 1]} : vector<128x512xf32> to vector<8x512xf32>
    %cst_42 = arith.constant dense<0.000000e+00> : vector<8x512xf32>
    %235 = tpu.matmul %233, %6, %cst_42 {dimension_numbers = #tpu.dot_dimension_numbers<[1], [0], [0], [1], [0, 0, 1, 1], [], []>} : vector<8x128xf32>, vector<128x512xf32>, vector<8x512xf32> -> vector<8x512xf32>
    %236 = arith.addf %234, %235 : vector<8x512xf32>
    %237 = vector.extract_strided_slice %236 {offsets = [0, 0], sizes = [8, 128], strides = [1, 1]} : vector<8x512xf32> to vector<8x128xf32>
    %238 = arith.negf %237 : vector<8x128xf32>
    %239 = math.exp %238 : vector<8x128xf32>
    %cst_43 = arith.constant 1.000000e+00 : f32
    %240 = vector.broadcast %cst_43 : f32 to vector<8x128xf32>
    %241 = arith.addf %240, %239 : vector<8x128xf32>
    %242 = arith.divf %240, %241 : vector<8x128xf32>
    %243 = vector.extract_strided_slice %236 {offsets = [0, 128], sizes = [8, 128], strides = [1, 1]} : vector<8x512xf32> to vector<8x128xf32>
    %244 = arith.negf %243 : vector<8x128xf32>
    %245 = math.exp %244 : vector<8x128xf32>
    %cst_44 = arith.constant 1.000000e+00 : f32
    %246 = vector.broadcast %cst_44 : f32 to vector<8x128xf32>
    %247 = arith.addf %246, %245 : vector<8x128xf32>
    %248 = arith.divf %246, %247 : vector<8x128xf32>
    %249 = vector.extract_strided_slice %236 {offsets = [0, 256], sizes = [8, 128], strides = [1, 1]} : vector<8x512xf32> to vector<8x128xf32>
    %250 = arith.negf %249 : vector<8x128xf32>
    %251 = math.exp %250 : vector<8x128xf32>
    %cst_45 = arith.constant 1.000000e+00 : f32
    %252 = vector.broadcast %cst_45 : f32 to vector<8x128xf32>
    %253 = arith.addf %252, %251 : vector<8x128xf32>
    %254 = arith.divf %252, %253 : vector<8x128xf32>
    %255 = vector.extract_strided_slice %236 {offsets = [0, 384], sizes = [8, 128], strides = [1, 1]} : vector<8x512xf32> to vector<8x128xf32>
    %256 = math.tanh %255 : vector<8x128xf32>
    %257 = arith.mulf %248, %231 : vector<8x128xf32>
    %258 = arith.mulf %242, %256 : vector<8x128xf32>
    %259 = arith.addf %257, %258 : vector<8x128xf32>
    %260 = math.tanh %259 : vector<8x128xf32>
    %261 = arith.mulf %254, %260 : vector<8x128xf32>
    %262 = vector.extract_strided_slice %7 {offsets = [72, 0], sizes = [8, 512], strides = [1, 1]} : vector<128x512xf32> to vector<8x512xf32>
    %cst_46 = arith.constant dense<0.000000e+00> : vector<8x512xf32>
    %263 = tpu.matmul %261, %6, %cst_46 {dimension_numbers = #tpu.dot_dimension_numbers<[1], [0], [0], [1], [0, 0, 1, 1], [], []>} : vector<8x128xf32>, vector<128x512xf32>, vector<8x512xf32> -> vector<8x512xf32>
    %264 = arith.addf %262, %263 : vector<8x512xf32>
    %265 = vector.extract_strided_slice %264 {offsets = [0, 0], sizes = [8, 128], strides = [1, 1]} : vector<8x512xf32> to vector<8x128xf32>
    %266 = arith.negf %265 : vector<8x128xf32>
    %267 = math.exp %266 : vector<8x128xf32>
    %cst_47 = arith.constant 1.000000e+00 : f32
    %268 = vector.broadcast %cst_47 : f32 to vector<8x128xf32>
    %269 = arith.addf %268, %267 : vector<8x128xf32>
    %270 = arith.divf %268, %269 : vector<8x128xf32>
    %271 = vector.extract_strided_slice %264 {offsets = [0, 128], sizes = [8, 128], strides = [1, 1]} : vector<8x512xf32> to vector<8x128xf32>
    %272 = arith.negf %271 : vector<8x128xf32>
    %273 = math.exp %272 : vector<8x128xf32>
    %cst_48 = arith.constant 1.000000e+00 : f32
    %274 = vector.broadcast %cst_48 : f32 to vector<8x128xf32>
    %275 = arith.addf %274, %273 : vector<8x128xf32>
    %276 = arith.divf %274, %275 : vector<8x128xf32>
    %277 = vector.extract_strided_slice %264 {offsets = [0, 256], sizes = [8, 128], strides = [1, 1]} : vector<8x512xf32> to vector<8x128xf32>
    %278 = arith.negf %277 : vector<8x128xf32>
    %279 = math.exp %278 : vector<8x128xf32>
    %cst_49 = arith.constant 1.000000e+00 : f32
    %280 = vector.broadcast %cst_49 : f32 to vector<8x128xf32>
    %281 = arith.addf %280, %279 : vector<8x128xf32>
    %282 = arith.divf %280, %281 : vector<8x128xf32>
    %283 = vector.extract_strided_slice %264 {offsets = [0, 384], sizes = [8, 128], strides = [1, 1]} : vector<8x512xf32> to vector<8x128xf32>
    %284 = math.tanh %283 : vector<8x128xf32>
    %285 = arith.mulf %276, %259 : vector<8x128xf32>
    %286 = arith.mulf %270, %284 : vector<8x128xf32>
    %287 = arith.addf %285, %286 : vector<8x128xf32>
    %288 = math.tanh %287 : vector<8x128xf32>
    %289 = arith.mulf %282, %288 : vector<8x128xf32>
    %290 = vector.extract_strided_slice %7 {offsets = [80, 0], sizes = [8, 512], strides = [1, 1]} : vector<128x512xf32> to vector<8x512xf32>
    %cst_50 = arith.constant dense<0.000000e+00> : vector<8x512xf32>
    %291 = tpu.matmul %289, %6, %cst_50 {dimension_numbers = #tpu.dot_dimension_numbers<[1], [0], [0], [1], [0, 0, 1, 1], [], []>} : vector<8x128xf32>, vector<128x512xf32>, vector<8x512xf32> -> vector<8x512xf32>
    %292 = arith.addf %290, %291 : vector<8x512xf32>
    %293 = vector.extract_strided_slice %292 {offsets = [0, 0], sizes = [8, 128], strides = [1, 1]} : vector<8x512xf32> to vector<8x128xf32>
    %294 = arith.negf %293 : vector<8x128xf32>
    %295 = math.exp %294 : vector<8x128xf32>
    %cst_51 = arith.constant 1.000000e+00 : f32
    %296 = vector.broadcast %cst_51 : f32 to vector<8x128xf32>
    %297 = arith.addf %296, %295 : vector<8x128xf32>
    %298 = arith.divf %296, %297 : vector<8x128xf32>
    %299 = vector.extract_strided_slice %292 {offsets = [0, 128], sizes = [8, 128], strides = [1, 1]} : vector<8x512xf32> to vector<8x128xf32>
    %300 = arith.negf %299 : vector<8x128xf32>
    %301 = math.exp %300 : vector<8x128xf32>
    %cst_52 = arith.constant 1.000000e+00 : f32
    %302 = vector.broadcast %cst_52 : f32 to vector<8x128xf32>
    %303 = arith.addf %302, %301 : vector<8x128xf32>
    %304 = arith.divf %302, %303 : vector<8x128xf32>
    %305 = vector.extract_strided_slice %292 {offsets = [0, 256], sizes = [8, 128], strides = [1, 1]} : vector<8x512xf32> to vector<8x128xf32>
    %306 = arith.negf %305 : vector<8x128xf32>
    %307 = math.exp %306 : vector<8x128xf32>
    %cst_53 = arith.constant 1.000000e+00 : f32
    %308 = vector.broadcast %cst_53 : f32 to vector<8x128xf32>
    %309 = arith.addf %308, %307 : vector<8x128xf32>
    %310 = arith.divf %308, %309 : vector<8x128xf32>
    %311 = vector.extract_strided_slice %292 {offsets = [0, 384], sizes = [8, 128], strides = [1, 1]} : vector<8x512xf32> to vector<8x128xf32>
    %312 = math.tanh %311 : vector<8x128xf32>
    %313 = arith.mulf %304, %287 : vector<8x128xf32>
    %314 = arith.mulf %298, %312 : vector<8x128xf32>
    %315 = arith.addf %313, %314 : vector<8x128xf32>
    %316 = math.tanh %315 : vector<8x128xf32>
    %317 = arith.mulf %310, %316 : vector<8x128xf32>
    %318 = vector.extract_strided_slice %7 {offsets = [88, 0], sizes = [8, 512], strides = [1, 1]} : vector<128x512xf32> to vector<8x512xf32>
    %cst_54 = arith.constant dense<0.000000e+00> : vector<8x512xf32>
    %319 = tpu.matmul %317, %6, %cst_54 {dimension_numbers = #tpu.dot_dimension_numbers<[1], [0], [0], [1], [0, 0, 1, 1], [], []>} : vector<8x128xf32>, vector<128x512xf32>, vector<8x512xf32> -> vector<8x512xf32>
    %320 = arith.addf %318, %319 : vector<8x512xf32>
    %321 = vector.extract_strided_slice %320 {offsets = [0, 0], sizes = [8, 128], strides = [1, 1]} : vector<8x512xf32> to vector<8x128xf32>
    %322 = arith.negf %321 : vector<8x128xf32>
    %323 = math.exp %322 : vector<8x128xf32>
    %cst_55 = arith.constant 1.000000e+00 : f32
    %324 = vector.broadcast %cst_55 : f32 to vector<8x128xf32>
    %325 = arith.addf %324, %323 : vector<8x128xf32>
    %326 = arith.divf %324, %325 : vector<8x128xf32>
    %327 = vector.extract_strided_slice %320 {offsets = [0, 128], sizes = [8, 128], strides = [1, 1]} : vector<8x512xf32> to vector<8x128xf32>
    %328 = arith.negf %327 : vector<8x128xf32>
    %329 = math.exp %328 : vector<8x128xf32>
    %cst_56 = arith.constant 1.000000e+00 : f32
    %330 = vector.broadcast %cst_56 : f32 to vector<8x128xf32>
    %331 = arith.addf %330, %329 : vector<8x128xf32>
    %332 = arith.divf %330, %331 : vector<8x128xf32>
    %333 = vector.extract_strided_slice %320 {offsets = [0, 256], sizes = [8, 128], strides = [1, 1]} : vector<8x512xf32> to vector<8x128xf32>
    %334 = arith.negf %333 : vector<8x128xf32>
    %335 = math.exp %334 : vector<8x128xf32>
    %cst_57 = arith.constant 1.000000e+00 : f32
    %336 = vector.broadcast %cst_57 : f32 to vector<8x128xf32>
    %337 = arith.addf %336, %335 : vector<8x128xf32>
    %338 = arith.divf %336, %337 : vector<8x128xf32>
    %339 = vector.extract_strided_slice %320 {offsets = [0, 384], sizes = [8, 128], strides = [1, 1]} : vector<8x512xf32> to vector<8x128xf32>
    %340 = math.tanh %339 : vector<8x128xf32>
    %341 = arith.mulf %332, %315 : vector<8x128xf32>
    %342 = arith.mulf %326, %340 : vector<8x128xf32>
    %343 = arith.addf %341, %342 : vector<8x128xf32>
    %344 = math.tanh %343 : vector<8x128xf32>
    %345 = arith.mulf %338, %344 : vector<8x128xf32>
    %346 = vector.extract_strided_slice %7 {offsets = [96, 0], sizes = [8, 512], strides = [1, 1]} : vector<128x512xf32> to vector<8x512xf32>
    %cst_58 = arith.constant dense<0.000000e+00> : vector<8x512xf32>
    %347 = tpu.matmul %345, %6, %cst_58 {dimension_numbers = #tpu.dot_dimension_numbers<[1], [0], [0], [1], [0, 0, 1, 1], [], []>} : vector<8x128xf32>, vector<128x512xf32>, vector<8x512xf32> -> vector<8x512xf32>
    %348 = arith.addf %346, %347 : vector<8x512xf32>
    %349 = vector.extract_strided_slice %348 {offsets = [0, 0], sizes = [8, 128], strides = [1, 1]} : vector<8x512xf32> to vector<8x128xf32>
    %350 = arith.negf %349 : vector<8x128xf32>
    %351 = math.exp %350 : vector<8x128xf32>
    %cst_59 = arith.constant 1.000000e+00 : f32
    %352 = vector.broadcast %cst_59 : f32 to vector<8x128xf32>
    %353 = arith.addf %352, %351 : vector<8x128xf32>
    %354 = arith.divf %352, %353 : vector<8x128xf32>
    %355 = vector.extract_strided_slice %348 {offsets = [0, 128], sizes = [8, 128], strides = [1, 1]} : vector<8x512xf32> to vector<8x128xf32>
    %356 = arith.negf %355 : vector<8x128xf32>
    %357 = math.exp %356 : vector<8x128xf32>
    %cst_60 = arith.constant 1.000000e+00 : f32
    %358 = vector.broadcast %cst_60 : f32 to vector<8x128xf32>
    %359 = arith.addf %358, %357 : vector<8x128xf32>
    %360 = arith.divf %358, %359 : vector<8x128xf32>
    %361 = vector.extract_strided_slice %348 {offsets = [0, 256], sizes = [8, 128], strides = [1, 1]} : vector<8x512xf32> to vector<8x128xf32>
    %362 = arith.negf %361 : vector<8x128xf32>
    %363 = math.exp %362 : vector<8x128xf32>
    %cst_61 = arith.constant 1.000000e+00 : f32
    %364 = vector.broadcast %cst_61 : f32 to vector<8x128xf32>
    %365 = arith.addf %364, %363 : vector<8x128xf32>
    %366 = arith.divf %364, %365 : vector<8x128xf32>
    %367 = vector.extract_strided_slice %348 {offsets = [0, 384], sizes = [8, 128], strides = [1, 1]} : vector<8x512xf32> to vector<8x128xf32>
    %368 = math.tanh %367 : vector<8x128xf32>
    %369 = arith.mulf %360, %343 : vector<8x128xf32>
    %370 = arith.mulf %354, %368 : vector<8x128xf32>
    %371 = arith.addf %369, %370 : vector<8x128xf32>
    %372 = math.tanh %371 : vector<8x128xf32>
    %373 = arith.mulf %366, %372 : vector<8x128xf32>
    %374 = vector.extract_strided_slice %7 {offsets = [104, 0], sizes = [8, 512], strides = [1, 1]} : vector<128x512xf32> to vector<8x512xf32>
    %cst_62 = arith.constant dense<0.000000e+00> : vector<8x512xf32>
    %375 = tpu.matmul %373, %6, %cst_62 {dimension_numbers = #tpu.dot_dimension_numbers<[1], [0], [0], [1], [0, 0, 1, 1], [], []>} : vector<8x128xf32>, vector<128x512xf32>, vector<8x512xf32> -> vector<8x512xf32>
    %376 = arith.addf %374, %375 : vector<8x512xf32>
    %377 = vector.extract_strided_slice %376 {offsets = [0, 0], sizes = [8, 128], strides = [1, 1]} : vector<8x512xf32> to vector<8x128xf32>
    %378 = arith.negf %377 : vector<8x128xf32>
    %379 = math.exp %378 : vector<8x128xf32>
    %cst_63 = arith.constant 1.000000e+00 : f32
    %380 = vector.broadcast %cst_63 : f32 to vector<8x128xf32>
    %381 = arith.addf %380, %379 : vector<8x128xf32>
    %382 = arith.divf %380, %381 : vector<8x128xf32>
    %383 = vector.extract_strided_slice %376 {offsets = [0, 128], sizes = [8, 128], strides = [1, 1]} : vector<8x512xf32> to vector<8x128xf32>
    %384 = arith.negf %383 : vector<8x128xf32>
    %385 = math.exp %384 : vector<8x128xf32>
    %cst_64 = arith.constant 1.000000e+00 : f32
    %386 = vector.broadcast %cst_64 : f32 to vector<8x128xf32>
    %387 = arith.addf %386, %385 : vector<8x128xf32>
    %388 = arith.divf %386, %387 : vector<8x128xf32>
    %389 = vector.extract_strided_slice %376 {offsets = [0, 256], sizes = [8, 128], strides = [1, 1]} : vector<8x512xf32> to vector<8x128xf32>
    %390 = arith.negf %389 : vector<8x128xf32>
    %391 = math.exp %390 : vector<8x128xf32>
    %cst_65 = arith.constant 1.000000e+00 : f32
    %392 = vector.broadcast %cst_65 : f32 to vector<8x128xf32>
    %393 = arith.addf %392, %391 : vector<8x128xf32>
    %394 = arith.divf %392, %393 : vector<8x128xf32>
    %395 = vector.extract_strided_slice %376 {offsets = [0, 384], sizes = [8, 128], strides = [1, 1]} : vector<8x512xf32> to vector<8x128xf32>
    %396 = math.tanh %395 : vector<8x128xf32>
    %397 = arith.mulf %388, %371 : vector<8x128xf32>
    %398 = arith.mulf %382, %396 : vector<8x128xf32>
    %399 = arith.addf %397, %398 : vector<8x128xf32>
    %400 = math.tanh %399 : vector<8x128xf32>
    %401 = arith.mulf %394, %400 : vector<8x128xf32>
    %402 = vector.extract_strided_slice %7 {offsets = [112, 0], sizes = [8, 512], strides = [1, 1]} : vector<128x512xf32> to vector<8x512xf32>
    %cst_66 = arith.constant dense<0.000000e+00> : vector<8x512xf32>
    %403 = tpu.matmul %401, %6, %cst_66 {dimension_numbers = #tpu.dot_dimension_numbers<[1], [0], [0], [1], [0, 0, 1, 1], [], []>} : vector<8x128xf32>, vector<128x512xf32>, vector<8x512xf32> -> vector<8x512xf32>
    %404 = arith.addf %402, %403 : vector<8x512xf32>
    %405 = vector.extract_strided_slice %404 {offsets = [0, 0], sizes = [8, 128], strides = [1, 1]} : vector<8x512xf32> to vector<8x128xf32>
    %406 = arith.negf %405 : vector<8x128xf32>
    %407 = math.exp %406 : vector<8x128xf32>
    %cst_67 = arith.constant 1.000000e+00 : f32
    %408 = vector.broadcast %cst_67 : f32 to vector<8x128xf32>
    %409 = arith.addf %408, %407 : vector<8x128xf32>
    %410 = arith.divf %408, %409 : vector<8x128xf32>
    %411 = vector.extract_strided_slice %404 {offsets = [0, 128], sizes = [8, 128], strides = [1, 1]} : vector<8x512xf32> to vector<8x128xf32>
    %412 = arith.negf %411 : vector<8x128xf32>
    %413 = math.exp %412 : vector<8x128xf32>
    %cst_68 = arith.constant 1.000000e+00 : f32
    %414 = vector.broadcast %cst_68 : f32 to vector<8x128xf32>
    %415 = arith.addf %414, %413 : vector<8x128xf32>
    %416 = arith.divf %414, %415 : vector<8x128xf32>
    %417 = vector.extract_strided_slice %404 {offsets = [0, 256], sizes = [8, 128], strides = [1, 1]} : vector<8x512xf32> to vector<8x128xf32>
    %418 = arith.negf %417 : vector<8x128xf32>
    %419 = math.exp %418 : vector<8x128xf32>
    %cst_69 = arith.constant 1.000000e+00 : f32
    %420 = vector.broadcast %cst_69 : f32 to vector<8x128xf32>
    %421 = arith.addf %420, %419 : vector<8x128xf32>
    %422 = arith.divf %420, %421 : vector<8x128xf32>
    %423 = vector.extract_strided_slice %404 {offsets = [0, 384], sizes = [8, 128], strides = [1, 1]} : vector<8x512xf32> to vector<8x128xf32>
    %424 = math.tanh %423 : vector<8x128xf32>
    %425 = arith.mulf %416, %399 : vector<8x128xf32>
    %426 = arith.mulf %410, %424 : vector<8x128xf32>
    %427 = arith.addf %425, %426 : vector<8x128xf32>
    %428 = math.tanh %427 : vector<8x128xf32>
    %429 = arith.mulf %422, %428 : vector<8x128xf32>
    %430 = vector.extract_strided_slice %7 {offsets = [120, 0], sizes = [8, 512], strides = [1, 1]} : vector<128x512xf32> to vector<8x512xf32>
    %cst_70 = arith.constant dense<0.000000e+00> : vector<8x512xf32>
    %431 = tpu.matmul %429, %6, %cst_70 {dimension_numbers = #tpu.dot_dimension_numbers<[1], [0], [0], [1], [0, 0, 1, 1], [], []>} : vector<8x128xf32>, vector<128x512xf32>, vector<8x512xf32> -> vector<8x512xf32>
    %432 = arith.addf %430, %431 : vector<8x512xf32>
    %433 = vector.extract_strided_slice %432 {offsets = [0, 0], sizes = [8, 128], strides = [1, 1]} : vector<8x512xf32> to vector<8x128xf32>
    %434 = arith.negf %433 : vector<8x128xf32>
    %435 = math.exp %434 : vector<8x128xf32>
    %cst_71 = arith.constant 1.000000e+00 : f32
    %436 = vector.broadcast %cst_71 : f32 to vector<8x128xf32>
    %437 = arith.addf %436, %435 : vector<8x128xf32>
    %438 = arith.divf %436, %437 : vector<8x128xf32>
    %439 = vector.extract_strided_slice %432 {offsets = [0, 128], sizes = [8, 128], strides = [1, 1]} : vector<8x512xf32> to vector<8x128xf32>
    %440 = arith.negf %439 : vector<8x128xf32>
    %441 = math.exp %440 : vector<8x128xf32>
    %cst_72 = arith.constant 1.000000e+00 : f32
    %442 = vector.broadcast %cst_72 : f32 to vector<8x128xf32>
    %443 = arith.addf %442, %441 : vector<8x128xf32>
    %444 = arith.divf %442, %443 : vector<8x128xf32>
    %445 = vector.extract_strided_slice %432 {offsets = [0, 256], sizes = [8, 128], strides = [1, 1]} : vector<8x512xf32> to vector<8x128xf32>
    %446 = arith.negf %445 : vector<8x128xf32>
    %447 = math.exp %446 : vector<8x128xf32>
    %cst_73 = arith.constant 1.000000e+00 : f32
    %448 = vector.broadcast %cst_73 : f32 to vector<8x128xf32>
    %449 = arith.addf %448, %447 : vector<8x128xf32>
    %450 = arith.divf %448, %449 : vector<8x128xf32>
    %451 = vector.extract_strided_slice %432 {offsets = [0, 384], sizes = [8, 128], strides = [1, 1]} : vector<8x512xf32> to vector<8x128xf32>
    %452 = math.tanh %451 : vector<8x128xf32>
    %453 = arith.mulf %444, %427 : vector<8x128xf32>
    %454 = arith.mulf %438, %452 : vector<8x128xf32>
    %455 = arith.addf %453, %454 : vector<8x128xf32>
    %456 = math.tanh %455 : vector<8x128xf32>
    %457 = arith.mulf %450, %456 : vector<8x128xf32>
    %c8 = arith.constant 8 : index
    %c0_74 = arith.constant 0 : index
    %458 = vector.load %arg2[%c8, %c0_74] : memref<144x128xf32, #tpu.memory_space<vmem>>, vector<128x128xf32>
    %c136 = arith.constant 136 : index
    %c0_75 = arith.constant 0 : index
    %459 = vector.load %arg2[%c136, %c0_75] : memref<144x128xf32, #tpu.memory_space<vmem>>, vector<1x128xf32>
    %cst_76 = arith.constant dense<0.000000e+00> : vector<8x128xf32>
    %460 = tpu.matmul %457, %458, %cst_76 {dimension_numbers = #tpu.dot_dimension_numbers<[1], [0], [0], [1], [0, 0, 1, 1], [], []>} : vector<8x128xf32>, vector<128x128xf32>, vector<8x128xf32> -> vector<8x128xf32>
    %461 = vector.broadcast %459 : vector<1x128xf32> to vector<8x128xf32>
    %462 = arith.addf %460, %461 : vector<8x128xf32>
    %c0_77 = arith.constant 0 : index
    %c0_78 = arith.constant 0 : index
    %463 = vector.load %arg3[%c0_77, %c0_78] : memref<8x128xf32, #tpu.memory_space<vmem>>, vector<8x128xf32>
    tpu.vector_store %arg3[%c0_77, %c0_78], %462 {strides = array<i32>} : memref<8x128xf32, #tpu.memory_space<vmem>>, vector<8x128xf32>,
    return
  }
}

</mosaic_0001>

<llo_original>
// kernel: tpu_custom_call.1
$region0: #{tpu_custom_call.1}
  #allocation0 [shape = 'u32[]', space=smem, size = 0x4, offset = 0x4, fixed_abs, tag = 'smem constant byte address 0x4 - core index']
  #allocation1 [shape = 'u32[144,128]{1,0:T(1,128)}', space=vmem, size = 0x12000, scoped, tag = 'internal scratch']
  %s0 = inlined_call_operand.vmem [shape: f32[128,8], index: 0, kind: input, shape index: {}]
  %s1 = inlined_call_operand.hbm [shape: f32[256,512], index: 1, kind: input, shape index: {}]
  %s2 = inlined_call_operand.hbm [shape: f32[144,128], index: 2, kind: input, shape index: {}]
  %s3 = inlined_call_operand.hbm [shape: f32[8,128], index: 3, kind: output, shape index: {}]
  %s4 = sld [smem:[#allocation0]]
  $region30: #{tpu_custom_call.1} parent=0
    _
  %s6 = ssub.s32 1, %s4
  %s7 = scalar_select 0, %s6, %s4
  $region1: #{tpu_custom_call.1} parent=0
    #allocation2 [shape = 'u8[524288]{0}', space=vmem, size = 0x80000, scoped, tag = 'input window, operand 1, single buffered']
    #allocation3 [shape = 's32[1]{0}', space=sflag, size = 0x4, scoped, tag = 'scoped memory for tpu_custom_call.1']
    #allocation4 [shape = 's32[1]{0}', space=sflag, size = 0x4, scoped, tag = 'scoped memory for tpu_custom_call.1']
    #allocation5 [shape = 'u8[73728]{0}', space=vmem, size = 0x12000, scoped, tag = 'input window, operand 2, single buffered']
    #allocation6 [shape = 's32[1]{0}', space=sflag, size = 0x4, scoped, tag = 'scoped memory for tpu_custom_call.1']
    #allocation7 [shape = 'u8[4096]{0}', space=vmem, size = 0x1000, scoped, tag = 'output window, operand 0, single buffered']
    %8 = vsyncpa [#allocation3], 0
    %9 = vsyncpa [#allocation6], 0
    %10 = vsyncpa [#allocation4], 0
    // Predicated region
    $region2: #{tpu_custom_call.1} parent=1 // pred_check
      _
    $region3: #{tpu_custom_call.1} parent=1 // pred_check_branch
      %12 = sbr.rel (0) target = $region5
    $region4: #{tpu_custom_call.1} parent=1 // pred_region
      _
    $region5: #{tpu_custom_call.1} parent=1 // pred_fallthru
      _
    // Predicated region
    $region6: #{tpu_custom_call.1} parent=1 // pred_check
      _
    $region7: #{tpu_custom_call.1} parent=1 // pred_check_branch
      %14 = sbr.rel (0) target = $region9
    $region8: #{tpu_custom_call.1} parent=1 // pred_region
      %s16 = ssub.s32 16384, 16384
      %17 = vsyncadd [#allocation3], %s16
      %s18 = sshll.u32 [#allocation2], 4
      %s19 = int_to_ptr.vmem [resolvable:$true] %s18
      %24 = dma.hbm_to_vmem [thread:$0]  %s1, 16384, %s19, [#allocation3], 512, 512, 32
    $region9: #{tpu_custom_call.1} parent=1 // pred_fallthru
      _
    // Predicated region
    $region10: #{tpu_custom_call.1} parent=1 // pred_check
      _
    $region11: #{tpu_custom_call.1} parent=1 // pred_check_branch
      %26 = sbr.rel (0) target = $region13
    $region12: #{tpu_custom_call.1} parent=1 // pred_region
      %s28 = ssub.s32 2304, 2304
      %29 = vsyncadd [#allocation6], %s28
      %s30 = sshll.u32 [#allocation5], 4
      %s31 = int_to_ptr.vmem [resolvable:$true] %s30
      %36 = dma.hbm_to_vmem [thread:$0]  %s2, 2304, %s31, [#allocation6], 128, 128, 8
    $region13: #{tpu_custom_call.1} parent=1 // pred_fallthru
      _
    // Predicated region
    $region14: #{tpu_custom_call.1} parent=1 // pred_check
      _
    $region15: #{tpu_custom_call.1} parent=1 // pred_check_branch
      %38 = sbr.rel (0) target = $region17
    $region16: #{tpu_custom_call.1} parent=1 // pred_region
      %39 = dma.done [#allocation3], 16384
    $region17: #{tpu_custom_call.1} parent=1 // pred_fallthru
      _
    // Predicated region
    $region18: #{tpu_custom_call.1} parent=1 // pred_check
      _
    $region19: #{tpu_custom_call.1} parent=1 // pred_check_branch
      %41 = sbr.rel (0) target = $region21
    $region20: #{tpu_custom_call.1} parent=1 // pred_region
      %42 = dma.done [#allocation6], 2304
    $region21: #{tpu_custom_call.1} parent=1 // pred_fallthru
      _
    %v43 = vld [vmem:[#allocation5] sm:$0xff]
    %v44 = vld [vmem:[%s0] sm:$0xff]
    %v45 = vld [vmem:[%s0 + $0x8] sm:$0xff]
    %v46 = vld [vmem:[%s0 + $0x10] sm:$0xff]
    %v47 = vld [vmem:[%s0 + $0x18] sm:$0xff]
    %v48 = vld [vmem:[%s0 + $0x20] sm:$0xff]
    %v49 = vld [vmem:[%s0 + $0x28] sm:$0xff]
    %v50 = vld [vmem:[%s0 + $0x30] sm:$0xff]
    %v51 = vld [vmem:[%s0 + $0x38] sm:$0xff]
    %v52 = vld [vmem:[%s0 + $0x40] sm:$0xff]
    %v53 = vld [vmem:[%s0 + $0x48] sm:$0xff]
    %v54 = vld [vmem:[%s0 + $0x50] sm:$0xff]
    %v55 = vld [vmem:[%s0 + $0x58] sm:$0xff]
    %v56 = vld [vmem:[%s0 + $0x60] sm:$0xff]
    %v57 = vld [vmem:[%s0 + $0x68] sm:$0xff]
    %v58 = vld [vmem:[%s0 + $0x70] sm:$0xff]
    %v59 = vld [vmem:[%s0 + $0x78] sm:$0xff]
    %vm60 = vcmask 64512
    %v62 = vsel %vm60, %v44, 0
    %v65 = vsel %vm60, %v45, 0
    %v68 = vsel %vm60, %v46, 0
    %v71 = vsel %vm60, %v47, 0
    %v74 = vsel %vm60, %v48, 0
    %v77 = vsel %vm60, %v49, 0
    %v80 = vsel %vm60, %v50, 0
    %v83 = vsel %vm60, %v51, 0
    %v86 = vsel %vm60, %v52, 0
    %v89 = vsel %vm60, %v53, 0
    %v92 = vsel %vm60, %v54, 0
    %v95 = vsel %vm60, %v55, 0
    %v98 = vsel %vm60, %v56, 0
    %v101 = vsel %vm60, %v57, 0
    %v104 = vsel %vm60, %v58, 0
    %v107 = vsel %vm60, %v59, 0
    %109 = vmatprep.subr.mxu0 0.0
    %110 = vmatpush1.msra.mxu0 %v43
    %111 = vmatprep.subr.mxu0 0.0
    %112 = vmatpush1.msra.mxu0 0.0
    %113 = vmatprep.subr.mxu0 0.0
    %114 = vmatpush1.msra.mxu0 0.0
    %115 = vmatprep.subr.mxu0 0.0
    %116 = vmatpush1.msra.mxu0 0.0
    %117 = vmatprep.subr.mxu0 0.0
    %118 = vmatpush1.msra.mxu0 0.0
    %119 = vmatprep.subr.mxu0 0.0
    %120 = vmatpush1.msra.mxu0 0.0
    %121 = vmatprep.subr.mxu0 0.0
    %122 = vmatpush1.msra.mxu0 0.0
    %123 = vmatprep.subr.mxu0 0.0
    %124 = vmatpush1.msra.mxu0 0.0
    %125 = vmatprep.subr.mxu0 0.0
    %126 = vmatpush1.msra.mxu0 0.0
    %127 = vmatprep.subr.mxu0 0.0
    %128 = vmatpush1.msra.mxu0 0.0
    %129 = vmatprep.subr.mxu0 0.0
    %130 = vmatpush1.msra.mxu0 0.0
    %131 = vmatprep.subr.mxu0 0.0
    %132 = vmatpush1.msra.mxu0 0.0
    %133 = vmatprep.subr.mxu0 0.0
    %134 = vmatpush1.msra.mxu0 0.0
    %135 = vmatprep.subr.mxu0 0.0
    %136 = vmatpush1.msra.mxu0 0.0
    %137 = vmatprep.subr.mxu0 0.0
    %138 = vmatpush1.msra.mxu0 0.0
    %139 = vmatprep.subr.mxu0 0.0
    %140 = vmatpush1.msra.mxu0 0.0
    %141 = vmatprep.subr.mxu0 0.0
    %142 = vmatpush1.msra.mxu0 0.0
    %143 = vmatprep.subr.mxu0 0.0
    %144 = vmatpush1.msra.mxu0 0.0
    %145 = vmatprep.subr.mxu0 0.0
    %146 = vmatpush1.msra.mxu0 0.0
    %147 = vmatprep.subr.mxu0 0.0
    %148 = vmatpush1.msra.mxu0 0.0
    %149 = vmatprep.subr.mxu0 0.0
    %150 = vmatpush1.msra.mxu0 0.0
    %151 = vmatprep.subr.mxu0 0.0
    %152 = vmatpush1.msra.mxu0 0.0
    %153 = vmatprep.subr.mxu0 0.0
    %154 = vmatpush1.msra.mxu0 0.0
    %155 = vmatprep.subr.mxu0 0.0
    %156 = vmatpush1.msra.mxu0 0.0
    %157 = vmatprep.subr.mxu0 0.0
    %158 = vmatpush1.msra.mxu0 0.0
    %159 = vmatprep.subr.mxu0 0.0
    %160 = vmatpush1.msra.mxu0 0.0
    %161 = vmatprep.subr.mxu0 0.0
    %162 = vmatpush1.msra.mxu0 0.0
    %163 = vmatprep.subr.mxu0 0.0
    %164 = vmatpush1.msra.mxu0 0.0
    %165 = vmatprep.subr.mxu0 0.0
    %166 = vmatpush1.msra.mxu0 0.0
    %167 = vmatprep.subr.mxu0 0.0
    %168 = vmatpush1.msra.mxu0 0.0
    %169 = vmatprep.subr.mxu0 0.0
    %170 = vmatpush1.msra.mxu0 0.0
    %171 = vmatprep.subr.mxu0 0.0
    %172 = vmatpush1.msra.mxu0 0.0
    %173 = vmatprep.mubr.f32.mxu0 0.0
    %174 = vmatmul.mubr.f32.gmra.mrb[0].mxu0 %v62
    %v175 = vpop.f32.mrb[0].mxu0
    %v176 = vadd.f32 0.0, %v175
    %v177 = vpop.f32.mrb[0].mxu0
    %178 = vmatprep.mubr.f32.mxu0 0.0
    %179 = vmatmul.mubr.f32.gmra.mrb[0].mxu0 %v65
    %v180 = vpop.f32.mrb[0].mxu0
    %v181 = vadd.f32 0.0, %v180
    %v182 = vpop.f32.mrb[0].mxu0
    %183 = vmatprep.mubr.f32.mxu0 0.0
    %184 = vmatmul.mubr.f32.gmra.mrb[0].mxu0 %v68
    %v185 = vpop.f32.mrb[0].mxu0
    %v186 = vadd.f32 0.0, %v185
    %v187 = vpop.f32.mrb[0].mxu0
    %188 = vmatprep.mubr.f32.mxu0 0.0
    %189 = vmatmul.mubr.f32.gmra.mrb[0].mxu0 %v71
    %v190 = vpop.f32.mrb[0].mxu0
    %v191 = vadd.f32 0.0, %v190
    %v192 = vpop.f32.mrb[0].mxu0
    %193 = vmatprep.mubr.f32.mxu0 0.0
    %194 = vmatmul.mubr.f32.gmra.mrb[0].mxu0 %v74
    %v195 = vpop.f32.mrb[0].mxu0
    %v196 = vadd.f32 0.0, %v195
    %v197 = vpop.f32.mrb[0].mxu0
    %198 = vmatprep.mubr.f32.mxu0 0.0
    %199 = vmatmul.mubr.f32.gmra.mrb[0].mxu0 %v77
    %v200 = vpop.f32.mrb[0].mxu0
    %v201 = vadd.f32 0.0, %v200
    %v202 = vpop.f32.mrb[0].mxu0
    %203 = vmatprep.mubr.f32.mxu0 0.0
    %204 = vmatmul.mubr.f32.gmra.mrb[0].mxu0 %v80
    %v205 = vpop.f32.mrb[0].mxu0
    %v206 = vadd.f32 0.0, %v205
    %v207 = vpop.f32.mrb[0].mxu0
    %208 = vmatprep.mubr.f32.mxu0 0.0
    %209 = vmatmul.mubr.f32.gmra.mrb[0].mxu0 %v83
    %v210 = vpop.f32.mrb[0].mxu0
    %v211 = vadd.f32 0.0, %v210
    %v212 = vpop.f32.mrb[0].mxu0
    %213 = vmatprep.mubr.f32.mxu0 0.0
    %214 = vmatmul.mubr.f32.gmra.mrb[0].mxu0 %v86
    %v215 = vpop.f32.mrb[0].mxu0
    %v216 = vadd.f32 0.0, %v215
    %v217 = vpop.f32.mrb[0].mxu0
    %218 = vmatprep.mubr.f32.mxu0 0.0
    %219 = vmatmul.mubr.f32.gmra.mrb[0].mxu0 %v89
    %v220 = vpop.f32.mrb[0].mxu0
    %v221 = vadd.f32 0.0, %v220
    %v222 = vpop.f32.mrb[0].mxu0
    %223 = vmatprep.mubr.f32.mxu0 0.0
    %224 = vmatmul.mubr.f32.gmra.mrb[0].mxu0 %v92
    %v225 = vpop.f32.mrb[0].mxu0
    %v226 = vadd.f32 0.0, %v225
    %v227 = vpop.f32.mrb[0].mxu0
    %228 = vmatprep.mubr.f32.mxu0 0.0
    %229 = vmatmul.mubr.f32.gmra.mrb[0].mxu0 %v95
    %v230 = vpop.f32.mrb[0].mxu0
    %v231 = vadd.f32 0.0, %v230
    %v232 = vpop.f32.mrb[0].mxu0
    %233 = vmatprep.mubr.f32.mxu0 0.0
    %234 = vmatmul.mubr.f32.gmra.mrb[0].mxu0 %v98
    %v235 = vpop.f32.mrb[0].mxu0
    %v236 = vadd.f32 0.0, %v235
    %v237 = vpop.f32.mrb[0].mxu0
    %238 = vmatprep.mubr.f32.mxu0 0.0
    %239 = vmatmul.mubr.f32.gmra.mrb[0].mxu0 %v101
    %v240 = vpop.f32.mrb[0].mxu0
    %v241 = vadd.f32 0.0, %v240
    %v242 = vpop.f32.mrb[0].mxu0
    %243 = vmatprep.mubr.f32.mxu0 0.0
    %244 = vmatmul.mubr.f32.gmra.mrb[0].mxu0 %v104
    %v245 = vpop.f32.mrb[0].mxu0
    %v246 = vadd.f32 0.0, %v245
    %v247 = vpop.f32.mrb[0].mxu0
    %248 = vmatprep.mubr.f32.mxu0 0.0
    %249 = vmatmul.mubr.f32.gmra.mrb[0].mxu0 %v107
    %v250 = vpop.f32.mrb[0].mxu0
    %v251 = vadd.f32 0.0, %v250
    %v252 = vpop.f32.mrb[0].mxu0
    %253 = vdwg.mxu0
    %v254 = vmax.f32 %v176, 0.0
    %v255 = vmax.f32 %v181, 0.0
    %v256 = vmax.f32 %v186, 0.0
    %v257 = vmax.f32 %v191, 0.0
    %v258 = vmax.f32 %v196, 0.0
    %v259 = vmax.f32 %v201, 0.0
    %v260 = vmax.f32 %v206, 0.0
    %v261 = vmax.f32 %v211, 0.0
    %v262 = vmax.f32 %v216, 0.0
    %v263 = vmax.f32 %v221, 0.0
    %v264 = vmax.f32 %v226, 0.0
    %v265 = vmax.f32 %v231, 0.0
    %v266 = vmax.f32 %v236, 0.0
    %v267 = vmax.f32 %v241, 0.0
    %v268 = vmax.f32 %v246, 0.0
    %v269 = vmax.f32 %v251, 0.0
    %v270 = vld [vmem:[#allocation2] sm:$0xff]
    %v271 = vld [vmem:[#allocation2 + $0x8] sm:$0xff]
    %v272 = vld [vmem:[#allocation2 + $0x10] sm:$0xff]
    %v273 = vld [vmem:[#allocation2 + $0x18] sm:$0xff]
    %v274 = vld [vmem:[#allocation2 + $0x20] sm:$0xff]
    %v275 = vld [vmem:[#allocation2 + $0x28] sm:$0xff]
    %v276 = vld [vmem:[#allocation2 + $0x30] sm:$0xff]
    %v277 = vld [vmem:[#allocation2 + $0x38] sm:$0xff]
    %v278 = vld [vmem:[#allocation2 + $0x40] sm:$0xff]
    %v279 = vld [vmem:[#allocation2 + $0x48] sm:$0xff]
    %v280 = vld [vmem:[#allocation2 + $0x50] sm:$0xff]
    %v281 = vld [vmem:[#allocation2 + $0x58] sm:$0xff]
    %v282 = vld [vmem:[#allocation2 + $0x60] sm:$0xff]
    %v283 = vld [vmem:[#allocation2 + $0x68] sm:$0xff]
    %v284 = vld [vmem:[#allocation2 + $0x70] sm:$0xff]
    %v285 = vld [vmem:[#allocation2 + $0x78] sm:$0xff]
    %v286 = vld [vmem:[#allocation2 + $0x80] sm:$0xff]
    %v287 = vld [vmem:[#allocation2 + $0x88] sm:$0xff]
    %v288 = vld [vmem:[#allocation2 + $0x90] sm:$0xff]
    %v289 = vld [vmem:[#allocation2 + $0x98] sm:$0xff]
    %v290 = vld [vmem:[#allocation2 + $0xa0] sm:$0xff]
    %v291 = vld [vmem:[#allocation2 + $0xa8] sm:$0xff]
    %v292 = vld [vmem:[#allocation2 + $0xb0] sm:$0xff]
    %v293 = vld [vmem:[#allocation2 + $0xb8] sm:$0xff]
    %v294 = vld [vmem:[#allocation2 + $0xc0] sm:$0xff]
    %v295 = vld [vmem:[#allocation2 + $0xc8] sm:$0xff]
    %v296 = vld [vmem:[#allocation2 + $0xd0] sm:$0xff]
    %v297 = vld [vmem:[#allocation2 + $0xd8] sm:$0xff]
    %v298 = vld [vmem:[#allocation2 + $0xe0] sm:$0xff]
    %v299 = vld [vmem:[#allocation2 + $0xe8] sm:$0xff]
    %v300 = vld [vmem:[#allocation2 + $0xf0] sm:$0xff]
    %v301 = vld [vmem:[#allocation2 + $0xf8] sm:$0xff]
    %v302 = vld [vmem:[#allocation2 + $0x100] sm:$0xff]
    %v303 = vld [vmem:[#allocation2 + $0x108] sm:$0xff]
    %v304 = vld [vmem:[#allocation2 + $0x110] sm:$0xff]
    %v305 = vld [vmem:[#allocation2 + $0x118] sm:$0xff]
    %v306 = vld [vmem:[#allocation2 + $0x120] sm:$0xff]
    %v307 = vld [vmem:[#allocation2 + $0x128] sm:$0xff]
    %v308 = vld [vmem:[#allocation2 + $0x130] sm:$0xff]
    %v309 = vld [vmem:[#allocation2 + $0x138] sm:$0xff]
    %v310 = vld [vmem:[#allocation2 + $0x140] sm:$0xff]
    %v311 = vld [vmem:[#allocation2 + $0x148] sm:$0xff]
    %v312 = vld [vmem:[#allocation2 + $0x150] sm:$0xff]
    %v313 = vld [vmem:[#allocation2 + $0x158] sm:$0xff]
    %v314 = vld [vmem:[#allocation2 + $0x160] sm:$0xff]
    %v315 = vld [vmem:[#allocation2 + $0x168] sm:$0xff]
    %v316 = vld [vmem:[#allocation2 + $0x170] sm:$0xff]
    %v317 = vld [vmem:[#allocation2 + $0x178] sm:$0xff]
    %v318 = vld [vmem:[#allocation2 + $0x180] sm:$0xff]
    %v319 = vld [vmem:[#allocation2 + $0x188] sm:$0xff]
    %v320 = vld [vmem:[#allocation2 + $0x190] sm:$0xff]
    %v321 = vld [vmem:[#allocation2 + $0x198] sm:$0xff]
    %v322 = vld [vmem:[#allocation2 + $0x1a0] sm:$0xff]
    %v323 = vld [vmem:[#allocation2 + $0x1a8] sm:$0xff]
    %v324 = vld [vmem:[#allocation2 + $0x1b0] sm:$0xff]
    %v325 = vld [vmem:[#allocation2 + $0x1b8] sm:$0xff]
    %v326 = vld [vmem:[#allocation2 + $0x1c0] sm:$0xff]
    %v327 = vld [vmem:[#allocation2 + $0x1c8] sm:$0xff]
    %v328 = vld [vmem:[#allocation2 + $0x1d0] sm:$0xff]
    %v329 = vld [vmem:[#allocation2 + $0x1d8] sm:$0xff]
    %v330 = vld [vmem:[#allocation2 + $0x1e0] sm:$0xff]
    %v331 = vld [vmem:[#allocation2 + $0x1e8] sm:$0xff]
    %v332 = vld [vmem:[#allocation2 + $0x1f0] sm:$0xff]
    %v333 = vld [vmem:[#allocation2 + $0x1f8] sm:$0xff]
    %v334 = vld [vmem:[#allocation2 + $0x200] sm:$0xff]
    %v335 = vld [vmem:[#allocation2 + $0x208] sm:$0xff]
    %v336 = vld [vmem:[#allocation2 + $0x210] sm:$0xff]
    %v337 = vld [vmem:[#allocation2 + $0x218] sm:$0xff]
    %v338 = vld [vmem:[#allocation2 + $0x220] sm:$0xff]
    %v339 = vld [vmem:[#allocation2 + $0x228] sm:$0xff]
    %v340 = vld [vmem:[#allocation2 + $0x230] sm:$0xff]
    %v341 = vld [vmem:[#allocation2 + $0x238] sm:$0xff]
    %v342 = vld [vmem:[#allocation2 + $0x240] sm:$0xff]
    %v343 = vld [vmem:[#allocation2 + $0x248] sm:$0xff]
    %v344 = vld [vmem:[#allocation2 + $0x250] sm:$0xff]
    %v345 = vld [vmem:[#allocation2 + $0x258] sm:$0xff]
    %v346 = vld [vmem:[#allocation2 + $0x260] sm:$0xff]
    %v347 = vld [vmem:[#allocation2 + $0x268] sm:$0xff]
    %v348 = vld [vmem:[#allocation2 + $0x270] sm:$0xff]
    %v349 = vld [vmem:[#allocation2 + $0x278] sm:$0xff]
    %v350 = vld [vmem:[#allocation2 + $0x280] sm:$0xff]
    %v351 = vld [vmem:[#allocation2 + $0x288] sm:$0xff]
    %v352 = vld [vmem:[#allocation2 + $0x290] sm:$0xff]
    %v353 = vld [vmem:[#allocation2 + $0x298] sm:$0xff]
    %v354 = vld [vmem:[#allocation2 + $0x2a0] sm:$0xff]
    %v355 = vld [vmem:[#allocation2 + $0x2a8] sm:$0xff]
    %v356 = vld [vmem:[#allocation2 + $0x2b0] sm:$0xff]
    %v357 = vld [vmem:[#allocation2 + $0x2b8] sm:$0xff]
    %v358 = vld [vmem:[#allocation2 + $0x2c0] sm:$0xff]
    %v359 = vld [vmem:[#allocation2 + $0x2c8] sm:$0xff]
    %v360 = vld [vmem:[#allocation2 + $0x2d0] sm:$0xff]
    %v361 = vld [vmem:[#allocation2 + $0x2d8] sm:$0xff]
    %v362 = vld [vmem:[#allocation2 + $0x2e0] sm:$0xff]
    %v363 = vld [vmem:[#allocation2 + $0x2e8] sm:$0xff]
    %v364 = vld [vmem:[#allocation2 + $0x2f0] sm:$0xff]
    %v365 = vld [vmem:[#allocation2 + $0x2f8] sm:$0xff]
    %v366 = vld [vmem:[#allocation2 + $0x300] sm:$0xff]
    %v367 = vld [vmem:[#allocation2 + $0x308] sm:$0xff]
    %v368 = vld [vmem:[#allocation2 + $0x310] sm:$0xff]
    %v369 = vld [vmem:[#allocation2 + $0x318] sm:$0xff]
    %v370 = vld [vmem:[#allocation2 + $0x320] sm:$0xff]
    %v371 = vld [vmem:[#allocation2 + $0x328] sm:$0xff]
    %v372 = vld [vmem:[#allocation2 + $0x330] sm:$0xff]
    %v373 = vld [vmem:[#allocation2 + $0x338] sm:$0xff]
    %v374 = vld [vmem:[#allocation2 + $0x340] sm:$0xff]
    %v375 = vld [vmem:[#allocation2 + $0x348] sm:$0xff]
    %v376 = vld [vmem:[#allocation2 + $0x350] sm:$0xff]
    %v377 = vld [vmem:[#allocation2 + $0x358] sm:$0xff]
    %v378 = vld [vmem:[#allocation2 + $0x360] sm:$0xff]
    %v379 = vld [vmem:[#allocation2 + $0x368] sm:$0xff]
    %v380 = vld [vmem:[#allocation2 + $0x370] sm:$0xff]
    %v381 = vld [vmem:[#allocation2 + $0x378] sm:$0xff]
    %v382 = vld [vmem:[#allocation2 + $0x380] sm:$0xff]
    %v383 = vld [vmem:[#allocation2 + $0x388] sm:$0xff]
    %v384 = vld [vmem:[#allocation2 + $0x390] sm:$0xff]
    %v385 = vld [vmem:[#allocation2 + $0x398] sm:$0xff]
    %v386 = vld [vmem:[#allocation2 + $0x3a0] sm:$0xff]
    %v387 = vld [vmem:[#allocation2 + $0x3a8] sm:$0xff]
    %v388 = vld [vmem:[#allocation2 + $0x3b0] sm:$0xff]
    %v389 = vld [vmem:[#allocation2 + $0x3b8] sm:$0xff]
    %v390 = vld [vmem:[#allocation2 + $0x3c0] sm:$0xff]
    %v391 = vld [vmem:[#allocation2 + $0x3c8] sm:$0xff]
    %v392 = vld [vmem:[#allocation2 + $0x3d0] sm:$0xff]
    %v393 = vld [vmem:[#allocation2 + $0x3d8] sm:$0xff]
    %v394 = vld [vmem:[#allocation2 + $0x3e0] sm:$0xff]
    %v395 = vld [vmem:[#allocation2 + $0x3e8] sm:$0xff]
    %v396 = vld [vmem:[#allocation2 + $0x3f0] sm:$0xff]
    %v397 = vld [vmem:[#allocation2 + $0x3f8] sm:$0xff]
    %398 = vmatprep.subr.mxu0 %v271
    %399 = vmatpush1.msra.mxu0 %v270
    %400 = vmatprep.subr.mxu0 %v275
    %401 = vmatpush1.msra.mxu0 %v274
    %402 = vmatprep.subr.mxu0 %v279
    %403 = vmatpush1.msra.mxu0 %v278
    %404 = vmatprep.subr.mxu0 %v283
    %405 = vmatpush1.msra.mxu0 %v282
    %406 = vmatprep.subr.mxu0 %v287
    %407 = vmatpush1.msra.mxu0 %v286
    %408 = vmatprep.subr.mxu0 %v291
    %409 = vmatpush1.msra.mxu0 %v290
    %410 = vmatprep.subr.mxu0 %v295
    %411 = vmatpush1.msra.mxu0 %v294
    %412 = vmatprep.subr.mxu0 %v299
    %413 = vmatpush1.msra.mxu0 %v298
    %414 = vmatprep.subr.mxu0 %v303
    %415 = vmatpush1.msra.mxu0 %v302
    %416 = vmatprep.subr.mxu0 %v307
    %417 = vmatpush1.msra.mxu0 %v306
    %418 = vmatprep.subr.mxu0 %v311
    %419 = vmatpush1.msra.mxu0 %v310
    %420 = vmatprep.subr.mxu0 %v315
    %421 = vmatpush1.msra.mxu0 %v314
    %422 = vmatprep.subr.mxu0 %v319
    %423 = vmatpush1.msra.mxu0 %v318
    %424 = vmatprep.subr.mxu0 %v323
    %425 = vmatpush1.msra.mxu0 %v322
    %426 = vmatprep.subr.mxu0 %v327
    %427 = vmatpush1.msra.mxu0 %v326
    %428 = vmatprep.subr.mxu0 %v331
    %429 = vmatpush1.msra.mxu0 %v330
    %430 = vmatprep.subr.mxu0 0.0
    %431 = vmatpush1.msra.mxu0 0.0
    %432 = vmatprep.subr.mxu0 0.0
    %433 = vmatpush1.msra.mxu0 0.0
    %434 = vmatprep.subr.mxu0 0.0
    %435 = vmatpush1.msra.mxu0 0.0
    %436 = vmatprep.subr.mxu0 0.0
    %437 = vmatpush1.msra.mxu0 0.0
    %438 = vmatprep.subr.mxu0 0.0
    %439 = vmatpush1.msra.mxu0 0.0
    %440 = vmatprep.subr.mxu0 0.0
    %441 = vmatpush1.msra.mxu0 0.0
    %442 = vmatprep.subr.mxu0 0.0
    %443 = vmatpush1.msra.mxu0 0.0
    %444 = vmatprep.subr.mxu0 0.0
    %445 = vmatpush1.msra.mxu0 0.0
    %446 = vmatprep.subr.mxu0 0.0
    %447 = vmatpush1.msra.mxu0 0.0
    %448 = vmatprep.subr.mxu0 0.0
    %449 = vmatpush1.msra.mxu0 0.0
    %450 = vmatprep.subr.mxu0 0.0
    %451 = vmatpush1.msra.mxu0 0.0
    %452 = vmatprep.subr.mxu0 0.0
    %453 = vmatpush1.msra.mxu0 0.0
    %454 = vmatprep.subr.mxu0 0.0
    %455 = vmatpush1.msra.mxu0 0.0
    %456 = vmatprep.subr.mxu0 0.0
    %457 = vmatpush1.msra.mxu0 0.0
    %458 = vmatprep.subr.mxu0 0.0
    %459 = vmatpush1.msra.mxu0 0.0
    %460 = vmatprep.subr.mxu0 0.0
    %461 = vmatpush1.msra.mxu0 0.0
    %462 = vmatprep.mubr.f32.mxu0 0.0
    %463 = vmatmul.mubr.f32.gmra.mrb[0].mxu0 %v254
    %v464 = vpop.f32.mrb[0].mxu0
    %v465 = vadd.f32 0.0, %v464
    %v466 = vpop.f32.mrb[0].mxu0
    %v467 = vadd.f32 0.0, %v466
    %468 = vmatprep.mubr.f32.mxu0 0.0
    %469 = vmatmul.mubr.f32.gmra.mrb[0].mxu0 %v255
    %v470 = vpop.f32.mrb[0].mxu0
    %v471 = vadd.f32 0.0, %v470
    %v472 = vpop.f32.mrb[0].mxu0
    %v473 = vadd.f32 0.0, %v472
    %474 = vmatprep.mubr.f32.mxu0 0.0
    %475 = vmatmul.mubr.f32.gmra.mrb[0].mxu0 %v256
    %v476 = vpop.f32.mrb[0].mxu0
    %v477 = vadd.f32 0.0, %v476
    %v478 = vpop.f32.mrb[0].mxu0
    %v479 = vadd.f32 0.0, %v478
    %480 = vmatprep.mubr.f32.mxu0 0.0
    %481 = vmatmul.mubr.f32.gmra.mrb[0].mxu0 %v257
    %v482 = vpop.f32.mrb[0].mxu0
    %v483 = vadd.f32 0.0, %v482
    %v484 = vpop.f32.mrb[0].mxu0
    %v485 = vadd.f32 0.0, %v484
    %486 = vmatprep.mubr.f32.mxu0 0.0
    %487 = vmatmul.mubr.f32.gmra.mrb[0].mxu0 %v258
    %v488 = vpop.f32.mrb[0].mxu0
    %v489 = vadd.f32 0.0, %v488
    %v490 = vpop.f32.mrb[0].mxu0
    %v491 = vadd.f32 0.0, %v490
    %492 = vmatprep.mubr.f32.mxu0 0.0
    %493 = vmatmul.mubr.f32.gmra.mrb[0].mxu0 %v259
    %v494 = vpop.f32.mrb[0].mxu0
    %v495 = vadd.f32 0.0, %v494
    %v496 = vpop.f32.mrb[0].mxu0
    %v497 = vadd.f32 0.0, %v496
    %498 = vmatprep.mubr.f32.mxu0 0.0
    %499 = vmatmul.mubr.f32.gmra.mrb[0].mxu0 %v260
    %v500 = vpop.f32.mrb[0].mxu0
    %v501 = vadd.f32 0.0, %v500
    %v502 = vpop.f32.mrb[0].mxu0
    %v503 = vadd.f32 0.0, %v502
    %504 = vmatprep.mubr.f32.mxu0 0.0
    %505 = vmatmul.mubr.f32.gmra.mrb[0].mxu0 %v261
    %v506 = vpop.f32.mrb[0].mxu0
    %v507 = vadd.f32 0.0, %v506
    %v508 = vpop.f32.mrb[0].mxu0
    %v509 = vadd.f32 0.0, %v508
    %510 = vmatprep.mubr.f32.mxu0 0.0
    %511 = vmatmul.mubr.f32.gmra.mrb[0].mxu0 %v262
    %v512 = vpop.f32.mrb[0].mxu0
    %v513 = vadd.f32 0.0, %v512
    %v514 = vpop.f32.mrb[0].mxu0
    %v515 = vadd.f32 0.0, %v514
    %516 = vmatprep.mubr.f32.mxu0 0.0
    %517 = vmatmul.mubr.f32.gmra.mrb[0].mxu0 %v263
    %v518 = vpop.f32.mrb[0].mxu0
    %v519 = vadd.f32 0.0, %v518
    %v520 = vpop.f32.mrb[0].mxu0
    %v521 = vadd.f32 0.0, %v520
    %522 = vmatprep.mubr.f32.mxu0 0.0
    %523 = vmatmul.mubr.f32.gmra.mrb[0].mxu0 %v264
    %v524 = vpop.f32.mrb[0].mxu0
    %v525 = vadd.f32 0.0, %v524
    %v526 = vpop.f32.mrb[0].mxu0
    %v527 = vadd.f32 0.0, %v526
    %528 = vmatprep.mubr.f32.mxu0 0.0
    %529 = vmatmul.mubr.f32.gmra.mrb[0].mxu0 %v265
    %v530 = vpop.f32.mrb[0].mxu0
    %v531 = vadd.f32 0.0, %v530
    %v532 = vpop.f32.mrb[0].mxu0
    %v533 = vadd.f32 0.0, %v532
    %534 = vmatprep.mubr.f32.mxu0 0.0
    %535 = vmatmul.mubr.f32.gmra.mrb[0].mxu0 %v266
    %v536 = vpop.f32.mrb[0].mxu0
    %v537 = vadd.f32 0.0, %v536
    %v538 = vpop.f32.mrb[0].mxu0
    %v539 = vadd.f32 0.0, %v538
    %540 = vmatprep.mubr.f32.mxu0 0.0
    %541 = vmatmul.mubr.f32.gmra.mrb[0].mxu0 %v267
    %v542 = vpop.f32.mrb[0].mxu0
    %v543 = vadd.f32 0.0, %v542
    %v544 = vpop.f32.mrb[0].mxu0
    %v545 = vadd.f32 0.0, %v544
    %546 = vmatprep.mubr.f32.mxu0 0.0
    %547 = vmatmul.mubr.f32.gmra.mrb[0].mxu0 %v268
    %v548 = vpop.f32.mrb[0].mxu0
    %v549 = vadd.f32 0.0, %v548
    %v550 = vpop.f32.mrb[0].mxu0
    %v551 = vadd.f32 0.0, %v550
    %552 = vmatprep.mubr.f32.mxu0 0.0
    %553 = vmatmul.mubr.f32.gmra.mrb[0].mxu0 %v269
    %v554 = vpop.f32.mrb[0].mxu0
    %v555 = vadd.f32 0.0, %v554
    %v556 = vpop.f32.mrb[0].mxu0
    %v557 = vadd.f32 0.0, %v556
    %558 = vdwg.mxu0
    %559 = vmatprep.subr.mxu0 %v273
    %560 = vmatpush1.msra.mxu0 %v272
    %561 = vmatprep.subr.mxu0 %v277
    %562 = vmatpush1.msra.mxu0 %v276
    %563 = vmatprep.subr.mxu0 %v281
    %564 = vmatpush1.msra.mxu0 %v280
    %565 = vmatprep.subr.mxu0 %v285
    %566 = vmatpush1.msra.mxu0 %v284
    %567 = vmatprep.subr.mxu0 %v289
    %568 = vmatpush1.msra.mxu0 %v288
    %569 = vmatprep.subr.mxu0 %v293
    %570 = vmatpush1.msra.mxu0 %v292
    %571 = vmatprep.subr.mxu0 %v297
    %572 = vmatpush1.msra.mxu0 %v296
    %573 = vmatprep.subr.mxu0 %v301
    %574 = vmatpush1.msra.mxu0 %v300
    %575 = vmatprep.subr.mxu0 %v305
    %576 = vmatpush1.msra.mxu0 %v304
    %577 = vmatprep.subr.mxu0 %v309
    %578 = vmatpush1.msra.mxu0 %v308
    %579 = vmatprep.subr.mxu0 %v313
    %580 = vmatpush1.msra.mxu0 %v312
    %581 = vmatprep.subr.mxu0 %v317
    %582 = vmatpush1.msra.mxu0 %v316
    %583 = vmatprep.subr.mxu0 %v321
    %584 = vmatpush1.msra.mxu0 %v320
    %585 = vmatprep.subr.mxu0 %v325
    %586 = vmatpush1.msra.mxu0 %v324
    %587 = vmatprep.subr.mxu0 %v329
    %588 = vmatpush1.msra.mxu0 %v328
    %589 = vmatprep.subr.mxu0 %v333
    %590 = vmatpush1.msra.mxu0 %v332
    %591 = vmatprep.subr.mxu0 0.0
    %592 = vmatpush1.msra.mxu0 0.0
    %593 = vmatprep.subr.mxu0 0.0
    %594 = vmatpush1.msra.mxu0 0.0
    %595 = vmatprep.subr.mxu0 0.0
    %596 = vmatpush1.msra.mxu0 0.0
    %597 = vmatprep.subr.mxu0 0.0
    %598 = vmatpush1.msra.mxu0 0.0
    %599 = vmatprep.subr.mxu0 0.0
    %600 = vmatpush1.msra.mxu0 0.0
    %601 = vmatprep.subr.mxu0 0.0
    %602 = vmatpush1.msra.mxu0 0.0
    %603 = vmatprep.subr.mxu0 0.0
    %604 = vmatpush1.msra.mxu0 0.0
    %605 = vmatprep.subr.mxu0 0.0
    %606 = vmatpush1.msra.mxu0 0.0
    %607 = vmatprep.subr.mxu0 0.0
    %608 = vmatpush1.msra.mxu0 0.0
    %609 = vmatprep.subr.mxu0 0.0
    %610 = vmatpush1.msra.mxu0 0.0
    %611 = vmatprep.subr.mxu0 0.0
    %612 = vmatpush1.msra.mxu0 0.0
    %613 = vmatprep.subr.mxu0 0.0
    %614 = vmatpush1.msra.mxu0 0.0
    %615 = vmatprep.subr.mxu0 0.0
    %616 = vmatpush1.msra.mxu0 0.0
    %617 = vmatprep.subr.mxu0 0.0
    %618 = vmatpush1.msra.mxu0 0.0
    %619 = vmatprep.subr.mxu0 0.0
    %620 = vmatpush1.msra.mxu0 0.0
    %621 = vmatprep.subr.mxu0 0.0
    %622 = vmatpush1.msra.mxu0 0.0
    %623 = vmatprep.mubr.f32.mxu0 0.0
    %624 = vmatmul.mubr.f32.gmra.mrb[0].mxu0 %v254
    %v625 = vpop.f32.mrb[0].mxu0
    %v626 = vadd.f32 0.0, %v625
    %v627 = vpop.f32.mrb[0].mxu0
    %v628 = vadd.f32 0.0, %v627
    %629 = vmatprep.mubr.f32.mxu0 0.0
    %630 = vmatmul.mubr.f32.gmra.mrb[0].mxu0 %v255
    %v631 = vpop.f32.mrb[0].mxu0
    %v632 = vadd.f32 0.0, %v631
    %v633 = vpop.f32.mrb[0].mxu0
    %v634 = vadd.f32 0.0, %v633
    %635 = vmatprep.mubr.f32.mxu0 0.0
    %636 = vmatmul.mubr.f32.gmra.mrb[0].mxu0 %v256
    %v637 = vpop.f32.mrb[0].mxu0
    %v638 = vadd.f32 0.0, %v637
    %v639 = vpop.f32.mrb[0].mxu0
    %v640 = vadd.f32 0.0, %v639
    %641 = vmatprep.mubr.f32.mxu0 0.0
    %642 = vmatmul.mubr.f32.gmra.mrb[0].mxu0 %v257
    %v643 = vpop.f32.mrb[0].mxu0
    %v644 = vadd.f32 0.0, %v643
    %v645 = vpop.f32.mrb[0].mxu0
    %v646 = vadd.f32 0.0, %v645
    %647 = vmatprep.mubr.f32.mxu0 0.0
    %648 = vmatmul.mubr.f32.gmra.mrb[0].mxu0 %v258
    %v649 = vpop.f32.mrb[0].mxu0
    %v650 = vadd.f32 0.0, %v649
    %v651 = vpop.f32.mrb[0].mxu0
    %v652 = vadd.f32 0.0, %v651
    %653 = vmatprep.mubr.f32.mxu0 0.0
    %654 = vmatmul.mubr.f32.gmra.mrb[0].mxu0 %v259
    %v655 = vpop.f32.mrb[0].mxu0
    %v656 = vadd.f32 0.0, %v655
    %v657 = vpop.f32.mrb[0].mxu0
    %v658 = vadd.f32 0.0, %v657
    %659 = vmatprep.mubr.f32.mxu0 0.0
    %660 = vmatmul.mubr.f32.gmra.mrb[0].mxu0 %v260
    %v661 = vpop.f32.mrb[0].mxu0
    %v662 = vadd.f32 0.0, %v661
    %v663 = vpop.f32.mrb[0].mxu0
    %v664 = vadd.f32 0.0, %v663
    %665 = vmatprep.mubr.f32.mxu0 0.0
    %666 = vmatmul.mubr.f32.gmra.mrb[0].mxu0 %v261
    %v667 = vpop.f32.mrb[0].mxu0
    %v668 = vadd.f32 0.0, %v667
    %v669 = vpop.f32.mrb[0].mxu0
    %v670 = vadd.f32 0.0, %v669
    %671 = vmatprep.mubr.f32.mxu0 0.0
    %672 = vmatmul.mubr.f32.gmra.mrb[0].mxu0 %v262
    %v673 = vpop.f32.mrb[0].mxu0
    %v674 = vadd.f32 0.0, %v673
    %v675 = vpop.f32.mrb[0].mxu0
    %v676 = vadd.f32 0.0, %v675
    %677 = vmatprep.mubr.f32.mxu0 0.0
    %678 = vmatmul.mubr.f32.gmra.mrb[0].mxu0 %v263
    %v679 = vpop.f32.mrb[0].mxu0
    %v680 = vadd.f32 0.0, %v679
    %v681 = vpop.f32.mrb[0].mxu0
    %v682 = vadd.f32 0.0, %v681
    %683 = vmatprep.mubr.f32.mxu0 0.0
    %684 = vmatmul.mubr.f32.gmra.mrb[0].mxu0 %v264
    %v685 = vpop.f32.mrb[0].mxu0
    %v686 = vadd.f32 0.0, %v685
    %v687 = vpop.f32.mrb[0].mxu0
    %v688 = vadd.f32 0.0, %v687
    %689 = vmatprep.mubr.f32.mxu0 0.0
    %690 = vmatmul.mubr.f32.gmra.mrb[0].mxu0 %v265
    %v691 = vpop.f32.mrb[0].mxu0
    %v692 = vadd.f32 0.0, %v691
    %v693 = vpop.f32.mrb[0].mxu0
    %v694 = vadd.f32 0.0, %v693
    %695 = vmatprep.mubr.f32.mxu0 0.0
    %696 = vmatmul.mubr.f32.gmra.mrb[0].mxu0 %v266
    %v697 = vpop.f32.mrb[0].mxu0
    %v698 = vadd.f32 0.0, %v697
    %v699 = vpop.f32.mrb[0].mxu0
    %v700 = vadd.f32 0.0, %v699
    %701 = vmatprep.mubr.f32.mxu0 0.0
    %702 = vmatmul.mubr.f32.gmra.mrb[0].mxu0 %v267
    %v703 = vpop.f32.mrb[0].mxu0
    %v704 = vadd.f32 0.0, %v703
    %v705 = vpop.f32.mrb[0].mxu0
    %v706 = vadd.f32 0.0, %v705
    %707 = vmatprep.mubr.f32.mxu0 0.0
    %708 = vmatmul.mubr.f32.gmra.mrb[0].mxu0 %v268
    %v709 = vpop.f32.mrb[0].mxu0
    %v710 = vadd.f32 0.0, %v709
    %v711 = vpop.f32.mrb[0].mxu0
    %v712 = vadd.f32 0.0, %v711
    %713 = vmatprep.mubr.f32.mxu0 0.0
    %714 = vmatmul.mubr.f32.gmra.mrb[0].mxu0 %v269
    %v715 = vpop.f32.mrb[0].mxu0
    %v716 = vadd.f32 0.0, %v715
    %v717 = vpop.f32.mrb[0].mxu0
    %v718 = vadd.f32 0.0, %v717
    %719 = vdwg.mxu0
    %720 = vmatprep.subr.mxu0 %v335
    %721 = vmatpush1.msra.mxu0 %v334
    %722 = vmatprep.subr.mxu0 %v339
    %723 = vmatpush1.msra.mxu0 %v338
    %724 = vmatprep.subr.mxu0 %v343
    %725 = vmatpush1.msra.mxu0 %v342
    %726 = vmatprep.subr.mxu0 %v347
    %727 = vmatpush1.msra.mxu0 %v346
    %728 = vmatprep.subr.mxu0 %v351
    %729 = vmatpush1.msra.mxu0 %v350
    %730 = vmatprep.subr.mxu0 %v355
    %731 = vmatpush1.msra.mxu0 %v354
    %732 = vmatprep.subr.mxu0 %v359
    %733 = vmatpush1.msra.mxu0 %v358
    %734 = vmatprep.subr.mxu0 %v363
    %735 = vmatpush1.msra.mxu0 %v362
    %736 = vmatprep.subr.mxu0 %v367
    %737 = vmatpush1.msra.mxu0 %v366
    %738 = vmatprep.subr.mxu0 %v371
    %739 = vmatpush1.msra.mxu0 %v370
    %740 = vmatprep.subr.mxu0 %v375
    %741 = vmatpush1.msra.mxu0 %v374
    %742 = vmatprep.subr.mxu0 %v379
    %743 = vmatpush1.msra.mxu0 %v378
    %744 = vmatprep.subr.mxu0 %v383
    %745 = vmatpush1.msra.mxu0 %v382
    %746 = vmatprep.subr.mxu0 %v387
    %747 = vmatpush1.msra.mxu0 %v386
    %748 = vmatprep.subr.mxu0 %v391
    %749 = vmatpush1.msra.mxu0 %v390
    %750 = vmatprep.subr.mxu0 %v395
    %751 = vmatpush1.msra.mxu0 %v394
    %752 = vmatprep.subr.mxu0 0.0
    %753 = vmatpush1.msra.mxu0 0.0
    %754 = vmatprep.subr.mxu0 0.0
    %755 = vmatpush1.msra.mxu0 0.0
    %756 = vmatprep.subr.mxu0 0.0
    %757 = vmatpush1.msra.mxu0 0.0
    %758 = vmatprep.subr.mxu0 0.0
    %759 = vmatpush1.msra.mxu0 0.0
    %760 = vmatprep.subr.mxu0 0.0
    %761 = vmatpush1.msra.mxu0 0.0
    %762 = vmatprep.subr.mxu0 0.0
    %763 = vmatpush1.msra.mxu0 0.0
    %764 = vmatprep.subr.mxu0 0.0
    %765 = vmatpush1.msra.mxu0 0.0
    %766 = vmatprep.subr.mxu0 0.0
    %767 = vmatpush1.msra.mxu0 0.0
    %768 = vmatprep.subr.mxu0 0.0
    %769 = vmatpush1.msra.mxu0 0.0
    %770 = vmatprep.subr.mxu0 0.0
    %771 = vmatpush1.msra.mxu0 0.0
    %772 = vmatprep.subr.mxu0 0.0
    %773 = vmatpush1.msra.mxu0 0.0
    %774 = vmatprep.subr.mxu0 0.0
    %775 = vmatpush1.msra.mxu0 0.0
    %776 = vmatprep.subr.mxu0 0.0
    %777 = vmatpush1.msra.mxu0 0.0
    %778 = vmatprep.subr.mxu0 0.0
    %779 = vmatpush1.msra.mxu0 0.0
    %780 = vmatprep.subr.mxu0 0.0
    %781 = vmatpush1.msra.mxu0 0.0
    %782 = vmatprep.subr.mxu0 0.0
    %783 = vmatpush1.msra.mxu0 0.0
    %784 = vmatprep.mubr.f32.mxu0 0.0
    %785 = vmatmul.mubr.f32.gmra.mrb[0].mxu0 0.0
    %v786 = vpop.f32.mrb[0].mxu0
    %v787 = vadd.f32 0.0, %v786
    %v788 = vpop.f32.mrb[0].mxu0
    %v789 = vadd.f32 0.0, %v788
    %790 = vdwg.mxu0
    %791 = vmatprep.subr.mxu0 %v337
    %792 = vmatpush1.msra.mxu0 %v336
    %793 = vmatprep.subr.mxu0 %v341
    %794 = vmatpush1.msra.mxu0 %v340
    %795 = vmatprep.subr.mxu0 %v345
    %796 = vmatpush1.msra.mxu0 %v344
    %797 = vmatprep.subr.mxu0 %v349
    %798 = vmatpush1.msra.mxu0 %v348
    %799 = vmatprep.subr.mxu0 %v353
    %800 = vmatpush1.msra.mxu0 %v352
    %801 = vmatprep.subr.mxu0 %v357
    %802 = vmatpush1.msra.mxu0 %v356
    %803 = vmatprep.subr.mxu0 %v361
    %804 = vmatpush1.msra.mxu0 %v360
    %805 = vmatprep.subr.mxu0 %v365
    %806 = vmatpush1.msra.mxu0 %v364
    %807 = vmatprep.subr.mxu0 %v369
    %808 = vmatpush1.msra.mxu0 %v368
    %809 = vmatprep.subr.mxu0 %v373
    %810 = vmatpush1.msra.mxu0 %v372
    %811 = vmatprep.subr.mxu0 %v377
    %812 = vmatpush1.msra.mxu0 %v376
    %813 = vmatprep.subr.mxu0 %v381
    %814 = vmatpush1.msra.mxu0 %v380
    %815 = vmatprep.subr.mxu0 %v385
    %816 = vmatpush1.msra.mxu0 %v384
    %817 = vmatprep.subr.mxu0 %v389
    %818 = vmatpush1.msra.mxu0 %v388
    %819 = vmatprep.subr.mxu0 %v393
    %820 = vmatpush1.msra.mxu0 %v392
    %821 = vmatprep.subr.mxu0 %v397
    %822 = vmatpush1.msra.mxu0 %v396
    %823 = vmatprep.subr.mxu0 0.0
    %824 = vmatpush1.msra.mxu0 0.0
    %825 = vmatprep.subr.mxu0 0.0
    %826 = vmatpush1.msra.mxu0 0.0
    %827 = vmatprep.subr.mxu0 0.0
    %828 = vmatpush1.msra.mxu0 0.0
    %829 = vmatprep.subr.mxu0 0.0
    %830 = vmatpush1.msra.mxu0 0.0
    %831 = vmatprep.subr.mxu0 0.0
    %832 = vmatpush1.msra.mxu0 0.0
    %833 = vmatprep.subr.mxu0 0.0
    %834 = vmatpush1.msra.mxu0 0.0
    %835 = vmatprep.subr.mxu0 0.0
    %836 = vmatpush1.msra.mxu0 0.0
    %837 = vmatprep.subr.mxu0 0.0
    %838 = vmatpush1.msra.mxu0 0.0
    %839 = vmatprep.subr.mxu0 0.0
    %840 = vmatpush1.msra.mxu0 0.0
    %841 = vmatprep.subr.mxu0 0.0
    %842 = vmatpush1.msra.mxu0 0.0
    %843 = vmatprep.subr.mxu0 0.0
    %844 = vmatpush1.msra.mxu0 0.0
    %845 = vmatprep.subr.mxu0 0.0
    %846 = vmatpush1.msra.mxu0 0.0
    %847 = vmatprep.subr.mxu0 0.0
    %848 = vmatpush1.msra.mxu0 0.0
    %849 = vmatprep.subr.mxu0 0.0
    %850 = vmatpush1.msra.mxu0 0.0
    %851 = vmatprep.subr.mxu0 0.0
    %852 = vmatpush1.msra.mxu0 0.0
    %853 = vmatprep.subr.mxu0 0.0
    %854 = vmatpush1.msra.mxu0 0.0
    %855 = vmatprep.mubr.f32.mxu0 0.0
    %856 = vmatmul.mubr.f32.gmra.mrb[0].mxu0 0.0
    %v857 = vpop.f32.mrb[0].mxu0
    %v858 = vadd.f32 0.0, %v857
    %v859 = vpop.f32.mrb[0].mxu0
    %v860 = vadd.f32 0.0, %v859
    %861 = vdwg.mxu0
    %v862 = vadd.f32 %v465, %v787
    %v863 = vadd.f32 %v467, %v789
    %v864 = vadd.f32 %v626, %v858
    %v865 = vadd.f32 %v628, %v860
    %v866 = vxor.u32 %v862, 2147483648
    %v867 = vmul.f32 %v866, 1.442695
    %v868 = vpow.pop %v867
    %v869 = vadd.f32 %v868, 1.0
    %v870 = vrcp.pop %v869
    %v871 = vmul.f32 1.0, %v870
    %v872 = vxor.u32 %v863, 2147483648
    %v873 = vmul.f32 %v872, 1.442695
    %v874 = vpow.pop %v873
    %v875 = vadd.f32 %v874, 1.0
    %v876 = vrcp.pop %v875
    %v877 = vmul.f32 1.0, %v876
    %v878 = vxor.u32 %v864, 2147483648
    %v879 = vmul.f32 %v878, 1.442695
    %v880 = vpow.pop %v879
    %v881 = vadd.f32 %v880, 1.0
    %v882 = vrcp.pop %v881
    %v883 = vmul.f32 1.0, %v882
    %v884 = vtanh.pop %v865
    %v885 = vmul.f32 %v877, 0.0
    %v886 = vmul.f32 %v871, %v884
    %v887 = vadd.f32 %v885, %v886
    %v888 = vtanh.pop %v887
    %v889 = vmul.f32 %v883, %v888
    %890 = vmatprep.subr.mxu0 %v335
    %891 = vmatpush1.msra.mxu0 %v334
    %892 = vmatprep.subr.mxu0 %v339
    %893 = vmatpush1.msra.mxu0 %v338
    %894 = vmatprep.subr.mxu0 %v343
    %895 = vmatpush1.msra.mxu0 %v342
    %896 = vmatprep.subr.mxu0 %v347
    %897 = vmatpush1.msra.mxu0 %v346
    %898 = vmatprep.subr.mxu0 %v351
    %899 = vmatpush1.msra.mxu0 %v350
    %900 = vmatprep.subr.mxu0 %v355
    %901 = vmatpush1.msra.mxu0 %v354
    %902 = vmatprep.subr.mxu0 %v359
    %903 = vmatpush1.msra.mxu0 %v358
    %904 = vmatprep.subr.mxu0 %v363
    %905 = vmatpush1.msra.mxu0 %v362
    %906 = vmatprep.subr.mxu0 %v367
    %907 = vmatpush1.msra.mxu0 %v366
    %908 = vmatprep.subr.mxu0 %v371
    %909 = vmatpush1.msra.mxu0 %v370
    %910 = vmatprep.subr.mxu0 %v375
    %911 = vmatpush1.msra.mxu0 %v374
    %912 = vmatprep.subr.mxu0 %v379
    %913 = vmatpush1.msra.mxu0 %v378
    %914 = vmatprep.subr.mxu0 %v383
    %915 = vmatpush1.msra.mxu0 %v382
    %916 = vmatprep.subr.mxu0 %v387
    %917 = vmatpush1.msra.mxu0 %v386
    %918 = vmatprep.subr.mxu0 %v391
    %919 = vmatpush1.msra.mxu0 %v390
    %920 = vmatprep.subr.mxu0 %v395
    %921 = vmatpush1.msra.mxu0 %v394
    %922 = vmatprep.subr.mxu0 0.0
    %923 = vmatpush1.msra.mxu0 0.0
    %924 = vmatprep.subr.mxu0 0.0
    %925 = vmatpush1.msra.mxu0 0.0
    %926 = vmatprep.subr.mxu0 0.0
    %927 = vmatpush1.msra.mxu0 0.0
    %928 = vmatprep.subr.mxu0 0.0
    %929 = vmatpush1.msra.mxu0 0.0
    %930 = vmatprep.subr.mxu0 0.0
    %931 = vmatpush1.msra.mxu0 0.0
    %932 = vmatprep.subr.mxu0 0.0
    %933 = vmatpush1.msra.mxu0 0.0
    %934 = vmatprep.subr.mxu0 0.0
    %935 = vmatpush1.msra.mxu0 0.0
    %936 = vmatprep.subr.mxu0 0.0
    %937 = vmatpush1.msra.mxu0 0.0
    %938 = vmatprep.subr.mxu0 0.0
    %939 = vmatpush1.msra.mxu0 0.0
    %940 = vmatprep.subr.mxu0 0.0
    %941 = vmatpush1.msra.mxu0 0.0
    %942 = vmatprep.subr.mxu0 0.0
    %943 = vmatpush1.msra.mxu0 0.0
    %944 = vmatprep.subr.mxu0 0.0
    %945 = vmatpush1.msra.mxu0 0.0
    %946 = vmatprep.subr.mxu0 0.0
    %947 = vmatpush1.msra.mxu0 0.0
    %948 = vmatprep.subr.mxu0 0.0
    %949 = vmatpush1.msra.mxu0 0.0
    %950 = vmatprep.subr.mxu0 0.0
    %951 = vmatpush1.msra.mxu0 0.0
    %952 = vmatprep.subr.mxu0 0.0
    %953 = vmatpush1.msra.mxu0 0.0
    %954 = vmatprep.mubr.f32.mxu0 0.0
    %955 = vmatmul.mubr.f32.gmra.mrb[0].mxu0 %v889
    %v956 = vpop.f32.mrb[0].mxu0
    %v957 = vadd.f32 0.0, %v956
    %v958 = vpop.f32.mrb[0].mxu0
    %v959 = vadd.f32 0.0, %v958
    %960 = vdwg.mxu0
    %961 = vmatprep.subr.mxu0 %v337
    %962 = vmatpush1.msra.mxu0 %v336
    %963 = vmatprep.subr.mxu0 %v341
    %964 = vmatpush1.msra.mxu0 %v340
    %965 = vmatprep.subr.mxu0 %v345
    %966 = vmatpush1.msra.mxu0 %v344
    %967 = vmatprep.subr.mxu0 %v349
    %968 = vmatpush1.msra.mxu0 %v348
    %969 = vmatprep.subr.mxu0 %v353
    %970 = vmatpush1.msra.mxu0 %v352
    %971 = vmatprep.subr.mxu0 %v357
    %972 = vmatpush1.msra.mxu0 %v356
    %973 = vmatprep.subr.mxu0 %v361
    %974 = vmatpush1.msra.mxu0 %v360
    %975 = vmatprep.subr.mxu0 %v365
    %976 = vmatpush1.msra.mxu0 %v364
    %977 = vmatprep.subr.mxu0 %v369
    %978 = vmatpush1.msra.mxu0 %v368
    %979 = vmatprep.subr.mxu0 %v373
    %980 = vmatpush1.msra.mxu0 %v372
    %981 = vmatprep.subr.mxu0 %v377
    %982 = vmatpush1.msra.mxu0 %v376
    %983 = vmatprep.subr.mxu0 %v381
    %984 = vmatpush1.msra.mxu0 %v380
    %985 = vmatprep.subr.mxu0 %v385
    %986 = vmatpush1.msra.mxu0 %v384
    %987 = vmatprep.subr.mxu0 %v389
    %988 = vmatpush1.msra.mxu0 %v388
    %989 = vmatprep.subr.mxu0 %v393
    %990 = vmatpush1.msra.mxu0 %v392
    %991 = vmatprep.subr.mxu0 %v397
    %992 = vmatpush1.msra.mxu0 %v396
    %993 = vmatprep.subr.mxu0 0.0
    %994 = vmatpush1.msra.mxu0 0.0
    %995 = vmatprep.subr.mxu0 0.0
    %996 = vmatpush1.msra.mxu0 0.0
    %997 = vmatprep.subr.mxu0 0.0
    %998 = vmatpush1.msra.mxu0 0.0
    %999 = vmatprep.subr.mxu0 0.0
    %1000 = vmatpush1.msra.mxu0 0.0
    %1001 = vmatprep.subr.mxu0 0.0
    %1002 = vmatpush1.msra.mxu0 0.0
    %1003 = vmatprep.subr.mxu0 0.0
    %1004 = vmatpush1.msra.mxu0 0.0
    %1005 = vmatprep.subr.mxu0 0.0
    %1006 = vmatpush1.msra.mxu0 0.0
    %1007 = vmatprep.subr.mxu0 0.0
    %1008 = vmatpush1.msra.mxu0 0.0
    %1009 = vmatprep.subr.mxu0 0.0
    %1010 = vmatpush1.msra.mxu0 0.0
    %1011 = vmatprep.subr.mxu0 0.0
    %1012 = vmatpush1.msra.mxu0 0.0
    %1013 = vmatprep.subr.mxu0 0.0
    %1014 = vmatpush1.msra.mxu0 0.0
    %1015 = vmatprep.subr.mxu0 0.0
    %1016 = vmatpush1.msra.mxu0 0.0
    %1017 = vmatprep.subr.mxu0 0.0
    %1018 = vmatpush1.msra.mxu0 0.0
    %1019 = vmatprep.subr.mxu0 0.0
    %1020 = vmatpush1.msra.mxu0 0.0
    %1021 = vmatprep.subr.mxu0 0.0
    %1022 = vmatpush1.msra.mxu0 0.0
    %1023 = vmatprep.subr.mxu0 0.0
    %1024 = vmatpush1.msra.mxu0 0.0
    %1025 = vmatprep.mubr.f32.mxu0 0.0
    %1026 = vmatmul.mubr.f32.gmra.mrb[0].mxu0 %v889
    %v1027 = vpop.f32.mrb[0].mxu0
    %v1028 = vadd.f32 0.0, %v1027
    %v1029 = vpop.f32.mrb[0].mxu0
    %v1030 = vadd.f32 0.0, %v1029
    %1031 = vdwg.mxu0
    %v1032 = vadd.f32 %v471, %v957
    %v1033 = vadd.f32 %v473, %v959
    %v1034 = vadd.f32 %v632, %v1028
    %v1035 = vadd.f32 %v634, %v1030
    %v1036 = vxor.u32 %v1032, 2147483648
    %v1037 = vmul.f32 %v1036, 1.442695
    %v1038 = vpow.pop %v1037
    %v1039 = vadd.f32 %v1038, 1.0
    %v1040 = vrcp.pop %v1039
    %v1041 = vmul.f32 1.0, %v1040
    %v1042 = vxor.u32 %v1033, 2147483648
    %v1043 = vmul.f32 %v1042, 1.442695
    %v1044 = vpow.pop %v1043
    %v1045 = vadd.f32 %v1044, 1.0
    %v1046 = vrcp.pop %v1045
    %v1047 = vmul.f32 1.0, %v1046
    %v1048 = vxor.u32 %v1034, 2147483648
    %v1049 = vmul.f32 %v1048, 1.442695
    %v1050 = vpow.pop %v1049
    %v1051 = vadd.f32 %v1050, 1.0
    %v1052 = vrcp.pop %v1051
    %v1053 = vmul.f32 1.0, %v1052
    %v1054 = vtanh.pop %v1035
    %v1055 = vmul.f32 %v1047, %v887
    %v1056 = vmul.f32 %v1041, %v1054
    %v1057 = vadd.f32 %v1055, %v1056
    %v1058 = vtanh.pop %v1057
    %v1059 = vmul.f32 %v1053, %v1058
    %1060 = vmatprep.subr.mxu0 %v335
    %1061 = vmatpush1.msra.mxu0 %v334
    %1062 = vmatprep.subr.mxu0 %v339
    %1063 = vmatpush1.msra.mxu0 %v338
    %1064 = vmatprep.subr.mxu0 %v343
    %1065 = vmatpush1.msra.mxu0 %v342
    %1066 = vmatprep.subr.mxu0 %v347
    %1067 = vmatpush1.msra.mxu0 %v346
    %1068 = vmatprep.subr.mxu0 %v351
    %1069 = vmatpush1.msra.mxu0 %v350
    %1070 = vmatprep.subr.mxu0 %v355
    %1071 = vmatpush1.msra.mxu0 %v354
    %1072 = vmatprep.subr.mxu0 %v359
    %1073 = vmatpush1.msra.mxu0 %v358
    %1074 = vmatprep.subr.mxu0 %v363
    %1075 = vmatpush1.msra.mxu0 %v362
    %1076 = vmatprep.subr.mxu0 %v367
    %1077 = vmatpush1.msra.mxu0 %v366
    %1078 = vmatprep.subr.mxu0 %v371
    %1079 = vmatpush1.msra.mxu0 %v370
    %1080 = vmatprep.subr.mxu0 %v375
    %1081 = vmatpush1.msra.mxu0 %v374
    %1082 = vmatprep.subr.mxu0 %v379
    %1083 = vmatpush1.msra.mxu0 %v378
    %1084 = vmatprep.subr.mxu0 %v383
    %1085 = vmatpush1.msra.mxu0 %v382
    %1086 = vmatprep.subr.mxu0 %v387
    %1087 = vmatpush1.msra.mxu0 %v386
    %1088 = vmatprep.subr.mxu0 %v391
    %1089 = vmatpush1.msra.mxu0 %v390
    %1090 = vmatprep.subr.mxu0 %v395
    %1091 = vmatpush1.msra.mxu0 %v394
    %1092 = vmatprep.subr.mxu0 0.0
    %1093 = vmatpush1.msra.mxu0 0.0
    %1094 = vmatprep.subr.mxu0 0.0
    %1095 = vmatpush1.msra.mxu0 0.0
    %1096 = vmatprep.subr.mxu0 0.0
    %1097 = vmatpush1.msra.mxu0 0.0
    %1098 = vmatprep.subr.mxu0 0.0
    %1099 = vmatpush1.msra.mxu0 0.0
    %1100 = vmatprep.subr.mxu0 0.0
    %1101 = vmatpush1.msra.mxu0 0.0
    %1102 = vmatprep.subr.mxu0 0.0
    %1103 = vmatpush1.msra.mxu0 0.0
    %1104 = vmatprep.subr.mxu0 0.0
    %1105 = vmatpush1.msra.mxu0 0.0
    %1106 = vmatprep.subr.mxu0 0.0
    %1107 = vmatpush1.msra.mxu0 0.0
    %1108 = vmatprep.subr.mxu0 0.0
    %1109 = vmatpush1.msra.mxu0 0.0
    %1110 = vmatprep.subr.mxu0 0.0
    %1111 = vmatpush1.msra.mxu0 0.0
    %1112 = vmatprep.subr.mxu0 0.0
    %1113 = vmatpush1.msra.mxu0 0.0
    %1114 = vmatprep.subr.mxu0 0.0
    %1115 = vmatpush1.msra.mxu0 0.0
    %1116 = vmatprep.subr.mxu0 0.0
    %1117 = vmatpush1.msra.mxu0 0.0
    %1118 = vmatprep.subr.mxu0 0.0
    %1119 = vmatpush1.msra.mxu0 0.0
    %1120 = vmatprep.subr.mxu0 0.0
    %1121 = vmatpush1.msra.mxu0 0.0
    %1122 = vmatprep.subr.mxu0 0.0
    %1123 = vmatpush1.msra.mxu0 0.0
    %1124 = vmatprep.mubr.f32.mxu0 0.0
    %1125 = vmatmul.mubr.f32.gmra.mrb[0].mxu0 %v1059
    %v1126 = vpop.f32.mrb[0].mxu0
    %v1127 = vadd.f32 0.0, %v1126
    %v1128 = vpop.f32.mrb[0].mxu0
    %v1129 = vadd.f32 0.0, %v1128
    %1130 = vdwg.mxu0
    %1131 = vmatprep.subr.mxu0 %v337
    %1132 = vmatpush1.msra.mxu0 %v336
    %1133 = vmatprep.subr.mxu0 %v341
    %1134 = vmatpush1.msra.mxu0 %v340
    %1135 = vmatprep.subr.mxu0 %v345
    %1136 = vmatpush1.msra.mxu0 %v344
    %1137 = vmatprep.subr.mxu0 %v349
    %1138 = vmatpush1.msra.mxu0 %v348
    %1139 = vmatprep.subr.mxu0 %v353
    %1140 = vmatpush1.msra.mxu0 %v352
    %1141 = vmatprep.subr.mxu0 %v357
    %1142 = vmatpush1.msra.mxu0 %v356
    %1143 = vmatprep.subr.mxu0 %v361
    %1144 = vmatpush1.msra.mxu0 %v360
    %1145 = vmatprep.subr.mxu0 %v365
    %1146 = vmatpush1.msra.mxu0 %v364
    %1147 = vmatprep.subr.mxu0 %v369
    %1148 = vmatpush1.msra.mxu0 %v368
    %1149 = vmatprep.subr.mxu0 %v373
    %1150 = vmatpush1.msra.mxu0 %v372
    %1151 = vmatprep.subr.mxu0 %v377
    %1152 = vmatpush1.msra.mxu0 %v376
    %1153 = vmatprep.subr.mxu0 %v381
    %1154 = vmatpush1.msra.mxu0 %v380
    %1155 = vmatprep.subr.mxu0 %v385
    %1156 = vmatpush1.msra.mxu0 %v384
    %1157 = vmatprep.subr.mxu0 %v389
    %1158 = vmatpush1.msra.mxu0 %v388
    %1159 = vmatprep.subr.mxu0 %v393
    %1160 = vmatpush1.msra.mxu0 %v392
    %1161 = vmatprep.subr.mxu0 %v397
    %1162 = vmatpush1.msra.mxu0 %v396
    %1163 = vmatprep.subr.mxu0 0.0
    %1164 = vmatpush1.msra.mxu0 0.0
    %1165 = vmatprep.subr.mxu0 0.0
    %1166 = vmatpush1.msra.mxu0 0.0
    %1167 = vmatprep.subr.mxu0 0.0
    %1168 = vmatpush1.msra.mxu0 0.0
    %1169 = vmatprep.subr.mxu0 0.0
    %1170 = vmatpush1.msra.mxu0 0.0
    %1171 = vmatprep.subr.mxu0 0.0
    %1172 = vmatpush1.msra.mxu0 0.0
    %1173 = vmatprep.subr.mxu0 0.0
    %1174 = vmatpush1.msra.mxu0 0.0
    %1175 = vmatprep.subr.mxu0 0.0
    %1176 = vmatpush1.msra.mxu0 0.0
    %1177 = vmatprep.subr.mxu0 0.0
    %1178 = vmatpush1.msra.mxu0 0.0
    %1179 = vmatprep.subr.mxu0 0.0
    %1180 = vmatpush1.msra.mxu0 0.0
    %1181 = vmatprep.subr.mxu0 0.0
    %1182 = vmatpush1.msra.mxu0 0.0
    %1183 = vmatprep.subr.mxu0 0.0
    %1184 = vmatpush1.msra.mxu0 0.0
    %1185 = vmatprep.subr.mxu0 0.0
    %1186 = vmatpush1.msra.mxu0 0.0
    %1187 = vmatprep.subr.mxu0 0.0
    %1188 = vmatpush1.msra.mxu0 0.0
    %1189 = vmatprep.subr.mxu0 0.0
    %1190 = vmatpush1.msra.mxu0 0.0
    %1191 = vmatprep.subr.mxu0 0.0
    %1192 = vmatpush1.msra.mxu0 0.0
    %1193 = vmatprep.subr.mxu0 0.0
    %1194 = vmatpush1.msra.mxu0 0.0
    %1195 = vmatprep.mubr.f32.mxu0 0.0
    %1196 = vmatmul.mubr.f32.gmra.mrb[0].mxu0 %v1059
    %v1197 = vpop.f32.mrb[0].mxu0
    %v1198 = vadd.f32 0.0, %v1197
    %v1199 = vpop.f32.mrb[0].mxu0
    %v1200 = vadd.f32 0.0, %v1199
    %1201 = vdwg.mxu0
    %v1202 = vadd.f32 %v477, %v1127
    %v1203 = vadd.f32 %v479, %v1129
    %v1204 = vadd.f32 %v638, %v1198
    %v1205 = vadd.f32 %v640, %v1200
    %v1206 = vxor.u32 %v1202, 2147483648
    %v1207 = vmul.f32 %v1206, 1.442695
    %v1208 = vpow.pop %v1207
    %v1209 = vadd.f32 %v1208, 1.0
    %v1210 = vrcp.pop %v1209
    %v1211 = vmul.f32 1.0, %v1210
    %v1212 = vxor.u32 %v1203, 2147483648
    %v1213 = vmul.f32 %v1212, 1.442695
    %v1214 = vpow.pop %v1213
    %v1215 = vadd.f32 %v1214, 1.0
    %v1216 = vrcp.pop %v1215
    %v1217 = vmul.f32 1.0, %v1216
    %v1218 = vxor.u32 %v1204, 2147483648
    %v1219 = vmul.f32 %v1218, 1.442695
    %v1220 = vpow.pop %v1219
    %v1221 = vadd.f32 %v1220, 1.0
    %v1222 = vrcp.pop %v1221
    %v1223 = vmul.f32 1.0, %v1222
    %v1224 = vtanh.pop %v1205
    %v1225 = vmul.f32 %v1217, %v1057
    %v1226 = vmul.f32 %v1211, %v1224
    %v1227 = vadd.f32 %v1225, %v1226
    %v1228 = vtanh.pop %v1227
    %v1229 = vmul.f32 %v1223, %v1228
    %1230 = vmatprep.subr.mxu0 %v335
    %1231 = vmatpush1.msra.mxu0 %v334
    %1232 = vmatprep.subr.mxu0 %v339
    %1233 = vmatpush1.msra.mxu0 %v338
    %1234 = vmatprep.subr.mxu0 %v343
    %1235 = vmatpush1.msra.mxu0 %v342
    %1236 = vmatprep.subr.mxu0 %v347
    %1237 = vmatpush1.msra.mxu0 %v346
    %1238 = vmatprep.subr.mxu0 %v351
    %1239 = vmatpush1.msra.mxu0 %v350
    %1240 = vmatprep.subr.mxu0 %v355
    %1241 = vmatpush1.msra.mxu0 %v354
    %1242 = vmatprep.subr.mxu0 %v359
    %1243 = vmatpush1.msra.mxu0 %v358
    %1244 = vmatprep.subr.mxu0 %v363
    %1245 = vmatpush1.msra.mxu0 %v362
    %1246 = vmatprep.subr.mxu0 %v367
    %1247 = vmatpush1.msra.mxu0 %v366
    %1248 = vmatprep.subr.mxu0 %v371
    %1249 = vmatpush1.msra.mxu0 %v370
    %1250 = vmatprep.subr.mxu0 %v375
    %1251 = vmatpush1.msra.mxu0 %v374
    %1252 = vmatprep.subr.mxu0 %v379
    %1253 = vmatpush1.msra.mxu0 %v378
    %1254 = vmatprep.subr.mxu0 %v383
    %1255 = vmatpush1.msra.mxu0 %v382
    %1256 = vmatprep.subr.mxu0 %v387
    %1257 = vmatpush1.msra.mxu0 %v386
    %1258 = vmatprep.subr.mxu0 %v391
    %1259 = vmatpush1.msra.mxu0 %v390
    %1260 = vmatprep.subr.mxu0 %v395
    %1261 = vmatpush1.msra.mxu0 %v394
    %1262 = vmatprep.subr.mxu0 0.0
    %1263 = vmatpush1.msra.mxu0 0.0
    %1264 = vmatprep.subr.mxu0 0.0
    %1265 = vmatpush1.msra.mxu0 0.0
    %1266 = vmatprep.subr.mxu0 0.0
    %1267 = vmatpush1.msra.mxu0 0.0
    %1268 = vmatprep.subr.mxu0 0.0
    %1269 = vmatpush1.msra.mxu0 0.0
    %1270 = vmatprep.subr.mxu0 0.0
    %1271 = vmatpush1.msra.mxu0 0.0
    %1272 = vmatprep.subr.mxu0 0.0
    %1273 = vmatpush1.msra.mxu0 0.0
    %1274 = vmatprep.subr.mxu0 0.0
    %1275 = vmatpush1.msra.mxu0 0.0
    %1276 = vmatprep.subr.mxu0 0.0
    %1277 = vmatpush1.msra.mxu0 0.0
    %1278 = vmatprep.subr.mxu0 0.0
    %1279 = vmatpush1.msra.mxu0 0.0
    %1280 = vmatprep.subr.mxu0 0.0
    %1281 = vmatpush1.msra.mxu0 0.0
    %1282 = vmatprep.subr.mxu0 0.0
    %1283 = vmatpush1.msra.mxu0 0.0
    %1284 = vmatprep.subr.mxu0 0.0
    %1285 = vmatpush1.msra.mxu0 0.0
    %1286 = vmatprep.subr.mxu0 0.0
    %1287 = vmatpush1.msra.mxu0 0.0
    %1288 = vmatprep.subr.mxu0 0.0
    %1289 = vmatpush1.msra.mxu0 0.0
    %1290 = vmatprep.subr.mxu0 0.0
    %1291 = vmatpush1.msra.mxu0 0.0
    %1292 = vmatprep.subr.mxu0 0.0
    %1293 = vmatpush1.msra.mxu0 0.0
    %1294 = vmatprep.mubr.f32.mxu0 0.0
    %1295 = vmatmul.mubr.f32.gmra.mrb[0].mxu0 %v1229
    %v1296 = vpop.f32.mrb[0].mxu0
    %v1297 = vadd.f32 0.0, %v1296
    %v1298 = vpop.f32.mrb[0].mxu0
    %v1299 = vadd.f32 0.0, %v1298
    %1300 = vdwg.mxu0
    %1301 = vmatprep.subr.mxu0 %v337
    %1302 = vmatpush1.msra.mxu0 %v336
    %1303 = vmatprep.subr.mxu0 %v341
    %1304 = vmatpush1.msra.mxu0 %v340
    %1305 = vmatprep.subr.mxu0 %v345
    %1306 = vmatpush1.msra.mxu0 %v344
    %1307 = vmatprep.subr.mxu0 %v349
    %1308 = vmatpush1.msra.mxu0 %v348
    %1309 = vmatprep.subr.mxu0 %v353
    %1310 = vmatpush1.msra.mxu0 %v352
    %1311 = vmatprep.subr.mxu0 %v357
    %1312 = vmatpush1.msra.mxu0 %v356
    %1313 = vmatprep.subr.mxu0 %v361
    %1314 = vmatpush1.msra.mxu0 %v360
    %1315 = vmatprep.subr.mxu0 %v365
    %1316 = vmatpush1.msra.mxu0 %v364
    %1317 = vmatprep.subr.mxu0 %v369
    %1318 = vmatpush1.msra.mxu0 %v368
    %1319 = vmatprep.subr.mxu0 %v373
    %1320 = vmatpush1.msra.mxu0 %v372
    %1321 = vmatprep.subr.mxu0 %v377
    %1322 = vmatpush1.msra.mxu0 %v376
    %1323 = vmatprep.subr.mxu0 %v381
    %1324 = vmatpush1.msra.mxu0 %v380
    %1325 = vmatprep.subr.mxu0 %v385
    %1326 = vmatpush1.msra.mxu0 %v384
    %1327 = vmatprep.subr.mxu0 %v389
    %1328 = vmatpush1.msra.mxu0 %v388
    %1329 = vmatprep.subr.mxu0 %v393
    %1330 = vmatpush1.msra.mxu0 %v392
    %1331 = vmatprep.subr.mxu0 %v397
    %1332 = vmatpush1.msra.mxu0 %v396
    %1333 = vmatprep.subr.mxu0 0.0
    %1334 = vmatpush1.msra.mxu0 0.0
    %1335 = vmatprep.subr.mxu0 0.0
    %1336 = vmatpush1.msra.mxu0 0.0
    %1337 = vmatprep.subr.mxu0 0.0
    %1338 = vmatpush1.msra.mxu0 0.0
    %1339 = vmatprep.subr.mxu0 0.0
    %1340 = vmatpush1.msra.mxu0 0.0
    %1341 = vmatprep.subr.mxu0 0.0
    %1342 = vmatpush1.msra.mxu0 0.0
    %1343 = vmatprep.subr.mxu0 0.0
    %1344 = vmatpush1.msra.mxu0 0.0
    %1345 = vmatprep.subr.mxu0 0.0
    %1346 = vmatpush1.msra.mxu0 0.0
    %1347 = vmatprep.subr.mxu0 0.0
    %1348 = vmatpush1.msra.mxu0 0.0
    %1349 = vmatprep.subr.mxu0 0.0
    %1350 = vmatpush1.msra.mxu0 0.0
    %1351 = vmatprep.subr.mxu0 0.0
    %1352 = vmatpush1.msra.mxu0 0.0
    %1353 = vmatprep.subr.mxu0 0.0
    %1354 = vmatpush1.msra.mxu0 0.0
    %1355 = vmatprep.subr.mxu0 0.0
    %1356 = vmatpush1.msra.mxu0 0.0
    %1357 = vmatprep.subr.mxu0 0.0
    %1358 = vmatpush1.msra.mxu0 0.0
    %1359 = vmatprep.subr.mxu0 0.0
    %1360 = vmatpush1.msra.mxu0 0.0
    %1361 = vmatprep.subr.mxu0 0.0
    %1362 = vmatpush1.msra.mxu0 0.0
    %1363 = vmatprep.subr.mxu0 0.0
    %1364 = vmatpush1.msra.mxu0 0.0
    %1365 = vmatprep.mubr.f32.mxu0 0.0
    %1366 = vmatmul.mubr.f32.gmra.mrb[0].mxu0 %v1229
    %v1367 = vpop.f32.mrb[0].mxu0
    %v1368 = vadd.f32 0.0, %v1367
    %v1369 = vpop.f32.mrb[0].mxu0
    %v1370 = vadd.f32 0.0, %v1369
    %1371 = vdwg.mxu0
    %v1372 = vadd.f32 %v483, %v1297
    %v1373 = vadd.f32 %v485, %v1299
    %v1374 = vadd.f32 %v644, %v1368
    %v1375 = vadd.f32 %v646, %v1370
    %v1376 = vxor.u32 %v1372, 2147483648
    %v1377 = vmul.f32 %v1376, 1.442695
    %v1378 = vpow.pop %v1377
    %v1379 = vadd.f32 %v1378, 1.0
    %v1380 = vrcp.pop %v1379
    %v1381 = vmul.f32 1.0, %v1380
    %v1382 = vxor.u32 %v1373, 2147483648
    %v1383 = vmul.f32 %v1382, 1.442695
    %v1384 = vpow.pop %v1383
    %v1385 = vadd.f32 %v1384, 1.0
    %v1386 = vrcp.pop %v1385
    %v1387 = vmul.f32 1.0, %v1386
    %v1388 = vxor.u32 %v1374, 2147483648
    %v1389 = vmul.f32 %v1388, 1.442695
    %v1390 = vpow.pop %v1389
    %v1391 = vadd.f32 %v1390, 1.0
    %v1392 = vrcp.pop %v1391
    %v1393 = vmul.f32 1.0, %v1392
    %v1394 = vtanh.pop %v1375
    %v1395 = vmul.f32 %v1387, %v1227
    %v1396 = vmul.f32 %v1381, %v1394
    %v1397 = vadd.f32 %v1395, %v1396
    %v1398 = vtanh.pop %v1397
    %v1399 = vmul.f32 %v1393, %v1398
    %1400 = vmatprep.subr.mxu0 %v335
    %1401 = vmatpush1.msra.mxu0 %v334
    %1402 = vmatprep.subr.mxu0 %v339
    %1403 = vmatpush1.msra.mxu0 %v338
    %1404 = vmatprep.subr.mxu0 %v343
    %1405 = vmatpush1.msra.mxu0 %v342
    %1406 = vmatprep.subr.mxu0 %v347
    %1407 = vmatpush1.msra.mxu0 %v346
    %1408 = vmatprep.subr.mxu0 %v351
    %1409 = vmatpush1.msra.mxu0 %v350
    %1410 = vmatprep.subr.mxu0 %v355
    %1411 = vmatpush1.msra.mxu0 %v354
    %1412 = vmatprep.subr.mxu0 %v359
    %1413 = vmatpush1.msra.mxu0 %v358
    %1414 = vmatprep.subr.mxu0 %v363
    %1415 = vmatpush1.msra.mxu0 %v362
    %1416 = vmatprep.subr.mxu0 %v367
    %1417 = vmatpush1.msra.mxu0 %v366
    %1418 = vmatprep.subr.mxu0 %v371
    %1419 = vmatpush1.msra.mxu0 %v370
    %1420 = vmatprep.subr.mxu0 %v375
    %1421 = vmatpush1.msra.mxu0 %v374
    %1422 = vmatprep.subr.mxu0 %v379
    %1423 = vmatpush1.msra.mxu0 %v378
    %1424 = vmatprep.subr.mxu0 %v383
    %1425 = vmatpush1.msra.mxu0 %v382
    %1426 = vmatprep.subr.mxu0 %v387
    %1427 = vmatpush1.msra.mxu0 %v386
    %1428 = vmatprep.subr.mxu0 %v391
    %1429 = vmatpush1.msra.mxu0 %v390
    %1430 = vmatprep.subr.mxu0 %v395
    %1431 = vmatpush1.msra.mxu0 %v394
    %1432 = vmatprep.subr.mxu0 0.0
    %1433 = vmatpush1.msra.mxu0 0.0
    %1434 = vmatprep.subr.mxu0 0.0
    %1435 = vmatpush1.msra.mxu0 0.0
    %1436 = vmatprep.subr.mxu0 0.0
    %1437 = vmatpush1.msra.mxu0 0.0
    %1438 = vmatprep.subr.mxu0 0.0
    %1439 = vmatpush1.msra.mxu0 0.0
    %1440 = vmatprep.subr.mxu0 0.0
    %1441 = vmatpush1.msra.mxu0 0.0
    %1442 = vmatprep.subr.mxu0 0.0
    %1443 = vmatpush1.msra.mxu0 0.0
    %1444 = vmatprep.subr.mxu0 0.0
    %1445 = vmatpush1.msra.mxu0 0.0
    %1446 = vmatprep.subr.mxu0 0.0
    %1447 = vmatpush1.msra.mxu0 0.0
    %1448 = vmatprep.subr.mxu0 0.0
    %1449 = vmatpush1.msra.mxu0 0.0
    %1450 = vmatprep.subr.mxu0 0.0
    %1451 = vmatpush1.msra.mxu0 0.0
    %1452 = vmatprep.subr.mxu0 0.0
    %1453 = vmatpush1.msra.mxu0 0.0
    %1454 = vmatprep.subr.mxu0 0.0
    %1455 = vmatpush1.msra.mxu0 0.0
    %1456 = vmatprep.subr.mxu0 0.0
    %1457 = vmatpush1.msra.mxu0 0.0
    %1458 = vmatprep.subr.mxu0 0.0
    %1459 = vmatpush1.msra.mxu0 0.0
    %1460 = vmatprep.subr.mxu0 0.0
    %1461 = vmatpush1.msra.mxu0 0.0
    %1462 = vmatprep.subr.mxu0 0.0
    %1463 = vmatpush1.msra.mxu0 0.0
    %1464 = vmatprep.mubr.f32.mxu0 0.0
    %1465 = vmatmul.mubr.f32.gmra.mrb[0].mxu0 %v1399
    %v1466 = vpop.f32.mrb[0].mxu0
    %v1467 = vadd.f32 0.0, %v1466
    %v1468 = vpop.f32.mrb[0].mxu0
    %v1469 = vadd.f32 0.0, %v1468
    %1470 = vdwg.mxu0
    %1471 = vmatprep.subr.mxu0 %v337
    %1472 = vmatpush1.msra.mxu0 %v336
    %1473 = vmatprep.subr.mxu0 %v341
    %1474 = vmatpush1.msra.mxu0 %v340
    %1475 = vmatprep.subr.mxu0 %v345
    %1476 = vmatpush1.msra.mxu0 %v344
    %1477 = vmatprep.subr.mxu0 %v349
    %1478 = vmatpush1.msra.mxu0 %v348
    %1479 = vmatprep.subr.mxu0 %v353
    %1480 = vmatpush1.msra.mxu0 %v352
    %1481 = vmatprep.subr.mxu0 %v357
    %1482 = vmatpush1.msra.mxu0 %v356
    %1483 = vmatprep.subr.mxu0 %v361
    %1484 = vmatpush1.msra.mxu0 %v360
    %1485 = vmatprep.subr.mxu0 %v365
    %1486 = vmatpush1.msra.mxu0 %v364
    %1487 = vmatprep.subr.mxu0 %v369
    %1488 = vmatpush1.msra.mxu0 %v368
    %1489 = vmatprep.subr.mxu0 %v373
    %1490 = vmatpush1.msra.mxu0 %v372
    %1491 = vmatprep.subr.mxu0 %v377
    %1492 = vmatpush1.msra.mxu0 %v376
    %1493 = vmatprep.subr.mxu0 %v381
    %1494 = vmatpush1.msra.mxu0 %v380
    %1495 = vmatprep.subr.mxu0 %v385
    %1496 = vmatpush1.msra.mxu0 %v384
    %1497 = vmatprep.subr.mxu0 %v389
    %1498 = vmatpush1.msra.mxu0 %v388
    %1499 = vmatprep.subr.mxu0 %v393
    %1500 = vmatpush1.msra.mxu0 %v392
    %1501 = vmatprep.subr.mxu0 %v397
    %1502 = vmatpush1.msra.mxu0 %v396
    %1503 = vmatprep.subr.mxu0 0.0
    %1504 = vmatpush1.msra.mxu0 0.0
    %1505 = vmatprep.subr.mxu0 0.0
    %1506 = vmatpush1.msra.mxu0 0.0
    %1507 = vmatprep.subr.mxu0 0.0
    %1508 = vmatpush1.msra.mxu0 0.0
    %1509 = vmatprep.subr.mxu0 0.0
    %1510 = vmatpush1.msra.mxu0 0.0
    %1511 = vmatprep.subr.mxu0 0.0
    %1512 = vmatpush1.msra.mxu0 0.0
    %1513 = vmatprep.subr.mxu0 0.0
    %1514 = vmatpush1.msra.mxu0 0.0
    %1515 = vmatprep.subr.mxu0 0.0
    %1516 = vmatpush1.msra.mxu0 0.0
    %1517 = vmatprep.subr.mxu0 0.0
    %1518 = vmatpush1.msra.mxu0 0.0
    %1519 = vmatprep.subr.mxu0 0.0
    %1520 = vmatpush1.msra.mxu0 0.0
    %1521 = vmatprep.subr.mxu0 0.0
    %1522 = vmatpush1.msra.mxu0 0.0
    %1523 = vmatprep.subr.mxu0 0.0
    %1524 = vmatpush1.msra.mxu0 0.0
    %1525 = vmatprep.subr.mxu0 0.0
    %1526 = vmatpush1.msra.mxu0 0.0
    %1527 = vmatprep.subr.mxu0 0.0
    %1528 = vmatpush1.msra.mxu0 0.0
    %1529 = vmatprep.subr.mxu0 0.0
    %1530 = vmatpush1.msra.mxu0 0.0
    %1531 = vmatprep.subr.mxu0 0.0
    %1532 = vmatpush1.msra.mxu0 0.0
    %1533 = vmatprep.subr.mxu0 0.0
    %1534 = vmatpush1.msra.mxu0 0.0
    %1535 = vmatprep.mubr.f32.mxu0 0.0
    %1536 = vmatmul.mubr.f32.gmra.mrb[0].mxu0 %v1399
    %v1537 = vpop.f32.mrb[0].mxu0
    %v1538 = vadd.f32 0.0, %v1537
    %v1539 = vpop.f32.mrb[0].mxu0
    %v1540 = vadd.f32 0.0, %v1539
    %1541 = vdwg.mxu0
    %v1542 = vadd.f32 %v489, %v1467
    %v1543 = vadd.f32 %v491, %v1469
    %v1544 = vadd.f32 %v650, %v1538
    %v1545 = vadd.f32 %v652, %v1540
    %v1546 = vxor.u32 %v1542, 2147483648
    %v1547 = vmul.f32 %v1546, 1.442695
    %v1548 = vpow.pop %v1547
    %v1549 = vadd.f32 %v1548, 1.0
    %v1550 = vrcp.pop %v1549
    %v1551 = vmul.f32 1.0, %v1550
    %v1552 = vxor.u32 %v1543, 2147483648
    %v1553 = vmul.f32 %v1552, 1.442695
    %v1554 = vpow.pop %v1553
    %v1555 = vadd.f32 %v1554, 1.0
    %v1556 = vrcp.pop %v1555
    %v1557 = vmul.f32 1.0, %v1556
    %v1558 = vxor.u32 %v1544, 2147483648
    %v1559 = vmul.f32 %v1558, 1.442695
    %v1560 = vpow.pop %v1559
    %v1561 = vadd.f32 %v1560, 1.0
    %v1562 = vrcp.pop %v1561
    %v1563 = vmul.f32 1.0, %v1562
    %v1564 = vtanh.pop %v1545
    %v1565 = vmul.f32 %v1557, %v1397
    %v1566 = vmul.f32 %v1551, %v1564
    %v1567 = vadd.f32 %v1565, %v1566
    %v1568 = vtanh.pop %v1567
    %v1569 = vmul.f32 %v1563, %v1568
    %1570 = vmatprep.subr.mxu0 %v335
    %1571 = vmatpush1.msra.mxu0 %v334
    %1572 = vmatprep.subr.mxu0 %v339
    %1573 = vmatpush1.msra.mxu0 %v338
    %1574 = vmatprep.subr.mxu0 %v343
    %1575 = vmatpush1.msra.mxu0 %v342
    %1576 = vmatprep.subr.mxu0 %v347
    %1577 = vmatpush1.msra.mxu0 %v346
    %1578 = vmatprep.subr.mxu0 %v351
    %1579 = vmatpush1.msra.mxu0 %v350
    %1580 = vmatprep.subr.mxu0 %v355
    %1581 = vmatpush1.msra.mxu0 %v354
    %1582 = vmatprep.subr.mxu0 %v359
    %1583 = vmatpush1.msra.mxu0 %v358
    %1584 = vmatprep.subr.mxu0 %v363
    %1585 = vmatpush1.msra.mxu0 %v362
    %1586 = vmatprep.subr.mxu0 %v367
    %1587 = vmatpush1.msra.mxu0 %v366
    %1588 = vmatprep.subr.mxu0 %v371
    %1589 = vmatpush1.msra.mxu0 %v370
    %1590 = vmatprep.subr.mxu0 %v375
    %1591 = vmatpush1.msra.mxu0 %v374
    %1592 = vmatprep.subr.mxu0 %v379
    %1593 = vmatpush1.msra.mxu0 %v378
    %1594 = vmatprep.subr.mxu0 %v383
    %1595 = vmatpush1.msra.mxu0 %v382
    %1596 = vmatprep.subr.mxu0 %v387
    %1597 = vmatpush1.msra.mxu0 %v386
    %1598 = vmatprep.subr.mxu0 %v391
    %1599 = vmatpush1.msra.mxu0 %v390
    %1600 = vmatprep.subr.mxu0 %v395
    %1601 = vmatpush1.msra.mxu0 %v394
    %1602 = vmatprep.subr.mxu0 0.0
    %1603 = vmatpush1.msra.mxu0 0.0
    %1604 = vmatprep.subr.mxu0 0.0
    %1605 = vmatpush1.msra.mxu0 0.0
    %1606 = vmatprep.subr.mxu0 0.0
    %1607 = vmatpush1.msra.mxu0 0.0
    %1608 = vmatprep.subr.mxu0 0.0
    %1609 = vmatpush1.msra.mxu0 0.0
    %1610 = vmatprep.subr.mxu0 0.0
    %1611 = vmatpush1.msra.mxu0 0.0
    %1612 = vmatprep.subr.mxu0 0.0
    %1613 = vmatpush1.msra.mxu0 0.0
    %1614 = vmatprep.subr.mxu0 0.0
    %1615 = vmatpush1.msra.mxu0 0.0
    %1616 = vmatprep.subr.mxu0 0.0
    %1617 = vmatpush1.msra.mxu0 0.0
    %1618 = vmatprep.subr.mxu0 0.0
    %1619 = vmatpush1.msra.mxu0 0.0
    %1620 = vmatprep.subr.mxu0 0.0
    %1621 = vmatpush1.msra.mxu0 0.0
    %1622 = vmatprep.subr.mxu0 0.0
    %1623 = vmatpush1.msra.mxu0 0.0
    %1624 = vmatprep.subr.mxu0 0.0
    %1625 = vmatpush1.msra.mxu0 0.0
    %1626 = vmatprep.subr.mxu0 0.0
    %1627 = vmatpush1.msra.mxu0 0.0
    %1628 = vmatprep.subr.mxu0 0.0
    %1629 = vmatpush1.msra.mxu0 0.0
    %1630 = vmatprep.subr.mxu0 0.0
    %1631 = vmatpush1.msra.mxu0 0.0
    %1632 = vmatprep.subr.mxu0 0.0
    %1633 = vmatpush1.msra.mxu0 0.0
    %1634 = vmatprep.mubr.f32.mxu0 0.0
    %1635 = vmatmul.mubr.f32.gmra.mrb[0].mxu0 %v1569
    %v1636 = vpop.f32.mrb[0].mxu0
    %v1637 = vadd.f32 0.0, %v1636
    %v1638 = vpop.f32.mrb[0].mxu0
    %v1639 = vadd.f32 0.0, %v1638
    %1640 = vdwg.mxu0
    %1641 = vmatprep.subr.mxu0 %v337
    %1642 = vmatpush1.msra.mxu0 %v336
    %1643 = vmatprep.subr.mxu0 %v341
    %1644 = vmatpush1.msra.mxu0 %v340
    %1645 = vmatprep.subr.mxu0 %v345
    %1646 = vmatpush1.msra.mxu0 %v344
    %1647 = vmatprep.subr.mxu0 %v349
    %1648 = vmatpush1.msra.mxu0 %v348
    %1649 = vmatprep.subr.mxu0 %v353
    %1650 = vmatpush1.msra.mxu0 %v352
    %1651 = vmatprep.subr.mxu0 %v357
    %1652 = vmatpush1.msra.mxu0 %v356
    %1653 = vmatprep.subr.mxu0 %v361
    %1654 = vmatpush1.msra.mxu0 %v360
    %1655 = vmatprep.subr.mxu0 %v365
    %1656 = vmatpush1.msra.mxu0 %v364
    %1657 = vmatprep.subr.mxu0 %v369
    %1658 = vmatpush1.msra.mxu0 %v368
    %1659 = vmatprep.subr.mxu0 %v373
    %1660 = vmatpush1.msra.mxu0 %v372
    %1661 = vmatprep.subr.mxu0 %v377
    %1662 = vmatpush1.msra.mxu0 %v376
    %1663 = vmatprep.subr.mxu0 %v381
    %1664 = vmatpush1.msra.mxu0 %v380
    %1665 = vmatprep.subr.mxu0 %v385
    %1666 = vmatpush1.msra.mxu0 %v384
    %1667 = vmatprep.subr.mxu0 %v389
    %1668 = vmatpush1.msra.mxu0 %v388
    %1669 = vmatprep.subr.mxu0 %v393
    %1670 = vmatpush1.msra.mxu0 %v392
    %1671 = vmatprep.subr.mxu0 %v397
    %1672 = vmatpush1.msra.mxu0 %v396
    %1673 = vmatprep.subr.mxu0 0.0
    %1674 = vmatpush1.msra.mxu0 0.0
    %1675 = vmatprep.subr.mxu0 0.0
    %1676 = vmatpush1.msra.mxu0 0.0
    %1677 = vmatprep.subr.mxu0 0.0
    %1678 = vmatpush1.msra.mxu0 0.0
    %1679 = vmatprep.subr.mxu0 0.0
    %1680 = vmatpush1.msra.mxu0 0.0
    %1681 = vmatprep.subr.mxu0 0.0
    %1682 = vmatpush1.msra.mxu0 0.0
    %1683 = vmatprep.subr.mxu0 0.0
    %1684 = vmatpush1.msra.mxu0 0.0
    %1685 = vmatprep.subr.mxu0 0.0
    %1686 = vmatpush1.msra.mxu0 0.0
    %1687 = vmatprep.subr.mxu0 0.0
    %1688 = vmatpush1.msra.mxu0 0.0
    %1689 = vmatprep.subr.mxu0 0.0
    %1690 = vmatpush1.msra.mxu0 0.0
    %1691 = vmatprep.subr.mxu0 0.0
    %1692 = vmatpush1.msra.mxu0 0.0
    %1693 = vmatprep.subr.mxu0 0.0
    %1694 = vmatpush1.msra.mxu0 0.0
    %1695 = vmatprep.subr.mxu0 0.0
    %1696 = vmatpush1.msra.mxu0 0.0
    %1697 = vmatprep.subr.mxu0 0.0
    %1698 = vmatpush1.msra.mxu0 0.0
    %1699 = vmatprep.subr.mxu0 0.0
    %1700 = vmatpush1.msra.mxu0 0.0
    %1701 = vmatprep.subr.mxu0 0.0
    %1702 = vmatpush1.msra.mxu0 0.0
    %1703 = vmatprep.subr.mxu0 0.0
    %1704 = vmatpush1.msra.mxu0 0.0
    %1705 = vmatprep.mubr.f32.mxu0 0.0
    %1706 = vmatmul.mubr.f32.gmra.mrb[0].mxu0 %v1569
    %v1707 = vpop.f32.mrb[0].mxu0
    %v1708 = vadd.f32 0.0, %v1707
    %v1709 = vpop.f32.mrb[0].mxu0
    %v1710 = vadd.f32 0.0, %v1709
    %1711 = vdwg.mxu0
    %v1712 = vadd.f32 %v495, %v1637
    %v1713 = vadd.f32 %v497, %v1639
    %v1714 = vadd.f32 %v656, %v1708
    %v1715 = vadd.f32 %v658, %v1710
    %v1716 = vxor.u32 %v1712, 2147483648
    %v1717 = vmul.f32 %v1716, 1.442695
    %v1718 = vpow.pop %v1717
    %v1719 = vadd.f32 %v1718, 1.0
    %v1720 = vrcp.pop %v1719
    %v1721 = vmul.f32 1.0, %v1720
    %v1722 = vxor.u32 %v1713, 2147483648
    %v1723 = vmul.f32 %v1722, 1.442695
    %v1724 = vpow.pop %v1723
    %v1725 = vadd.f32 %v1724, 1.0
    %v1726 = vrcp.pop %v1725
    %v1727 = vmul.f32 1.0, %v1726
    %v1728 = vxor.u32 %v1714, 2147483648
    %v1729 = vmul.f32 %v1728, 1.442695
    %v1730 = vpow.pop %v1729
    %v1731 = vadd.f32 %v1730, 1.0
    %v1732 = vrcp.pop %v1731
    %v1733 = vmul.f32 1.0, %v1732
    %v1734 = vtanh.pop %v1715
    %v1735 = vmul.f32 %v1727, %v1567
    %v1736 = vmul.f32 %v1721, %v1734
    %v1737 = vadd.f32 %v1735, %v1736
    %v1738 = vtanh.pop %v1737
    %v1739 = vmul.f32 %v1733, %v1738
    %1740 = vmatprep.subr.mxu0 %v335
    %1741 = vmatpush1.msra.mxu0 %v334
    %1742 = vmatprep.subr.mxu0 %v339
    %1743 = vmatpush1.msra.mxu0 %v338
    %1744 = vmatprep.subr.mxu0 %v343
    %1745 = vmatpush1.msra.mxu0 %v342
    %1746 = vmatprep.subr.mxu0 %v347
    %1747 = vmatpush1.msra.mxu0 %v346
    %1748 = vmatprep.subr.mxu0 %v351
    %1749 = vmatpush1.msra.mxu0 %v350
    %1750 = vmatprep.subr.mxu0 %v355
    %1751 = vmatpush1.msra.mxu0 %v354
    %1752 = vmatprep.subr.mxu0 %v359
    %1753 = vmatpush1.msra.mxu0 %v358
    %1754 = vmatprep.subr.mxu0 %v363
    %1755 = vmatpush1.msra.mxu0 %v362
    %1756 = vmatprep.subr.mxu0 %v367
    %1757 = vmatpush1.msra.mxu0 %v366
    %1758 = vmatprep.subr.mxu0 %v371
    %1759 = vmatpush1.msra.mxu0 %v370
    %1760 = vmatprep.subr.mxu0 %v375
    %1761 = vmatpush1.msra.mxu0 %v374
    %1762 = vmatprep.subr.mxu0 %v379
    %1763 = vmatpush1.msra.mxu0 %v378
    %1764 = vmatprep.subr.mxu0 %v383
    %1765 = vmatpush1.msra.mxu0 %v382
    %1766 = vmatprep.subr.mxu0 %v387
    %1767 = vmatpush1.msra.mxu0 %v386
    %1768 = vmatprep.subr.mxu0 %v391
    %1769 = vmatpush1.msra.mxu0 %v390
    %1770 = vmatprep.subr.mxu0 %v395
    %1771 = vmatpush1.msra.mxu0 %v394
    %1772 = vmatprep.subr.mxu0 0.0
    %1773 = vmatpush1.msra.mxu0 0.0
    %1774 = vmatprep.subr.mxu0 0.0
    %1775 = vmatpush1.msra.mxu0 0.0
    %1776 = vmatprep.subr.mxu0 0.0
    %1777 = vmatpush1.msra.mxu0 0.0
    %1778 = vmatprep.subr.mxu0 0.0
    %1779 = vmatpush1.msra.mxu0 0.0
    %1780 = vmatprep.subr.mxu0 0.0
    %1781 = vmatpush1.msra.mxu0 0.0
    %1782 = vmatprep.subr.mxu0 0.0
    %1783 = vmatpush1.msra.mxu0 0.0
    %1784 = vmatprep.subr.mxu0 0.0
    %1785 = vmatpush1.msra.mxu0 0.0
    %1786 = vmatprep.subr.mxu0 0.0
    %1787 = vmatpush1.msra.mxu0 0.0
    %1788 = vmatprep.subr.mxu0 0.0
    %1789 = vmatpush1.msra.mxu0 0.0
    %1790 = vmatprep.subr.mxu0 0.0
    %1791 = vmatpush1.msra.mxu0 0.0
    %1792 = vmatprep.subr.mxu0 0.0
    %1793 = vmatpush1.msra.mxu0 0.0
    %1794 = vmatprep.subr.mxu0 0.0
    %1795 = vmatpush1.msra.mxu0 0.0
    %1796 = vmatprep.subr.mxu0 0.0
    %1797 = vmatpush1.msra.mxu0 0.0
    %1798 = vmatprep.subr.mxu0 0.0
    %1799 = vmatpush1.msra.mxu0 0.0
    %1800 = vmatprep.subr.mxu0 0.0
    %1801 = vmatpush1.msra.mxu0 0.0
    %1802 = vmatprep.subr.mxu0 0.0
    %1803 = vmatpush1.msra.mxu0 0.0
    %1804 = vmatprep.mubr.f32.mxu0 0.0
    %1805 = vmatmul.mubr.f32.gmra.mrb[0].mxu0 %v1739
    %v1806 = vpop.f32.mrb[0].mxu0
    %v1807 = vadd.f32 0.0, %v1806
    %v1808 = vpop.f32.mrb[0].mxu0
    %v1809 = vadd.f32 0.0, %v1808
    %1810 = vdwg.mxu0
    %1811 = vmatprep.subr.mxu0 %v337
    %1812 = vmatpush1.msra.mxu0 %v336
    %1813 = vmatprep.subr.mxu0 %v341
    %1814 = vmatpush1.msra.mxu0 %v340
    %1815 = vmatprep.subr.mxu0 %v345
    %1816 = vmatpush1.msra.mxu0 %v344
    %1817 = vmatprep.subr.mxu0 %v349
    %1818 = vmatpush1.msra.mxu0 %v348
    %1819 = vmatprep.subr.mxu0 %v353
    %1820 = vmatpush1.msra.mxu0 %v352
    %1821 = vmatprep.subr.mxu0 %v357
    %1822 = vmatpush1.msra.mxu0 %v356
    %1823 = vmatprep.subr.mxu0 %v361
    %1824 = vmatpush1.msra.mxu0 %v360
    %1825 = vmatprep.subr.mxu0 %v365
    %1826 = vmatpush1.msra.mxu0 %v364
    %1827 = vmatprep.subr.mxu0 %v369
    %1828 = vmatpush1.msra.mxu0 %v368
    %1829 = vmatprep.subr.mxu0 %v373
    %1830 = vmatpush1.msra.mxu0 %v372
    %1831 = vmatprep.subr.mxu0 %v377
    %1832 = vmatpush1.msra.mxu0 %v376
    %1833 = vmatprep.subr.mxu0 %v381
    %1834 = vmatpush1.msra.mxu0 %v380
    %1835 = vmatprep.subr.mxu0 %v385
    %1836 = vmatpush1.msra.mxu0 %v384
    %1837 = vmatprep.subr.mxu0 %v389
    %1838 = vmatpush1.msra.mxu0 %v388
    %1839 = vmatprep.subr.mxu0 %v393
    %1840 = vmatpush1.msra.mxu0 %v392
    %1841 = vmatprep.subr.mxu0 %v397
    %1842 = vmatpush1.msra.mxu0 %v396
    %1843 = vmatprep.subr.mxu0 0.0
    %1844 = vmatpush1.msra.mxu0 0.0
    %1845 = vmatprep.subr.mxu0 0.0
    %1846 = vmatpush1.msra.mxu0 0.0
    %1847 = vmatprep.subr.mxu0 0.0
    %1848 = vmatpush1.msra.mxu0 0.0
    %1849 = vmatprep.subr.mxu0 0.0
    %1850 = vmatpush1.msra.mxu0 0.0
    %1851 = vmatprep.subr.mxu0 0.0
    %1852 = vmatpush1.msra.mxu0 0.0
    %1853 = vmatprep.subr.mxu0 0.0
    %1854 = vmatpush1.msra.mxu0 0.0
    %1855 = vmatprep.subr.mxu0 0.0
    %1856 = vmatpush1.msra.mxu0 0.0
    %1857 = vmatprep.subr.mxu0 0.0
    %1858 = vmatpush1.msra.mxu0 0.0
    %1859 = vmatprep.subr.mxu0 0.0
    %1860 = vmatpush1.msra.mxu0 0.0
    %1861 = vmatprep.subr.mxu0 0.0
    %1862 = vmatpush1.msra.mxu0 0.0
    %1863 = vmatprep.subr.mxu0 0.0
    %1864 = vmatpush1.msra.mxu0 0.0
    %1865 = vmatprep.subr.mxu0 0.0
    %1866 = vmatpush1.msra.mxu0 0.0
    %1867 = vmatprep.subr.mxu0 0.0
    %1868 = vmatpush1.msra.mxu0 0.0
    %1869 = vmatprep.subr.mxu0 0.0
    %1870 = vmatpush1.msra.mxu0 0.0
    %1871 = vmatprep.subr.mxu0 0.0
    %1872 = vmatpush1.msra.mxu0 0.0
    %1873 = vmatprep.subr.mxu0 0.0
    %1874 = vmatpush1.msra.mxu0 0.0
    %1875 = vmatprep.mubr.f32.mxu0 0.0
    %1876 = vmatmul.mubr.f32.gmra.mrb[0].mxu0 %v1739
    %v1877 = vpop.f32.mrb[0].mxu0
    %v1878 = vadd.f32 0.0, %v1877
    %v1879 = vpop.f32.mrb[0].mxu0
    %v1880 = vadd.f32 0.0, %v1879
    %1881 = vdwg.mxu0
    %v1882 = vadd.f32 %v501, %v1807
    %v1883 = vadd.f32 %v503, %v1809
    %v1884 = vadd.f32 %v662, %v1878
    %v1885 = vadd.f32 %v664, %v1880
    %v1886 = vxor.u32 %v1882, 2147483648
    %v1887 = vmul.f32 %v1886, 1.442695
    %v1888 = vpow.pop %v1887
    %v1889 = vadd.f32 %v1888, 1.0
    %v1890 = vrcp.pop %v1889
    %v1891 = vmul.f32 1.0, %v1890
    %v1892 = vxor.u32 %v1883, 2147483648
    %v1893 = vmul.f32 %v1892, 1.442695
    %v1894 = vpow.pop %v1893
    %v1895 = vadd.f32 %v1894, 1.0
    %v1896 = vrcp.pop %v1895
    %v1897 = vmul.f32 1.0, %v1896
    %v1898 = vxor.u32 %v1884, 2147483648
    %v1899 = vmul.f32 %v1898, 1.442695
    %v1900 = vpow.pop %v1899
    %v1901 = vadd.f32 %v1900, 1.0
    %v1902 = vrcp.pop %v1901
    %v1903 = vmul.f32 1.0, %v1902
    %v1904 = vtanh.pop %v1885
    %v1905 = vmul.f32 %v1897, %v1737
    %v1906 = vmul.f32 %v1891, %v1904
    %v1907 = vadd.f32 %v1905, %v1906
    %v1908 = vtanh.pop %v1907
    %v1909 = vmul.f32 %v1903, %v1908
    %1910 = vmatprep.subr.mxu0 %v335
    %1911 = vmatpush1.msra.mxu0 %v334
    %1912 = vmatprep.subr.mxu0 %v339
    %1913 = vmatpush1.msra.mxu0 %v338
    %1914 = vmatprep.subr.mxu0 %v343
    %1915 = vmatpush1.msra.mxu0 %v342
    %1916 = vmatprep.subr.mxu0 %v347
    %1917 = vmatpush1.msra.mxu0 %v346
    %1918 = vmatprep.subr.mxu0 %v351
    %1919 = vmatpush1.msra.mxu0 %v350
    %1920 = vmatprep.subr.mxu0 %v355
    %1921 = vmatpush1.msra.mxu0 %v354
    %1922 = vmatprep.subr.mxu0 %v359
    %1923 = vmatpush1.msra.mxu0 %v358
    %1924 = vmatprep.subr.mxu0 %v363
    %1925 = vmatpush1.msra.mxu0 %v362
    %1926 = vmatprep.subr.mxu0 %v367
    %1927 = vmatpush1.msra.mxu0 %v366
    %1928 = vmatprep.subr.mxu0 %v371
    %1929 = vmatpush1.msra.mxu0 %v370
    %1930 = vmatprep.subr.mxu0 %v375
    %1931 = vmatpush1.msra.mxu0 %v374
    %1932 = vmatprep.subr.mxu0 %v379
    %1933 = vmatpush1.msra.mxu0 %v378
    %1934 = vmatprep.subr.mxu0 %v383
    %1935 = vmatpush1.msra.mxu0 %v382
    %1936 = vmatprep.subr.mxu0 %v387
    %1937 = vmatpush1.msra.mxu0 %v386
    %1938 = vmatprep.subr.mxu0 %v391
    %1939 = vmatpush1.msra.mxu0 %v390
    %1940 = vmatprep.subr.mxu0 %v395
    %1941 = vmatpush1.msra.mxu0 %v394
    %1942 = vmatprep.subr.mxu0 0.0
    %1943 = vmatpush1.msra.mxu0 0.0
    %1944 = vmatprep.subr.mxu0 0.0
    %1945 = vmatpush1.msra.mxu0 0.0
    %1946 = vmatprep.subr.mxu0 0.0
    %1947 = vmatpush1.msra.mxu0 0.0
    %1948 = vmatprep.subr.mxu0 0.0
    %1949 = vmatpush1.msra.mxu0 0.0
    %1950 = vmatprep.subr.mxu0 0.0
    %1951 = vmatpush1.msra.mxu0 0.0
    %1952 = vmatprep.subr.mxu0 0.0
    %1953 = vmatpush1.msra.mxu0 0.0
    %1954 = vmatprep.subr.mxu0 0.0
    %1955 = vmatpush1.msra.mxu0 0.0
    %1956 = vmatprep.subr.mxu0 0.0
    %1957 = vmatpush1.msra.mxu0 0.0
    %1958 = vmatprep.subr.mxu0 0.0
    %1959 = vmatpush1.msra.mxu0 0.0
    %1960 = vmatprep.subr.mxu0 0.0
    %1961 = vmatpush1.msra.mxu0 0.0
    %1962 = vmatprep.subr.mxu0 0.0
    %1963 = vmatpush1.msra.mxu0 0.0
    %1964 = vmatprep.subr.mxu0 0.0
    %1965 = vmatpush1.msra.mxu0 0.0
    %1966 = vmatprep.subr.mxu0 0.0
    %1967 = vmatpush1.msra.mxu0 0.0
    %1968 = vmatprep.subr.mxu0 0.0
    %1969 = vmatpush1.msra.mxu0 0.0
    %1970 = vmatprep.subr.mxu0 0.0
    %1971 = vmatpush1.msra.mxu0 0.0
    %1972 = vmatprep.subr.mxu0 0.0
    %1973 = vmatpush1.msra.mxu0 0.0
    %1974 = vmatprep.mubr.f32.mxu0 0.0
    %1975 = vmatmul.mubr.f32.gmra.mrb[0].mxu0 %v1909
    %v1976 = vpop.f32.mrb[0].mxu0
    %v1977 = vadd.f32 0.0, %v1976
    %v1978 = vpop.f32.mrb[0].mxu0
    %v1979 = vadd.f32 0.0, %v1978
    %1980 = vdwg.mxu0
    %1981 = vmatprep.subr.mxu0 %v337
    %1982 = vmatpush1.msra.mxu0 %v336
    %1983 = vmatprep.subr.mxu0 %v341
    %1984 = vmatpush1.msra.mxu0 %v340
    %1985 = vmatprep.subr.mxu0 %v345
    %1986 = vmatpush1.msra.mxu0 %v344
    %1987 = vmatprep.subr.mxu0 %v349
    %1988 = vmatpush1.msra.mxu0 %v348
    %1989 = vmatprep.subr.mxu0 %v353
    %1990 = vmatpush1.msra.mxu0 %v352
    %1991 = vmatprep.subr.mxu0 %v357
    %1992 = vmatpush1.msra.mxu0 %v356
    %1993 = vmatprep.subr.mxu0 %v361
    %1994 = vmatpush1.msra.mxu0 %v360
    %1995 = vmatprep.subr.mxu0 %v365
    %1996 = vmatpush1.msra.mxu0 %v364
    %1997 = vmatprep.subr.mxu0 %v369
    %1998 = vmatpush1.msra.mxu0 %v368
    %1999 = vmatprep.subr.mxu0 %v373
    %2000 = vmatpush1.msra.mxu0 %v372
    %2001 = vmatprep.subr.mxu0 %v377
    %2002 = vmatpush1.msra.mxu0 %v376
    %2003 = vmatprep.subr.mxu0 %v381
    %2004 = vmatpush1.msra.mxu0 %v380
    %2005 = vmatprep.subr.mxu0 %v385
    %2006 = vmatpush1.msra.mxu0 %v384
    %2007 = vmatprep.subr.mxu0 %v389
    %2008 = vmatpush1.msra.mxu0 %v388
    %2009 = vmatprep.subr.mxu0 %v393
    %2010 = vmatpush1.msra.mxu0 %v392
    %2011 = vmatprep.subr.mxu0 %v397
    %2012 = vmatpush1.msra.mxu0 %v396
    %2013 = vmatprep.subr.mxu0 0.0
    %2014 = vmatpush1.msra.mxu0 0.0
    %2015 = vmatprep.subr.mxu0 0.0
    %2016 = vmatpush1.msra.mxu0 0.0
    %2017 = vmatprep.subr.mxu0 0.0
    %2018 = vmatpush1.msra.mxu0 0.0
    %2019 = vmatprep.subr.mxu0 0.0
    %2020 = vmatpush1.msra.mxu0 0.0
    %2021 = vmatprep.subr.mxu0 0.0
    %2022 = vmatpush1.msra.mxu0 0.0
    %2023 = vmatprep.subr.mxu0 0.0
    %2024 = vmatpush1.msra.mxu0 0.0
    %2025 = vmatprep.subr.mxu0 0.0
    %2026 = vmatpush1.msra.mxu0 0.0
    %2027 = vmatprep.subr.mxu0 0.0
    %2028 = vmatpush1.msra.mxu0 0.0
    %2029 = vmatprep.subr.mxu0 0.0
    %2030 = vmatpush1.msra.mxu0 0.0
    %2031 = vmatprep.subr.mxu0 0.0
    %2032 = vmatpush1.msra.mxu0 0.0
    %2033 = vmatprep.subr.mxu0 0.0
    %2034 = vmatpush1.msra.mxu0 0.0
    %2035 = vmatprep.subr.mxu0 0.0
    %2036 = vmatpush1.msra.mxu0 0.0
    %2037 = vmatprep.subr.mxu0 0.0
    %2038 = vmatpush1.msra.mxu0 0.0
    %2039 = vmatprep.subr.mxu0 0.0
    %2040 = vmatpush1.msra.mxu0 0.0
    %2041 = vmatprep.subr.mxu0 0.0
    %2042 = vmatpush1.msra.mxu0 0.0
    %2043 = vmatprep.subr.mxu0 0.0
    %2044 = vmatpush1.msra.mxu0 0.0
    %2045 = vmatprep.mubr.f32.mxu0 0.0
    %2046 = vmatmul.mubr.f32.gmra.mrb[0].mxu0 %v1909
    %v2047 = vpop.f32.mrb[0].mxu0
    %v2048 = vadd.f32 0.0, %v2047
    %v2049 = vpop.f32.mrb[0].mxu0
    %v2050 = vadd.f32 0.0, %v2049
    %2051 = vdwg.mxu0
    %v2052 = vadd.f32 %v507, %v1977
    %v2053 = vadd.f32 %v509, %v1979
    %v2054 = vadd.f32 %v668, %v2048
    %v2055 = vadd.f32 %v670, %v2050
    %v2056 = vxor.u32 %v2052, 2147483648
    %v2057 = vmul.f32 %v2056, 1.442695
    %v2058 = vpow.pop %v2057
    %v2059 = vadd.f32 %v2058, 1.0
    %v2060 = vrcp.pop %v2059
    %v2061 = vmul.f32 1.0, %v2060
    %v2062 = vxor.u32 %v2053, 2147483648
    %v2063 = vmul.f32 %v2062, 1.442695
    %v2064 = vpow.pop %v2063
    %v2065 = vadd.f32 %v2064, 1.0
    %v2066 = vrcp.pop %v2065
    %v2067 = vmul.f32 1.0, %v2066
    %v2068 = vxor.u32 %v2054, 2147483648
    %v2069 = vmul.f32 %v2068, 1.442695
    %v2070 = vpow.pop %v2069
    %v2071 = vadd.f32 %v2070, 1.0
    %v2072 = vrcp.pop %v2071
    %v2073 = vmul.f32 1.0, %v2072
    %v2074 = vtanh.pop %v2055
    %v2075 = vmul.f32 %v2067, %v1907
    %v2076 = vmul.f32 %v2061, %v2074
    %v2077 = vadd.f32 %v2075, %v2076
    %v2078 = vtanh.pop %v2077
    %v2079 = vmul.f32 %v2073, %v2078
    %2080 = vmatprep.subr.mxu0 %v335
    %2081 = vmatpush1.msra.mxu0 %v334
    %2082 = vmatprep.subr.mxu0 %v339
    %2083 = vmatpush1.msra.mxu0 %v338
    %2084 = vmatprep.subr.mxu0 %v343
    %2085 = vmatpush1.msra.mxu0 %v342
    %2086 = vmatprep.subr.mxu0 %v347
    %2087 = vmatpush1.msra.mxu0 %v346
    %2088 = vmatprep.subr.mxu0 %v351
    %2089 = vmatpush1.msra.mxu0 %v350
    %2090 = vmatprep.subr.mxu0 %v355
    %2091 = vmatpush1.msra.mxu0 %v354
    %2092 = vmatprep.subr.mxu0 %v359
    %2093 = vmatpush1.msra.mxu0 %v358
    %2094 = vmatprep.subr.mxu0 %v363
    %2095 = vmatpush1.msra.mxu0 %v362
    %2096 = vmatprep.subr.mxu0 %v367
    %2097 = vmatpush1.msra.mxu0 %v366
    %2098 = vmatprep.subr.mxu0 %v371
    %2099 = vmatpush1.msra.mxu0 %v370
    %2100 = vmatprep.subr.mxu0 %v375
    %2101 = vmatpush1.msra.mxu0 %v374
    %2102 = vmatprep.subr.mxu0 %v379
    %2103 = vmatpush1.msra.mxu0 %v378
    %2104 = vmatprep.subr.mxu0 %v383
    %2105 = vmatpush1.msra.mxu0 %v382
    %2106 = vmatprep.subr.mxu0 %v387
    %2107 = vmatpush1.msra.mxu0 %v386
    %2108 = vmatprep.subr.mxu0 %v391
    %2109 = vmatpush1.msra.mxu0 %v390
    %2110 = vmatprep.subr.mxu0 %v395
    %2111 = vmatpush1.msra.mxu0 %v394
    %2112 = vmatprep.subr.mxu0 0.0
    %2113 = vmatpush1.msra.mxu0 0.0
    %2114 = vmatprep.subr.mxu0 0.0
    %2115 = vmatpush1.msra.mxu0 0.0
    %2116 = vmatprep.subr.mxu0 0.0
    %2117 = vmatpush1.msra.mxu0 0.0
    %2118 = vmatprep.subr.mxu0 0.0
    %2119 = vmatpush1.msra.mxu0 0.0
    %2120 = vmatprep.subr.mxu0 0.0
    %2121 = vmatpush1.msra.mxu0 0.0
    %2122 = vmatprep.subr.mxu0 0.0
    %2123 = vmatpush1.msra.mxu0 0.0
    %2124 = vmatprep.subr.mxu0 0.0
    %2125 = vmatpush1.msra.mxu0 0.0
    %2126 = vmatprep.subr.mxu0 0.0
    %2127 = vmatpush1.msra.mxu0 0.0
    %2128 = vmatprep.subr.mxu0 0.0
    %2129 = vmatpush1.msra.mxu0 0.0
    %2130 = vmatprep.subr.mxu0 0.0
    %2131 = vmatpush1.msra.mxu0 0.0
    %2132 = vmatprep.subr.mxu0 0.0
    %2133 = vmatpush1.msra.mxu0 0.0
    %2134 = vmatprep.subr.mxu0 0.0
    %2135 = vmatpush1.msra.mxu0 0.0
    %2136 = vmatprep.subr.mxu0 0.0
    %2137 = vmatpush1.msra.mxu0 0.0
    %2138 = vmatprep.subr.mxu0 0.0
    %2139 = vmatpush1.msra.mxu0 0.0
    %2140 = vmatprep.subr.mxu0 0.0
    %2141 = vmatpush1.msra.mxu0 0.0
    %2142 = vmatprep.subr.mxu0 0.0
    %2143 = vmatpush1.msra.mxu0 0.0
    %2144 = vmatprep.mubr.f32.mxu0 0.0
    %2145 = vmatmul.mubr.f32.gmra.mrb[0].mxu0 %v2079
    %v2146 = vpop.f32.mrb[0].mxu0
    %v2147 = vadd.f32 0.0, %v2146
    %v2148 = vpop.f32.mrb[0].mxu0
    %v2149 = vadd.f32 0.0, %v2148
    %2150 = vdwg.mxu0
    %2151 = vmatprep.subr.mxu0 %v337
    %2152 = vmatpush1.msra.mxu0 %v336
    %2153 = vmatprep.subr.mxu0 %v341
    %2154 = vmatpush1.msra.mxu0 %v340
    %2155 = vmatprep.subr.mxu0 %v345
    %2156 = vmatpush1.msra.mxu0 %v344
    %2157 = vmatprep.subr.mxu0 %v349
    %2158 = vmatpush1.msra.mxu0 %v348
    %2159 = vmatprep.subr.mxu0 %v353
    %2160 = vmatpush1.msra.mxu0 %v352
    %2161 = vmatprep.subr.mxu0 %v357
    %2162 = vmatpush1.msra.mxu0 %v356
    %2163 = vmatprep.subr.mxu0 %v361
    %2164 = vmatpush1.msra.mxu0 %v360
    %2165 = vmatprep.subr.mxu0 %v365
    %2166 = vmatpush1.msra.mxu0 %v364
    %2167 = vmatprep.subr.mxu0 %v369
    %2168 = vmatpush1.msra.mxu0 %v368
    %2169 = vmatprep.subr.mxu0 %v373
    %2170 = vmatpush1.msra.mxu0 %v372
    %2171 = vmatprep.subr.mxu0 %v377
    %2172 = vmatpush1.msra.mxu0 %v376
    %2173 = vmatprep.subr.mxu0 %v381
    %2174 = vmatpush1.msra.mxu0 %v380
    %2175 = vmatprep.subr.mxu0 %v385
    %2176 = vmatpush1.msra.mxu0 %v384
    %2177 = vmatprep.subr.mxu0 %v389
    %2178 = vmatpush1.msra.mxu0 %v388
    %2179 = vmatprep.subr.mxu0 %v393
    %2180 = vmatpush1.msra.mxu0 %v392
    %2181 = vmatprep.subr.mxu0 %v397
    %2182 = vmatpush1.msra.mxu0 %v396
    %2183 = vmatprep.subr.mxu0 0.0
    %2184 = vmatpush1.msra.mxu0 0.0
    %2185 = vmatprep.subr.mxu0 0.0
    %2186 = vmatpush1.msra.mxu0 0.0
    %2187 = vmatprep.subr.mxu0 0.0
    %2188 = vmatpush1.msra.mxu0 0.0
    %2189 = vmatprep.subr.mxu0 0.0
    %2190 = vmatpush1.msra.mxu0 0.0
    %2191 = vmatprep.subr.mxu0 0.0
    %2192 = vmatpush1.msra.mxu0 0.0
    %2193 = vmatprep.subr.mxu0 0.0
    %2194 = vmatpush1.msra.mxu0 0.0
    %2195 = vmatprep.subr.mxu0 0.0
    %2196 = vmatpush1.msra.mxu0 0.0
    %2197 = vmatprep.subr.mxu0 0.0
    %2198 = vmatpush1.msra.mxu0 0.0
    %2199 = vmatprep.subr.mxu0 0.0
    %2200 = vmatpush1.msra.mxu0 0.0
    %2201 = vmatprep.subr.mxu0 0.0
    %2202 = vmatpush1.msra.mxu0 0.0
    %2203 = vmatprep.subr.mxu0 0.0
    %2204 = vmatpush1.msra.mxu0 0.0
    %2205 = vmatprep.subr.mxu0 0.0
    %2206 = vmatpush1.msra.mxu0 0.0
    %2207 = vmatprep.subr.mxu0 0.0
    %2208 = vmatpush1.msra.mxu0 0.0
    %2209 = vmatprep.subr.mxu0 0.0
    %2210 = vmatpush1.msra.mxu0 0.0
    %2211 = vmatprep.subr.mxu0 0.0
    %2212 = vmatpush1.msra.mxu0 0.0
    %2213 = vmatprep.subr.mxu0 0.0
    %2214 = vmatpush1.msra.mxu0 0.0
    %2215 = vmatprep.mubr.f32.mxu0 0.0
    %2216 = vmatmul.mubr.f32.gmra.mrb[0].mxu0 %v2079
    %v2217 = vpop.f32.mrb[0].mxu0
    %v2218 = vadd.f32 0.0, %v2217
    %v2219 = vpop.f32.mrb[0].mxu0
    %v2220 = vadd.f32 0.0, %v2219
    %2221 = vdwg.mxu0
    %v2222 = vadd.f32 %v513, %v2147
    %v2223 = vadd.f32 %v515, %v2149
    %v2224 = vadd.f32 %v674, %v2218
    %v2225 = vadd.f32 %v676, %v2220
    %v2226 = vxor.u32 %v2222, 2147483648
    %v2227 = vmul.f32 %v2226, 1.442695
    %v2228 = vpow.pop %v2227
    %v2229 = vadd.f32 %v2228, 1.0
    %v2230 = vrcp.pop %v2229
    %v2231 = vmul.f32 1.0, %v2230
    %v2232 = vxor.u32 %v2223, 2147483648
    %v2233 = vmul.f32 %v2232, 1.442695
    %v2234 = vpow.pop %v2233
    %v2235 = vadd.f32 %v2234, 1.0
    %v2236 = vrcp.pop %v2235
    %v2237 = vmul.f32 1.0, %v2236
    %v2238 = vxor.u32 %v2224, 2147483648
    %v2239 = vmul.f32 %v2238, 1.442695
    %v2240 = vpow.pop %v2239
    %v2241 = vadd.f32 %v2240, 1.0
    %v2242 = vrcp.pop %v2241
    %v2243 = vmul.f32 1.0, %v2242
    %v2244 = vtanh.pop %v2225
    %v2245 = vmul.f32 %v2237, %v2077
    %v2246 = vmul.f32 %v2231, %v2244
    %v2247 = vadd.f32 %v2245, %v2246
    %v2248 = vtanh.pop %v2247
    %v2249 = vmul.f32 %v2243, %v2248
    %2250 = vmatprep.subr.mxu0 %v335
    %2251 = vmatpush1.msra.mxu0 %v334
    %2252 = vmatprep.subr.mxu0 %v339
    %2253 = vmatpush1.msra.mxu0 %v338
    %2254 = vmatprep.subr.mxu0 %v343
    %2255 = vmatpush1.msra.mxu0 %v342
    %2256 = vmatprep.subr.mxu0 %v347
    %2257 = vmatpush1.msra.mxu0 %v346
    %2258 = vmatprep.subr.mxu0 %v351
    %2259 = vmatpush1.msra.mxu0 %v350
    %2260 = vmatprep.subr.mxu0 %v355
    %2261 = vmatpush1.msra.mxu0 %v354
    %2262 = vmatprep.subr.mxu0 %v359
    %2263 = vmatpush1.msra.mxu0 %v358
    %2264 = vmatprep.subr.mxu0 %v363
    %2265 = vmatpush1.msra.mxu0 %v362
    %2266 = vmatprep.subr.mxu0 %v367
    %2267 = vmatpush1.msra.mxu0 %v366
    %2268 = vmatprep.subr.mxu0 %v371
    %2269 = vmatpush1.msra.mxu0 %v370
    %2270 = vmatprep.subr.mxu0 %v375
    %2271 = vmatpush1.msra.mxu0 %v374
    %2272 = vmatprep.subr.mxu0 %v379
    %2273 = vmatpush1.msra.mxu0 %v378
    %2274 = vmatprep.subr.mxu0 %v383
    %2275 = vmatpush1.msra.mxu0 %v382
    %2276 = vmatprep.subr.mxu0 %v387
    %2277 = vmatpush1.msra.mxu0 %v386
    %2278 = vmatprep.subr.mxu0 %v391
    %2279 = vmatpush1.msra.mxu0 %v390
    %2280 = vmatprep.subr.mxu0 %v395
    %2281 = vmatpush1.msra.mxu0 %v394
    %2282 = vmatprep.subr.mxu0 0.0
    %2283 = vmatpush1.msra.mxu0 0.0
    %2284 = vmatprep.subr.mxu0 0.0
    %2285 = vmatpush1.msra.mxu0 0.0
    %2286 = vmatprep.subr.mxu0 0.0
    %2287 = vmatpush1.msra.mxu0 0.0
    %2288 = vmatprep.subr.mxu0 0.0
    %2289 = vmatpush1.msra.mxu0 0.0
    %2290 = vmatprep.subr.mxu0 0.0
    %2291 = vmatpush1.msra.mxu0 0.0
    %2292 = vmatprep.subr.mxu0 0.0
    %2293 = vmatpush1.msra.mxu0 0.0
    %2294 = vmatprep.subr.mxu0 0.0
    %2295 = vmatpush1.msra.mxu0 0.0
    %2296 = vmatprep.subr.mxu0 0.0
    %2297 = vmatpush1.msra.mxu0 0.0
    %2298 = vmatprep.subr.mxu0 0.0
    %2299 = vmatpush1.msra.mxu0 0.0
    %2300 = vmatprep.subr.mxu0 0.0
    %2301 = vmatpush1.msra.mxu0 0.0
    %2302 = vmatprep.subr.mxu0 0.0
    %2303 = vmatpush1.msra.mxu0 0.0
    %2304 = vmatprep.subr.mxu0 0.0
    %2305 = vmatpush1.msra.mxu0 0.0
    %2306 = vmatprep.subr.mxu0 0.0
    %2307 = vmatpush1.msra.mxu0 0.0
    %2308 = vmatprep.subr.mxu0 0.0
    %2309 = vmatpush1.msra.mxu0 0.0
    %2310 = vmatprep.subr.mxu0 0.0
    %2311 = vmatpush1.msra.mxu0 0.0
    %2312 = vmatprep.subr.mxu0 0.0
    %2313 = vmatpush1.msra.mxu0 0.0
    %2314 = vmatprep.mubr.f32.mxu0 0.0
    %2315 = vmatmul.mubr.f32.gmra.mrb[0].mxu0 %v2249
    %v2316 = vpop.f32.mrb[0].mxu0
    %v2317 = vadd.f32 0.0, %v2316
    %v2318 = vpop.f32.mrb[0].mxu0
    %v2319 = vadd.f32 0.0, %v2318
    %2320 = vdwg.mxu0
    %2321 = vmatprep.subr.mxu0 %v337
    %2322 = vmatpush1.msra.mxu0 %v336
    %2323 = vmatprep.subr.mxu0 %v341
    %2324 = vmatpush1.msra.mxu0 %v340
    %2325 = vmatprep.subr.mxu0 %v345
    %2326 = vmatpush1.msra.mxu0 %v344
    %2327 = vmatprep.subr.mxu0 %v349
    %2328 = vmatpush1.msra.mxu0 %v348
    %2329 = vmatprep.subr.mxu0 %v353
    %2330 = vmatpush1.msra.mxu0 %v352
    %2331 = vmatprep.subr.mxu0 %v357
    %2332 = vmatpush1.msra.mxu0 %v356
    %2333 = vmatprep.subr.mxu0 %v361
    %2334 = vmatpush1.msra.mxu0 %v360
    %2335 = vmatprep.subr.mxu0 %v365
    %2336 = vmatpush1.msra.mxu0 %v364
    %2337 = vmatprep.subr.mxu0 %v369
    %2338 = vmatpush1.msra.mxu0 %v368
    %2339 = vmatprep.subr.mxu0 %v373
    %2340 = vmatpush1.msra.mxu0 %v372
    %2341 = vmatprep.subr.mxu0 %v377
    %2342 = vmatpush1.msra.mxu0 %v376
    %2343 = vmatprep.subr.mxu0 %v381
    %2344 = vmatpush1.msra.mxu0 %v380
    %2345 = vmatprep.subr.mxu0 %v385
    %2346 = vmatpush1.msra.mxu0 %v384
    %2347 = vmatprep.subr.mxu0 %v389
    %2348 = vmatpush1.msra.mxu0 %v388
    %2349 = vmatprep.subr.mxu0 %v393
    %2350 = vmatpush1.msra.mxu0 %v392
    %2351 = vmatprep.subr.mxu0 %v397
    %2352 = vmatpush1.msra.mxu0 %v396
    %2353 = vmatprep.subr.mxu0 0.0
    %2354 = vmatpush1.msra.mxu0 0.0
    %2355 = vmatprep.subr.mxu0 0.0
    %2356 = vmatpush1.msra.mxu0 0.0
    %2357 = vmatprep.subr.mxu0 0.0
    %2358 = vmatpush1.msra.mxu0 0.0
    %2359 = vmatprep.subr.mxu0 0.0
    %2360 = vmatpush1.msra.mxu0 0.0
    %2361 = vmatprep.subr.mxu0 0.0
    %2362 = vmatpush1.msra.mxu0 0.0
    %2363 = vmatprep.subr.mxu0 0.0
    %2364 = vmatpush1.msra.mxu0 0.0
    %2365 = vmatprep.subr.mxu0 0.0
    %2366 = vmatpush1.msra.mxu0 0.0
    %2367 = vmatprep.subr.mxu0 0.0
    %2368 = vmatpush1.msra.mxu0 0.0
    %2369 = vmatprep.subr.mxu0 0.0
    %2370 = vmatpush1.msra.mxu0 0.0
    %2371 = vmatprep.subr.mxu0 0.0
    %2372 = vmatpush1.msra.mxu0 0.0
    %2373 = vmatprep.subr.mxu0 0.0
    %2374 = vmatpush1.msra.mxu0 0.0
    %2375 = vmatprep.subr.mxu0 0.0
    %2376 = vmatpush1.msra.mxu0 0.0
    %2377 = vmatprep.subr.mxu0 0.0
    %2378 = vmatpush1.msra.mxu0 0.0
    %2379 = vmatprep.subr.mxu0 0.0
    %2380 = vmatpush1.msra.mxu0 0.0
    %2381 = vmatprep.subr.mxu0 0.0
    %2382 = vmatpush1.msra.mxu0 0.0
    %2383 = vmatprep.subr.mxu0 0.0
    %2384 = vmatpush1.msra.mxu0 0.0
    %2385 = vmatprep.mubr.f32.mxu0 0.0
    %2386 = vmatmul.mubr.f32.gmra.mrb[0].mxu0 %v2249
    %v2387 = vpop.f32.mrb[0].mxu0
    %v2388 = vadd.f32 0.0, %v2387
    %v2389 = vpop.f32.mrb[0].mxu0
    %v2390 = vadd.f32 0.0, %v2389
    %2391 = vdwg.mxu0
    %v2392 = vadd.f32 %v519, %v2317
    %v2393 = vadd.f32 %v521, %v2319
    %v2394 = vadd.f32 %v680, %v2388
    %v2395 = vadd.f32 %v682, %v2390
    %v2396 = vxor.u32 %v2392, 2147483648
    %v2397 = vmul.f32 %v2396, 1.442695
    %v2398 = vpow.pop %v2397
    %v2399 = vadd.f32 %v2398, 1.0
    %v2400 = vrcp.pop %v2399
    %v2401 = vmul.f32 1.0, %v2400
    %v2402 = vxor.u32 %v2393, 2147483648
    %v2403 = vmul.f32 %v2402, 1.442695
    %v2404 = vpow.pop %v2403
    %v2405 = vadd.f32 %v2404, 1.0
    %v2406 = vrcp.pop %v2405
    %v2407 = vmul.f32 1.0, %v2406
    %v2408 = vxor.u32 %v2394, 2147483648
    %v2409 = vmul.f32 %v2408, 1.442695
    %v2410 = vpow.pop %v2409
    %v2411 = vadd.f32 %v2410, 1.0
    %v2412 = vrcp.pop %v2411
    %v2413 = vmul.f32 1.0, %v2412
    %v2414 = vtanh.pop %v2395
    %v2415 = vmul.f32 %v2407, %v2247
    %v2416 = vmul.f32 %v2401, %v2414
    %v2417 = vadd.f32 %v2415, %v2416
    %v2418 = vtanh.pop %v2417
    %v2419 = vmul.f32 %v2413, %v2418
    %2420 = vmatprep.subr.mxu0 %v335
    %2421 = vmatpush1.msra.mxu0 %v334
    %2422 = vmatprep.subr.mxu0 %v339
    %2423 = vmatpush1.msra.mxu0 %v338
    %2424 = vmatprep.subr.mxu0 %v343
    %2425 = vmatpush1.msra.mxu0 %v342
    %2426 = vmatprep.subr.mxu0 %v347
    %2427 = vmatpush1.msra.mxu0 %v346
    %2428 = vmatprep.subr.mxu0 %v351
    %2429 = vmatpush1.msra.mxu0 %v350
    %2430 = vmatprep.subr.mxu0 %v355
    %2431 = vmatpush1.msra.mxu0 %v354
    %2432 = vmatprep.subr.mxu0 %v359
    %2433 = vmatpush1.msra.mxu0 %v358
    %2434 = vmatprep.subr.mxu0 %v363
    %2435 = vmatpush1.msra.mxu0 %v362
    %2436 = vmatprep.subr.mxu0 %v367
    %2437 = vmatpush1.msra.mxu0 %v366
    %2438 = vmatprep.subr.mxu0 %v371
    %2439 = vmatpush1.msra.mxu0 %v370
    %2440 = vmatprep.subr.mxu0 %v375
    %2441 = vmatpush1.msra.mxu0 %v374
    %2442 = vmatprep.subr.mxu0 %v379
    %2443 = vmatpush1.msra.mxu0 %v378
    %2444 = vmatprep.subr.mxu0 %v383
    %2445 = vmatpush1.msra.mxu0 %v382
    %2446 = vmatprep.subr.mxu0 %v387
    %2447 = vmatpush1.msra.mxu0 %v386
    %2448 = vmatprep.subr.mxu0 %v391
    %2449 = vmatpush1.msra.mxu0 %v390
    %2450 = vmatprep.subr.mxu0 %v395
    %2451 = vmatpush1.msra.mxu0 %v394
    %2452 = vmatprep.subr.mxu0 0.0
    %2453 = vmatpush1.msra.mxu0 0.0
    %2454 = vmatprep.subr.mxu0 0.0
    %2455 = vmatpush1.msra.mxu0 0.0
    %2456 = vmatprep.subr.mxu0 0.0
    %2457 = vmatpush1.msra.mxu0 0.0
    %2458 = vmatprep.subr.mxu0 0.0
    %2459 = vmatpush1.msra.mxu0 0.0
    %2460 = vmatprep.subr.mxu0 0.0
    %2461 = vmatpush1.msra.mxu0 0.0
    %2462 = vmatprep.subr.mxu0 0.0
    %2463 = vmatpush1.msra.mxu0 0.0
    %2464 = vmatprep.subr.mxu0 0.0
    %2465 = vmatpush1.msra.mxu0 0.0
    %2466 = vmatprep.subr.mxu0 0.0
    %2467 = vmatpush1.msra.mxu0 0.0
    %2468 = vmatprep.subr.mxu0 0.0
    %2469 = vmatpush1.msra.mxu0 0.0
    %2470 = vmatprep.subr.mxu0 0.0
    %2471 = vmatpush1.msra.mxu0 0.0
    %2472 = vmatprep.subr.mxu0 0.0
    %2473 = vmatpush1.msra.mxu0 0.0
    %2474 = vmatprep.subr.mxu0 0.0
    %2475 = vmatpush1.msra.mxu0 0.0
    %2476 = vmatprep.subr.mxu0 0.0
    %2477 = vmatpush1.msra.mxu0 0.0
    %2478 = vmatprep.subr.mxu0 0.0
    %2479 = vmatpush1.msra.mxu0 0.0
    %2480 = vmatprep.subr.mxu0 0.0
    %2481 = vmatpush1.msra.mxu0 0.0
    %2482 = vmatprep.subr.mxu0 0.0
    %2483 = vmatpush1.msra.mxu0 0.0
    %2484 = vmatprep.mubr.f32.mxu0 0.0
    %2485 = vmatmul.mubr.f32.gmra.mrb[0].mxu0 %v2419
    %v2486 = vpop.f32.mrb[0].mxu0
    %v2487 = vadd.f32 0.0, %v2486
    %v2488 = vpop.f32.mrb[0].mxu0
    %v2489 = vadd.f32 0.0, %v2488
    %2490 = vdwg.mxu0
    %2491 = vmatprep.subr.mxu0 %v337
    %2492 = vmatpush1.msra.mxu0 %v336
    %2493 = vmatprep.subr.mxu0 %v341
    %2494 = vmatpush1.msra.mxu0 %v340
    %2495 = vmatprep.subr.mxu0 %v345
    %2496 = vmatpush1.msra.mxu0 %v344
    %2497 = vmatprep.subr.mxu0 %v349
    %2498 = vmatpush1.msra.mxu0 %v348
    %2499 = vmatprep.subr.mxu0 %v353
    %2500 = vmatpush1.msra.mxu0 %v352
    %2501 = vmatprep.subr.mxu0 %v357
    %2502 = vmatpush1.msra.mxu0 %v356
    %2503 = vmatprep.subr.mxu0 %v361
    %2504 = vmatpush1.msra.mxu0 %v360
    %2505 = vmatprep.subr.mxu0 %v365
    %2506 = vmatpush1.msra.mxu0 %v364
    %2507 = vmatprep.subr.mxu0 %v369
    %2508 = vmatpush1.msra.mxu0 %v368
    %2509 = vmatprep.subr.mxu0 %v373
    %2510 = vmatpush1.msra.mxu0 %v372
    %2511 = vmatprep.subr.mxu0 %v377
    %2512 = vmatpush1.msra.mxu0 %v376
    %2513 = vmatprep.subr.mxu0 %v381
    %2514 = vmatpush1.msra.mxu0 %v380
    %2515 = vmatprep.subr.mxu0 %v385
    %2516 = vmatpush1.msra.mxu0 %v384
    %2517 = vmatprep.subr.mxu0 %v389
    %2518 = vmatpush1.msra.mxu0 %v388
    %2519 = vmatprep.subr.mxu0 %v393
    %2520 = vmatpush1.msra.mxu0 %v392
    %2521 = vmatprep.subr.mxu0 %v397
    %2522 = vmatpush1.msra.mxu0 %v396
    %2523 = vmatprep.subr.mxu0 0.0
    %2524 = vmatpush1.msra.mxu0 0.0
    %2525 = vmatprep.subr.mxu0 0.0
    %2526 = vmatpush1.msra.mxu0 0.0
    %2527 = vmatprep.subr.mxu0 0.0
    %2528 = vmatpush1.msra.mxu0 0.0
    %2529 = vmatprep.subr.mxu0 0.0
    %2530 = vmatpush1.msra.mxu0 0.0
    %2531 = vmatprep.subr.mxu0 0.0
    %2532 = vmatpush1.msra.mxu0 0.0
    %2533 = vmatprep.subr.mxu0 0.0
    %2534 = vmatpush1.msra.mxu0 0.0
    %2535 = vmatprep.subr.mxu0 0.0
    %2536 = vmatpush1.msra.mxu0 0.0
    %2537 = vmatprep.subr.mxu0 0.0
    %2538 = vmatpush1.msra.mxu0 0.0
    %2539 = vmatprep.subr.mxu0 0.0
    %2540 = vmatpush1.msra.mxu0 0.0
    %2541 = vmatprep.subr.mxu0 0.0
    %2542 = vmatpush1.msra.mxu0 0.0
    %2543 = vmatprep.subr.mxu0 0.0
    %2544 = vmatpush1.msra.mxu0 0.0
    %2545 = vmatprep.subr.mxu0 0.0
    %2546 = vmatpush1.msra.mxu0 0.0
    %2547 = vmatprep.subr.mxu0 0.0
    %2548 = vmatpush1.msra.mxu0 0.0
    %2549 = vmatprep.subr.mxu0 0.0
    %2550 = vmatpush1.msra.mxu0 0.0
    %2551 = vmatprep.subr.mxu0 0.0
    %2552 = vmatpush1.msra.mxu0 0.0
    %2553 = vmatprep.subr.mxu0 0.0
    %2554 = vmatpush1.msra.mxu0 0.0
    %2555 = vmatprep.mubr.f32.mxu0 0.0
    %2556 = vmatmul.mubr.f32.gmra.mrb[0].mxu0 %v2419
    %v2557 = vpop.f32.mrb[0].mxu0
    %v2558 = vadd.f32 0.0, %v2557
    %v2559 = vpop.f32.mrb[0].mxu0
    %v2560 = vadd.f32 0.0, %v2559
    %2561 = vdwg.mxu0
    %v2562 = vadd.f32 %v525, %v2487
    %v2563 = vadd.f32 %v527, %v2489
    %v2564 = vadd.f32 %v686, %v2558
    %v2565 = vadd.f32 %v688, %v2560
    %v2566 = vxor.u32 %v2562, 2147483648
    %v2567 = vmul.f32 %v2566, 1.442695
    %v2568 = vpow.pop %v2567
    %v2569 = vadd.f32 %v2568, 1.0
    %v2570 = vrcp.pop %v2569
    %v2571 = vmul.f32 1.0, %v2570
    %v2572 = vxor.u32 %v2563, 2147483648
    %v2573 = vmul.f32 %v2572, 1.442695
    %v2574 = vpow.pop %v2573
    %v2575 = vadd.f32 %v2574, 1.0
    %v2576 = vrcp.pop %v2575
    %v2577 = vmul.f32 1.0, %v2576
    %v2578 = vxor.u32 %v2564, 2147483648
    %v2579 = vmul.f32 %v2578, 1.442695
    %v2580 = vpow.pop %v2579
    %v2581 = vadd.f32 %v2580, 1.0
    %v2582 = vrcp.pop %v2581
    %v2583 = vmul.f32 1.0, %v2582
    %v2584 = vtanh.pop %v2565
    %v2585 = vmul.f32 %v2577, %v2417
    %v2586 = vmul.f32 %v2571, %v2584
    %v2587 = vadd.f32 %v2585, %v2586
    %v2588 = vtanh.pop %v2587
    %v2589 = vmul.f32 %v2583, %v2588
    %2590 = vmatprep.subr.mxu0 %v335
    %2591 = vmatpush1.msra.mxu0 %v334
    %2592 = vmatprep.subr.mxu0 %v339
    %2593 = vmatpush1.msra.mxu0 %v338
    %2594 = vmatprep.subr.mxu0 %v343
    %2595 = vmatpush1.msra.mxu0 %v342
    %2596 = vmatprep.subr.mxu0 %v347
    %2597 = vmatpush1.msra.mxu0 %v346
    %2598 = vmatprep.subr.mxu0 %v351
    %2599 = vmatpush1.msra.mxu0 %v350
    %2600 = vmatprep.subr.mxu0 %v355
    %2601 = vmatpush1.msra.mxu0 %v354
    %2602 = vmatprep.subr.mxu0 %v359
    %2603 = vmatpush1.msra.mxu0 %v358
    %2604 = vmatprep.subr.mxu0 %v363
    %2605 = vmatpush1.msra.mxu0 %v362
    %2606 = vmatprep.subr.mxu0 %v367
    %2607 = vmatpush1.msra.mxu0 %v366
    %2608 = vmatprep.subr.mxu0 %v371
    %2609 = vmatpush1.msra.mxu0 %v370
    %2610 = vmatprep.subr.mxu0 %v375
    %2611 = vmatpush1.msra.mxu0 %v374
    %2612 = vmatprep.subr.mxu0 %v379
    %2613 = vmatpush1.msra.mxu0 %v378
    %2614 = vmatprep.subr.mxu0 %v383
    %2615 = vmatpush1.msra.mxu0 %v382
    %2616 = vmatprep.subr.mxu0 %v387
    %2617 = vmatpush1.msra.mxu0 %v386
    %2618 = vmatprep.subr.mxu0 %v391
    %2619 = vmatpush1.msra.mxu0 %v390
    %2620 = vmatprep.subr.mxu0 %v395
    %2621 = vmatpush1.msra.mxu0 %v394
    %2622 = vmatprep.subr.mxu0 0.0
    %2623 = vmatpush1.msra.mxu0 0.0
    %2624 = vmatprep.subr.mxu0 0.0
    %2625 = vmatpush1.msra.mxu0 0.0
    %2626 = vmatprep.subr.mxu0 0.0
    %2627 = vmatpush1.msra.mxu0 0.0
    %2628 = vmatprep.subr.mxu0 0.0
    %2629 = vmatpush1.msra.mxu0 0.0
    %2630 = vmatprep.subr.mxu0 0.0
    %2631 = vmatpush1.msra.mxu0 0.0
    %2632 = vmatprep.subr.mxu0 0.0
    %2633 = vmatpush1.msra.mxu0 0.0
    %2634 = vmatprep.subr.mxu0 0.0
    %2635 = vmatpush1.msra.mxu0 0.0
    %2636 = vmatprep.subr.mxu0 0.0
    %2637 = vmatpush1.msra.mxu0 0.0
    %2638 = vmatprep.subr.mxu0 0.0
    %2639 = vmatpush1.msra.mxu0 0.0
    %2640 = vmatprep.subr.mxu0 0.0
    %2641 = vmatpush1.msra.mxu0 0.0
    %2642 = vmatprep.subr.mxu0 0.0
    %2643 = vmatpush1.msra.mxu0 0.0
    %2644 = vmatprep.subr.mxu0 0.0
    %2645 = vmatpush1.msra.mxu0 0.0
    %2646 = vmatprep.subr.mxu0 0.0
    %2647 = vmatpush1.msra.mxu0 0.0
    %2648 = vmatprep.subr.mxu0 0.0
    %2649 = vmatpush1.msra.mxu0 0.0
    %2650 = vmatprep.subr.mxu0 0.0
    %2651 = vmatpush1.msra.mxu0 0.0
    %2652 = vmatprep.subr.mxu0 0.0
    %2653 = vmatpush1.msra.mxu0 0.0
    %2654 = vmatprep.mubr.f32.mxu0 0.0
    %2655 = vmatmul.mubr.f32.gmra.mrb[0].mxu0 %v2589
    %v2656 = vpop.f32.mrb[0].mxu0
    %v2657 = vadd.f32 0.0, %v2656
    %v2658 = vpop.f32.mrb[0].mxu0
    %v2659 = vadd.f32 0.0, %v2658
    %2660 = vdwg.mxu0
    %2661 = vmatprep.subr.mxu0 %v337
    %2662 = vmatpush1.msra.mxu0 %v336
    %2663 = vmatprep.subr.mxu0 %v341
    %2664 = vmatpush1.msra.mxu0 %v340
    %2665 = vmatprep.subr.mxu0 %v345
    %2666 = vmatpush1.msra.mxu0 %v344
    %2667 = vmatprep.subr.mxu0 %v349
    %2668 = vmatpush1.msra.mxu0 %v348
    %2669 = vmatprep.subr.mxu0 %v353
    %2670 = vmatpush1.msra.mxu0 %v352
    %2671 = vmatprep.subr.mxu0 %v357
    %2672 = vmatpush1.msra.mxu0 %v356
    %2673 = vmatprep.subr.mxu0 %v361
    %2674 = vmatpush1.msra.mxu0 %v360
    %2675 = vmatprep.subr.mxu0 %v365
    %2676 = vmatpush1.msra.mxu0 %v364
    %2677 = vmatprep.subr.mxu0 %v369
    %2678 = vmatpush1.msra.mxu0 %v368
    %2679 = vmatprep.subr.mxu0 %v373
    %2680 = vmatpush1.msra.mxu0 %v372
    %2681 = vmatprep.subr.mxu0 %v377
    %2682 = vmatpush1.msra.mxu0 %v376
    %2683 = vmatprep.subr.mxu0 %v381
    %2684 = vmatpush1.msra.mxu0 %v380
    %2685 = vmatprep.subr.mxu0 %v385
    %2686 = vmatpush1.msra.mxu0 %v384
    %2687 = vmatprep.subr.mxu0 %v389
    %2688 = vmatpush1.msra.mxu0 %v388
    %2689 = vmatprep.subr.mxu0 %v393
    %2690 = vmatpush1.msra.mxu0 %v392
    %2691 = vmatprep.subr.mxu0 %v397
    %2692 = vmatpush1.msra.mxu0 %v396
    %2693 = vmatprep.subr.mxu0 0.0
    %2694 = vmatpush1.msra.mxu0 0.0
    %2695 = vmatprep.subr.mxu0 0.0
    %2696 = vmatpush1.msra.mxu0 0.0
    %2697 = vmatprep.subr.mxu0 0.0
    %2698 = vmatpush1.msra.mxu0 0.0
    %2699 = vmatprep.subr.mxu0 0.0
    %2700 = vmatpush1.msra.mxu0 0.0
    %2701 = vmatprep.subr.mxu0 0.0
    %2702 = vmatpush1.msra.mxu0 0.0
    %2703 = vmatprep.subr.mxu0 0.0
    %2704 = vmatpush1.msra.mxu0 0.0
    %2705 = vmatprep.subr.mxu0 0.0
    %2706 = vmatpush1.msra.mxu0 0.0
    %2707 = vmatprep.subr.mxu0 0.0
    %2708 = vmatpush1.msra.mxu0 0.0
    %2709 = vmatprep.subr.mxu0 0.0
    %2710 = vmatpush1.msra.mxu0 0.0
    %2711 = vmatprep.subr.mxu0 0.0
    %2712 = vmatpush1.msra.mxu0 0.0
    %2713 = vmatprep.subr.mxu0 0.0
    %2714 = vmatpush1.msra.mxu0 0.0
    %2715 = vmatprep.subr.mxu0 0.0
    %2716 = vmatpush1.msra.mxu0 0.0
    %2717 = vmatprep.subr.mxu0 0.0
    %2718 = vmatpush1.msra.mxu0 0.0
    %2719 = vmatprep.subr.mxu0 0.0
    %2720 = vmatpush1.msra.mxu0 0.0
    %2721 = vmatprep.subr.mxu0 0.0
    %2722 = vmatpush1.msra.mxu0 0.0
    %2723 = vmatprep.subr.mxu0 0.0
    %2724 = vmatpush1.msra.mxu0 0.0
    %2725 = vmatprep.mubr.f32.mxu0 0.0
    %2726 = vmatmul.mubr.f32.gmra.mrb[0].mxu0 %v2589
    %v2727 = vpop.f32.mrb[0].mxu0
    %v2728 = vadd.f32 0.0, %v2727
    %v2729 = vpop.f32.mrb[0].mxu0
    %v2730 = vadd.f32 0.0, %v2729
    %2731 = vdwg.mxu0
    %v2732 = vadd.f32 %v531, %v2657
    %v2733 = vadd.f32 %v533, %v2659
    %v2734 = vadd.f32 %v692, %v2728
    %v2735 = vadd.f32 %v694, %v2730
    %v2736 = vxor.u32 %v2732, 2147483648
    %v2737 = vmul.f32 %v2736, 1.442695
    %v2738 = vpow.pop %v2737
    %v2739 = vadd.f32 %v2738, 1.0
    %v2740 = vrcp.pop %v2739
    %v2741 = vmul.f32 1.0, %v2740
    %v2742 = vxor.u32 %v2733, 2147483648
    %v2743 = vmul.f32 %v2742, 1.442695
    %v2744 = vpow.pop %v2743
    %v2745 = vadd.f32 %v2744, 1.0
    %v2746 = vrcp.pop %v2745
    %v2747 = vmul.f32 1.0, %v2746
    %v2748 = vxor.u32 %v2734, 2147483648
    %v2749 = vmul.f32 %v2748, 1.442695
    %v2750 = vpow.pop %v2749
    %v2751 = vadd.f32 %v2750, 1.0
    %v2752 = vrcp.pop %v2751
    %v2753 = vmul.f32 1.0, %v2752
    %v2754 = vtanh.pop %v2735
    %v2755 = vmul.f32 %v2747, %v2587
    %v2756 = vmul.f32 %v2741, %v2754
    %v2757 = vadd.f32 %v2755, %v2756
    %v2758 = vtanh.pop %v2757
    %v2759 = vmul.f32 %v2753, %v2758
    %2760 = vmatprep.subr.mxu0 %v335
    %2761 = vmatpush1.msra.mxu0 %v334
    %2762 = vmatprep.subr.mxu0 %v339
    %2763 = vmatpush1.msra.mxu0 %v338
    %2764 = vmatprep.subr.mxu0 %v343
    %2765 = vmatpush1.msra.mxu0 %v342
    %2766 = vmatprep.subr.mxu0 %v347
    %2767 = vmatpush1.msra.mxu0 %v346
    %2768 = vmatprep.subr.mxu0 %v351
    %2769 = vmatpush1.msra.mxu0 %v350
    %2770 = vmatprep.subr.mxu0 %v355
    %2771 = vmatpush1.msra.mxu0 %v354
    %2772 = vmatprep.subr.mxu0 %v359
    %2773 = vmatpush1.msra.mxu0 %v358
    %2774 = vmatprep.subr.mxu0 %v363
    %2775 = vmatpush1.msra.mxu0 %v362
    %2776 = vmatprep.subr.mxu0 %v367
    %2777 = vmatpush1.msra.mxu0 %v366
    %2778 = vmatprep.subr.mxu0 %v371
    %2779 = vmatpush1.msra.mxu0 %v370
    %2780 = vmatprep.subr.mxu0 %v375
    %2781 = vmatpush1.msra.mxu0 %v374
    %2782 = vmatprep.subr.mxu0 %v379
    %2783 = vmatpush1.msra.mxu0 %v378
    %2784 = vmatprep.subr.mxu0 %v383
    %2785 = vmatpush1.msra.mxu0 %v382
    %2786 = vmatprep.subr.mxu0 %v387
    %2787 = vmatpush1.msra.mxu0 %v386
    %2788 = vmatprep.subr.mxu0 %v391
    %2789 = vmatpush1.msra.mxu0 %v390
    %2790 = vmatprep.subr.mxu0 %v395
    %2791 = vmatpush1.msra.mxu0 %v394
    %2792 = vmatprep.subr.mxu0 0.0
    %2793 = vmatpush1.msra.mxu0 0.0
    %2794 = vmatprep.subr.mxu0 0.0
    %2795 = vmatpush1.msra.mxu0 0.0
    %2796 = vmatprep.subr.mxu0 0.0
    %2797 = vmatpush1.msra.mxu0 0.0
    %2798 = vmatprep.subr.mxu0 0.0
    %2799 = vmatpush1.msra.mxu0 0.0
    %2800 = vmatprep.subr.mxu0 0.0
    %2801 = vmatpush1.msra.mxu0 0.0
    %2802 = vmatprep.subr.mxu0 0.0
    %2803 = vmatpush1.msra.mxu0 0.0
    %2804 = vmatprep.subr.mxu0 0.0
    %2805 = vmatpush1.msra.mxu0 0.0
    %2806 = vmatprep.subr.mxu0 0.0
    %2807 = vmatpush1.msra.mxu0 0.0
    %2808 = vmatprep.subr.mxu0 0.0
    %2809 = vmatpush1.msra.mxu0 0.0
    %2810 = vmatprep.subr.mxu0 0.0
    %2811 = vmatpush1.msra.mxu0 0.0
    %2812 = vmatprep.subr.mxu0 0.0
    %2813 = vmatpush1.msra.mxu0 0.0
    %2814 = vmatprep.subr.mxu0 0.0
    %2815 = vmatpush1.msra.mxu0 0.0
    %2816 = vmatprep.subr.mxu0 0.0
    %2817 = vmatpush1.msra.mxu0 0.0
    %2818 = vmatprep.subr.mxu0 0.0
    %2819 = vmatpush1.msra.mxu0 0.0
    %2820 = vmatprep.subr.mxu0 0.0
    %2821 = vmatpush1.msra.mxu0 0.0
    %2822 = vmatprep.subr.mxu0 0.0
    %2823 = vmatpush1.msra.mxu0 0.0
    %2824 = vmatprep.mubr.f32.mxu0 0.0
    %2825 = vmatmul.mubr.f32.gmra.mrb[0].mxu0 %v2759
    %v2826 = vpop.f32.mrb[0].mxu0
    %v2827 = vadd.f32 0.0, %v2826
    %v2828 = vpop.f32.mrb[0].mxu0
    %v2829 = vadd.f32 0.0, %v2828
    %2830 = vdwg.mxu0
    %2831 = vmatprep.subr.mxu0 %v337
    %2832 = vmatpush1.msra.mxu0 %v336
    %2833 = vmatprep.subr.mxu0 %v341
    %2834 = vmatpush1.msra.mxu0 %v340
    %2835 = vmatprep.subr.mxu0 %v345
    %2836 = vmatpush1.msra.mxu0 %v344
    %2837 = vmatprep.subr.mxu0 %v349
    %2838 = vmatpush1.msra.mxu0 %v348
    %2839 = vmatprep.subr.mxu0 %v353
    %2840 = vmatpush1.msra.mxu0 %v352
    %2841 = vmatprep.subr.mxu0 %v357
    %2842 = vmatpush1.msra.mxu0 %v356
    %2843 = vmatprep.subr.mxu0 %v361
    %2844 = vmatpush1.msra.mxu0 %v360
    %2845 = vmatprep.subr.mxu0 %v365
    %2846 = vmatpush1.msra.mxu0 %v364
    %2847 = vmatprep.subr.mxu0 %v369
    %2848 = vmatpush1.msra.mxu0 %v368
    %2849 = vmatprep.subr.mxu0 %v373
    %2850 = vmatpush1.msra.mxu0 %v372
    %2851 = vmatprep.subr.mxu0 %v377
    %2852 = vmatpush1.msra.mxu0 %v376
    %2853 = vmatprep.subr.mxu0 %v381
    %2854 = vmatpush1.msra.mxu0 %v380
    %2855 = vmatprep.subr.mxu0 %v385
    %2856 = vmatpush1.msra.mxu0 %v384
    %2857 = vmatprep.subr.mxu0 %v389
    %2858 = vmatpush1.msra.mxu0 %v388
    %2859 = vmatprep.subr.mxu0 %v393
    %2860 = vmatpush1.msra.mxu0 %v392
    %2861 = vmatprep.subr.mxu0 %v397
    %2862 = vmatpush1.msra.mxu0 %v396
    %2863 = vmatprep.subr.mxu0 0.0
    %2864 = vmatpush1.msra.mxu0 0.0
    %2865 = vmatprep.subr.mxu0 0.0
    %2866 = vmatpush1.msra.mxu0 0.0
    %2867 = vmatprep.subr.mxu0 0.0
    %2868 = vmatpush1.msra.mxu0 0.0
    %2869 = vmatprep.subr.mxu0 0.0
    %2870 = vmatpush1.msra.mxu0 0.0
    %2871 = vmatprep.subr.mxu0 0.0
    %2872 = vmatpush1.msra.mxu0 0.0
    %2873 = vmatprep.subr.mxu0 0.0
    %2874 = vmatpush1.msra.mxu0 0.0
    %2875 = vmatprep.subr.mxu0 0.0
    %2876 = vmatpush1.msra.mxu0 0.0
    %2877 = vmatprep.subr.mxu0 0.0
    %2878 = vmatpush1.msra.mxu0 0.0
    %2879 = vmatprep.subr.mxu0 0.0
    %2880 = vmatpush1.msra.mxu0 0.0
    %2881 = vmatprep.subr.mxu0 0.0
    %2882 = vmatpush1.msra.mxu0 0.0
    %2883 = vmatprep.subr.mxu0 0.0
    %2884 = vmatpush1.msra.mxu0 0.0
    %2885 = vmatprep.subr.mxu0 0.0
    %2886 = vmatpush1.msra.mxu0 0.0
    %2887 = vmatprep.subr.mxu0 0.0
    %2888 = vmatpush1.msra.mxu0 0.0
    %2889 = vmatprep.subr.mxu0 0.0
    %2890 = vmatpush1.msra.mxu0 0.0
    %2891 = vmatprep.subr.mxu0 0.0
    %2892 = vmatpush1.msra.mxu0 0.0
    %2893 = vmatprep.subr.mxu0 0.0
    %2894 = vmatpush1.msra.mxu0 0.0
    %2895 = vmatprep.mubr.f32.mxu0 0.0
    %2896 = vmatmul.mubr.f32.gmra.mrb[0].mxu0 %v2759
    %v2897 = vpop.f32.mrb[0].mxu0
    %v2898 = vadd.f32 0.0, %v2897
    %v2899 = vpop.f32.mrb[0].mxu0
    %v2900 = vadd.f32 0.0, %v2899
    %2901 = vdwg.mxu0
    %v2902 = vadd.f32 %v537, %v2827
    %v2903 = vadd.f32 %v539, %v2829
    %v2904 = vadd.f32 %v698, %v2898
    %v2905 = vadd.f32 %v700, %v2900
    %v2906 = vxor.u32 %v2902, 2147483648
    %v2907 = vmul.f32 %v2906, 1.442695
    %v2908 = vpow.pop %v2907
    %v2909 = vadd.f32 %v2908, 1.0
    %v2910 = vrcp.pop %v2909
    %v2911 = vmul.f32 1.0, %v2910
    %v2912 = vxor.u32 %v2903, 2147483648
    %v2913 = vmul.f32 %v2912, 1.442695
    %v2914 = vpow.pop %v2913
    %v2915 = vadd.f32 %v2914, 1.0
    %v2916 = vrcp.pop %v2915
    %v2917 = vmul.f32 1.0, %v2916
    %v2918 = vxor.u32 %v2904, 2147483648
    %v2919 = vmul.f32 %v2918, 1.442695
    %v2920 = vpow.pop %v2919
    %v2921 = vadd.f32 %v2920, 1.0
    %v2922 = vrcp.pop %v2921
    %v2923 = vmul.f32 1.0, %v2922
    %v2924 = vtanh.pop %v2905
    %v2925 = vmul.f32 %v2917, %v2757
    %v2926 = vmul.f32 %v2911, %v2924
    %v2927 = vadd.f32 %v2925, %v2926
    %v2928 = vtanh.pop %v2927
    %v2929 = vmul.f32 %v2923, %v2928
    %2930 = vmatprep.subr.mxu0 %v335
    %2931 = vmatpush1.msra.mxu0 %v334
    %2932 = vmatprep.subr.mxu0 %v339
    %2933 = vmatpush1.msra.mxu0 %v338
    %2934 = vmatprep.subr.mxu0 %v343
    %2935 = vmatpush1.msra.mxu0 %v342
    %2936 = vmatprep.subr.mxu0 %v347
    %2937 = vmatpush1.msra.mxu0 %v346
    %2938 = vmatprep.subr.mxu0 %v351
    %2939 = vmatpush1.msra.mxu0 %v350
    %2940 = vmatprep.subr.mxu0 %v355
    %2941 = vmatpush1.msra.mxu0 %v354
    %2942 = vmatprep.subr.mxu0 %v359
    %2943 = vmatpush1.msra.mxu0 %v358
    %2944 = vmatprep.subr.mxu0 %v363
    %2945 = vmatpush1.msra.mxu0 %v362
    %2946 = vmatprep.subr.mxu0 %v367
    %2947 = vmatpush1.msra.mxu0 %v366
    %2948 = vmatprep.subr.mxu0 %v371
    %2949 = vmatpush1.msra.mxu0 %v370
    %2950 = vmatprep.subr.mxu0 %v375
    %2951 = vmatpush1.msra.mxu0 %v374
    %2952 = vmatprep.subr.mxu0 %v379
    %2953 = vmatpush1.msra.mxu0 %v378
    %2954 = vmatprep.subr.mxu0 %v383
    %2955 = vmatpush1.msra.mxu0 %v382
    %2956 = vmatprep.subr.mxu0 %v387
    %2957 = vmatpush1.msra.mxu0 %v386
    %2958 = vmatprep.subr.mxu0 %v391
    %2959 = vmatpush1.msra.mxu0 %v390
    %2960 = vmatprep.subr.mxu0 %v395
    %2961 = vmatpush1.msra.mxu0 %v394
    %2962 = vmatprep.subr.mxu0 0.0
    %2963 = vmatpush1.msra.mxu0 0.0
    %2964 = vmatprep.subr.mxu0 0.0
    %2965 = vmatpush1.msra.mxu0 0.0
    %2966 = vmatprep.subr.mxu0 0.0
    %2967 = vmatpush1.msra.mxu0 0.0
    %2968 = vmatprep.subr.mxu0 0.0
    %2969 = vmatpush1.msra.mxu0 0.0
    %2970 = vmatprep.subr.mxu0 0.0
    %2971 = vmatpush1.msra.mxu0 0.0
    %2972 = vmatprep.subr.mxu0 0.0
    %2973 = vmatpush1.msra.mxu0 0.0
    %2974 = vmatprep.subr.mxu0 0.0
    %2975 = vmatpush1.msra.mxu0 0.0
    %2976 = vmatprep.subr.mxu0 0.0
    %2977 = vmatpush1.msra.mxu0 0.0
    %2978 = vmatprep.subr.mxu0 0.0
    %2979 = vmatpush1.msra.mxu0 0.0
    %2980 = vmatprep.subr.mxu0 0.0
    %2981 = vmatpush1.msra.mxu0 0.0
    %2982 = vmatprep.subr.mxu0 0.0
    %2983 = vmatpush1.msra.mxu0 0.0
    %2984 = vmatprep.subr.mxu0 0.0
    %2985 = vmatpush1.msra.mxu0 0.0
    %2986 = vmatprep.subr.mxu0 0.0
    %2987 = vmatpush1.msra.mxu0 0.0
    %2988 = vmatprep.subr.mxu0 0.0
    %2989 = vmatpush1.msra.mxu0 0.0
    %2990 = vmatprep.subr.mxu0 0.0
    %2991 = vmatpush1.msra.mxu0 0.0
    %2992 = vmatprep.subr.mxu0 0.0
    %2993 = vmatpush1.msra.mxu0 0.0
    %2994 = vmatprep.mubr.f32.mxu0 0.0
    %2995 = vmatmul.mubr.f32.gmra.mrb[0].mxu0 %v2929
    %v2996 = vpop.f32.mrb[0].mxu0
    %v2997 = vadd.f32 0.0, %v2996
    %v2998 = vpop.f32.mrb[0].mxu0
    %v2999 = vadd.f32 0.0, %v2998
    %3000 = vdwg.mxu0
    %3001 = vmatprep.subr.mxu0 %v337
    %3002 = vmatpush1.msra.mxu0 %v336
    %3003 = vmatprep.subr.mxu0 %v341
    %3004 = vmatpush1.msra.mxu0 %v340
    %3005 = vmatprep.subr.mxu0 %v345
    %3006 = vmatpush1.msra.mxu0 %v344
    %3007 = vmatprep.subr.mxu0 %v349
    %3008 = vmatpush1.msra.mxu0 %v348
    %3009 = vmatprep.subr.mxu0 %v353
    %3010 = vmatpush1.msra.mxu0 %v352
    %3011 = vmatprep.subr.mxu0 %v357
    %3012 = vmatpush1.msra.mxu0 %v356
    %3013 = vmatprep.subr.mxu0 %v361
    %3014 = vmatpush1.msra.mxu0 %v360
    %3015 = vmatprep.subr.mxu0 %v365
    %3016 = vmatpush1.msra.mxu0 %v364
    %3017 = vmatprep.subr.mxu0 %v369
    %3018 = vmatpush1.msra.mxu0 %v368
    %3019 = vmatprep.subr.mxu0 %v373
    %3020 = vmatpush1.msra.mxu0 %v372
    %3021 = vmatprep.subr.mxu0 %v377
    %3022 = vmatpush1.msra.mxu0 %v376
    %3023 = vmatprep.subr.mxu0 %v381
    %3024 = vmatpush1.msra.mxu0 %v380
    %3025 = vmatprep.subr.mxu0 %v385
    %3026 = vmatpush1.msra.mxu0 %v384
    %3027 = vmatprep.subr.mxu0 %v389
    %3028 = vmatpush1.msra.mxu0 %v388
    %3029 = vmatprep.subr.mxu0 %v393
    %3030 = vmatpush1.msra.mxu0 %v392
    %3031 = vmatprep.subr.mxu0 %v397
    %3032 = vmatpush1.msra.mxu0 %v396
    %3033 = vmatprep.subr.mxu0 0.0
    %3034 = vmatpush1.msra.mxu0 0.0
    %3035 = vmatprep.subr.mxu0 0.0
    %3036 = vmatpush1.msra.mxu0 0.0
    %3037 = vmatprep.subr.mxu0 0.0
    %3038 = vmatpush1.msra.mxu0 0.0
    %3039 = vmatprep.subr.mxu0 0.0
    %3040 = vmatpush1.msra.mxu0 0.0
    %3041 = vmatprep.subr.mxu0 0.0
    %3042 = vmatpush1.msra.mxu0 0.0
    %3043 = vmatprep.subr.mxu0 0.0
    %3044 = vmatpush1.msra.mxu0 0.0
    %3045 = vmatprep.subr.mxu0 0.0
    %3046 = vmatpush1.msra.mxu0 0.0
    %3047 = vmatprep.subr.mxu0 0.0
    %3048 = vmatpush1.msra.mxu0 0.0
    %3049 = vmatprep.subr.mxu0 0.0
    %3050 = vmatpush1.msra.mxu0 0.0
    %3051 = vmatprep.subr.mxu0 0.0
    %3052 = vmatpush1.msra.mxu0 0.0
    %3053 = vmatprep.subr.mxu0 0.0
    %3054 = vmatpush1.msra.mxu0 0.0
    %3055 = vmatprep.subr.mxu0 0.0
    %3056 = vmatpush1.msra.mxu0 0.0
    %3057 = vmatprep.subr.mxu0 0.0
    %3058 = vmatpush1.msra.mxu0 0.0
    %3059 = vmatprep.subr.mxu0 0.0
    %3060 = vmatpush1.msra.mxu0 0.0
    %3061 = vmatprep.subr.mxu0 0.0
    %3062 = vmatpush1.msra.mxu0 0.0
    %3063 = vmatprep.subr.mxu0 0.0
    %3064 = vmatpush1.msra.mxu0 0.0
    %3065 = vmatprep.mubr.f32.mxu0 0.0
    %3066 = vmatmul.mubr.f32.gmra.mrb[0].mxu0 %v2929
    %v3067 = vpop.f32.mrb[0].mxu0
    %v3068 = vadd.f32 0.0, %v3067
    %v3069 = vpop.f32.mrb[0].mxu0
    %v3070 = vadd.f32 0.0, %v3069
    %3071 = vdwg.mxu0
    %v3072 = vadd.f32 %v543, %v2997
    %v3073 = vadd.f32 %v545, %v2999
    %v3074 = vadd.f32 %v704, %v3068
    %v3075 = vadd.f32 %v706, %v3070
    %v3076 = vxor.u32 %v3072, 2147483648
    %v3077 = vmul.f32 %v3076, 1.442695
    %v3078 = vpow.pop %v3077
    %v3079 = vadd.f32 %v3078, 1.0
    %v3080 = vrcp.pop %v3079
    %v3081 = vmul.f32 1.0, %v3080
    %v3082 = vxor.u32 %v3073, 2147483648
    %v3083 = vmul.f32 %v3082, 1.442695
    %v3084 = vpow.pop %v3083
    %v3085 = vadd.f32 %v3084, 1.0
    %v3086 = vrcp.pop %v3085
    %v3087 = vmul.f32 1.0, %v3086
    %v3088 = vxor.u32 %v3074, 2147483648
    %v3089 = vmul.f32 %v3088, 1.442695
    %v3090 = vpow.pop %v3089
    %v3091 = vadd.f32 %v3090, 1.0
    %v3092 = vrcp.pop %v3091
    %v3093 = vmul.f32 1.0, %v3092
    %v3094 = vtanh.pop %v3075
    %v3095 = vmul.f32 %v3087, %v2927
    %v3096 = vmul.f32 %v3081, %v3094
    %v3097 = vadd.f32 %v3095, %v3096
    %v3098 = vtanh.pop %v3097
    %v3099 = vmul.f32 %v3093, %v3098
    %3100 = vmatprep.subr.mxu0 %v335
    %3101 = vmatpush1.msra.mxu0 %v334
    %3102 = vmatprep.subr.mxu0 %v339
    %3103 = vmatpush1.msra.mxu0 %v338
    %3104 = vmatprep.subr.mxu0 %v343
    %3105 = vmatpush1.msra.mxu0 %v342
    %3106 = vmatprep.subr.mxu0 %v347
    %3107 = vmatpush1.msra.mxu0 %v346
    %3108 = vmatprep.subr.mxu0 %v351
    %3109 = vmatpush1.msra.mxu0 %v350
    %3110 = vmatprep.subr.mxu0 %v355
    %3111 = vmatpush1.msra.mxu0 %v354
    %3112 = vmatprep.subr.mxu0 %v359
    %3113 = vmatpush1.msra.mxu0 %v358
    %3114 = vmatprep.subr.mxu0 %v363
    %3115 = vmatpush1.msra.mxu0 %v362
    %3116 = vmatprep.subr.mxu0 %v367
    %3117 = vmatpush1.msra.mxu0 %v366
    %3118 = vmatprep.subr.mxu0 %v371
    %3119 = vmatpush1.msra.mxu0 %v370
    %3120 = vmatprep.subr.mxu0 %v375
    %3121 = vmatpush1.msra.mxu0 %v374
    %3122 = vmatprep.subr.mxu0 %v379
    %3123 = vmatpush1.msra.mxu0 %v378
    %3124 = vmatprep.subr.mxu0 %v383
    %3125 = vmatpush1.msra.mxu0 %v382
    %3126 = vmatprep.subr.mxu0 %v387
    %3127 = vmatpush1.msra.mxu0 %v386
    %3128 = vmatprep.subr.mxu0 %v391
    %3129 = vmatpush1.msra.mxu0 %v390
    %3130 = vmatprep.subr.mxu0 %v395
    %3131 = vmatpush1.msra.mxu0 %v394
    %3132 = vmatprep.subr.mxu0 0.0
    %3133 = vmatpush1.msra.mxu0 0.0
    %3134 = vmatprep.subr.mxu0 0.0
    %3135 = vmatpush1.msra.mxu0 0.0
    %3136 = vmatprep.subr.mxu0 0.0
    %3137 = vmatpush1.msra.mxu0 0.0
    %3138 = vmatprep.subr.mxu0 0.0
    %3139 = vmatpush1.msra.mxu0 0.0
    %3140 = vmatprep.subr.mxu0 0.0
    %3141 = vmatpush1.msra.mxu0 0.0
    %3142 = vmatprep.subr.mxu0 0.0
    %3143 = vmatpush1.msra.mxu0 0.0
    %3144 = vmatprep.subr.mxu0 0.0
    %3145 = vmatpush1.msra.mxu0 0.0
    %3146 = vmatprep.subr.mxu0 0.0
    %3147 = vmatpush1.msra.mxu0 0.0
    %3148 = vmatprep.subr.mxu0 0.0
    %3149 = vmatpush1.msra.mxu0 0.0
    %3150 = vmatprep.subr.mxu0 0.0
    %3151 = vmatpush1.msra.mxu0 0.0
    %3152 = vmatprep.subr.mxu0 0.0
    %3153 = vmatpush1.msra.mxu0 0.0
    %3154 = vmatprep.subr.mxu0 0.0
    %3155 = vmatpush1.msra.mxu0 0.0
    %3156 = vmatprep.subr.mxu0 0.0
    %3157 = vmatpush1.msra.mxu0 0.0
    %3158 = vmatprep.subr.mxu0 0.0
    %3159 = vmatpush1.msra.mxu0 0.0
    %3160 = vmatprep.subr.mxu0 0.0
    %3161 = vmatpush1.msra.mxu0 0.0
    %3162 = vmatprep.subr.mxu0 0.0
    %3163 = vmatpush1.msra.mxu0 0.0
    %3164 = vmatprep.mubr.f32.mxu0 0.0
    %3165 = vmatmul.mubr.f32.gmra.mrb[0].mxu0 %v3099
    %v3166 = vpop.f32.mrb[0].mxu0
    %v3167 = vadd.f32 0.0, %v3166
    %v3168 = vpop.f32.mrb[0].mxu0
    %v3169 = vadd.f32 0.0, %v3168
    %3170 = vdwg.mxu0
    %3171 = vmatprep.subr.mxu0 %v337
    %3172 = vmatpush1.msra.mxu0 %v336
    %3173 = vmatprep.subr.mxu0 %v341
    %3174 = vmatpush1.msra.mxu0 %v340
    %3175 = vmatprep.subr.mxu0 %v345
    %3176 = vmatpush1.msra.mxu0 %v344
    %3177 = vmatprep.subr.mxu0 %v349
    %3178 = vmatpush1.msra.mxu0 %v348
    %3179 = vmatprep.subr.mxu0 %v353
    %3180 = vmatpush1.msra.mxu0 %v352
    %3181 = vmatprep.subr.mxu0 %v357
    %3182 = vmatpush1.msra.mxu0 %v356
    %3183 = vmatprep.subr.mxu0 %v361
    %3184 = vmatpush1.msra.mxu0 %v360
    %3185 = vmatprep.subr.mxu0 %v365
    %3186 = vmatpush1.msra.mxu0 %v364
    %3187 = vmatprep.subr.mxu0 %v369
    %3188 = vmatpush1.msra.mxu0 %v368
    %3189 = vmatprep.subr.mxu0 %v373
    %3190 = vmatpush1.msra.mxu0 %v372
    %3191 = vmatprep.subr.mxu0 %v377
    %3192 = vmatpush1.msra.mxu0 %v376
    %3193 = vmatprep.subr.mxu0 %v381
    %3194 = vmatpush1.msra.mxu0 %v380
    %3195 = vmatprep.subr.mxu0 %v385
    %3196 = vmatpush1.msra.mxu0 %v384
    %3197 = vmatprep.subr.mxu0 %v389
    %3198 = vmatpush1.msra.mxu0 %v388
    %3199 = vmatprep.subr.mxu0 %v393
    %3200 = vmatpush1.msra.mxu0 %v392
    %3201 = vmatprep.subr.mxu0 %v397
    %3202 = vmatpush1.msra.mxu0 %v396
    %3203 = vmatprep.subr.mxu0 0.0
    %3204 = vmatpush1.msra.mxu0 0.0
    %3205 = vmatprep.subr.mxu0 0.0
    %3206 = vmatpush1.msra.mxu0 0.0
    %3207 = vmatprep.subr.mxu0 0.0
    %3208 = vmatpush1.msra.mxu0 0.0
    %3209 = vmatprep.subr.mxu0 0.0
    %3210 = vmatpush1.msra.mxu0 0.0
    %3211 = vmatprep.subr.mxu0 0.0
    %3212 = vmatpush1.msra.mxu0 0.0
    %3213 = vmatprep.subr.mxu0 0.0
    %3214 = vmatpush1.msra.mxu0 0.0
    %3215 = vmatprep.subr.mxu0 0.0
    %3216 = vmatpush1.msra.mxu0 0.0
    %3217 = vmatprep.subr.mxu0 0.0
    %3218 = vmatpush1.msra.mxu0 0.0
    %3219 = vmatprep.subr.mxu0 0.0
    %3220 = vmatpush1.msra.mxu0 0.0
    %3221 = vmatprep.subr.mxu0 0.0
    %3222 = vmatpush1.msra.mxu0 0.0
    %3223 = vmatprep.subr.mxu0 0.0
    %3224 = vmatpush1.msra.mxu0 0.0
    %3225 = vmatprep.subr.mxu0 0.0
    %3226 = vmatpush1.msra.mxu0 0.0
    %3227 = vmatprep.subr.mxu0 0.0
    %3228 = vmatpush1.msra.mxu0 0.0
    %3229 = vmatprep.subr.mxu0 0.0
    %3230 = vmatpush1.msra.mxu0 0.0
    %3231 = vmatprep.subr.mxu0 0.0
    %3232 = vmatpush1.msra.mxu0 0.0
    %3233 = vmatprep.subr.mxu0 0.0
    %3234 = vmatpush1.msra.mxu0 0.0
    %3235 = vmatprep.mubr.f32.mxu0 0.0
    %3236 = vmatmul.mubr.f32.gmra.mrb[0].mxu0 %v3099
    %v3237 = vpop.f32.mrb[0].mxu0
    %v3238 = vadd.f32 0.0, %v3237
    %v3239 = vpop.f32.mrb[0].mxu0
    %v3240 = vadd.f32 0.0, %v3239
    %3241 = vdwg.mxu0
    %v3242 = vadd.f32 %v549, %v3167
    %v3243 = vadd.f32 %v551, %v3169
    %v3244 = vadd.f32 %v710, %v3238
    %v3245 = vadd.f32 %v712, %v3240
    %v3246 = vxor.u32 %v3242, 2147483648
    %v3247 = vmul.f32 %v3246, 1.442695
    %v3248 = vpow.pop %v3247
    %v3249 = vadd.f32 %v3248, 1.0
    %v3250 = vrcp.pop %v3249
    %v3251 = vmul.f32 1.0, %v3250
    %v3252 = vxor.u32 %v3243, 2147483648
    %v3253 = vmul.f32 %v3252, 1.442695
    %v3254 = vpow.pop %v3253
    %v3255 = vadd.f32 %v3254, 1.0
    %v3256 = vrcp.pop %v3255
    %v3257 = vmul.f32 1.0, %v3256
    %v3258 = vxor.u32 %v3244, 2147483648
    %v3259 = vmul.f32 %v3258, 1.442695
    %v3260 = vpow.pop %v3259
    %v3261 = vadd.f32 %v3260, 1.0
    %v3262 = vrcp.pop %v3261
    %v3263 = vmul.f32 1.0, %v3262
    %v3264 = vtanh.pop %v3245
    %v3265 = vmul.f32 %v3257, %v3097
    %v3266 = vmul.f32 %v3251, %v3264
    %v3267 = vadd.f32 %v3265, %v3266
    %v3268 = vtanh.pop %v3267
    %v3269 = vmul.f32 %v3263, %v3268
    %3270 = vmatprep.subr.mxu0 %v335
    %3271 = vmatpush1.msra.mxu0 %v334
    %3272 = vmatprep.subr.mxu0 %v339
    %3273 = vmatpush1.msra.mxu0 %v338
    %3274 = vmatprep.subr.mxu0 %v343
    %3275 = vmatpush1.msra.mxu0 %v342
    %3276 = vmatprep.subr.mxu0 %v347
    %3277 = vmatpush1.msra.mxu0 %v346
    %3278 = vmatprep.subr.mxu0 %v351
    %3279 = vmatpush1.msra.mxu0 %v350
    %3280 = vmatprep.subr.mxu0 %v355
    %3281 = vmatpush1.msra.mxu0 %v354
    %3282 = vmatprep.subr.mxu0 %v359
    %3283 = vmatpush1.msra.mxu0 %v358
    %3284 = vmatprep.subr.mxu0 %v363
    %3285 = vmatpush1.msra.mxu0 %v362
    %3286 = vmatprep.subr.mxu0 %v367
    %3287 = vmatpush1.msra.mxu0 %v366
    %3288 = vmatprep.subr.mxu0 %v371
    %3289 = vmatpush1.msra.mxu0 %v370
    %3290 = vmatprep.subr.mxu0 %v375
    %3291 = vmatpush1.msra.mxu0 %v374
    %3292 = vmatprep.subr.mxu0 %v379
    %3293 = vmatpush1.msra.mxu0 %v378
    %3294 = vmatprep.subr.mxu0 %v383
    %3295 = vmatpush1.msra.mxu0 %v382
    %3296 = vmatprep.subr.mxu0 %v387
    %3297 = vmatpush1.msra.mxu0 %v386
    %3298 = vmatprep.subr.mxu0 %v391
    %3299 = vmatpush1.msra.mxu0 %v390
    %3300 = vmatprep.subr.mxu0 %v395
    %3301 = vmatpush1.msra.mxu0 %v394
    %3302 = vmatprep.subr.mxu0 0.0
    %3303 = vmatpush1.msra.mxu0 0.0
    %3304 = vmatprep.subr.mxu0 0.0
    %3305 = vmatpush1.msra.mxu0 0.0
    %3306 = vmatprep.subr.mxu0 0.0
    %3307 = vmatpush1.msra.mxu0 0.0
    %3308 = vmatprep.subr.mxu0 0.0
    %3309 = vmatpush1.msra.mxu0 0.0
    %3310 = vmatprep.subr.mxu0 0.0
    %3311 = vmatpush1.msra.mxu0 0.0
    %3312 = vmatprep.subr.mxu0 0.0
    %3313 = vmatpush1.msra.mxu0 0.0
    %3314 = vmatprep.subr.mxu0 0.0
    %3315 = vmatpush1.msra.mxu0 0.0
    %3316 = vmatprep.subr.mxu0 0.0
    %3317 = vmatpush1.msra.mxu0 0.0
    %3318 = vmatprep.subr.mxu0 0.0
    %3319 = vmatpush1.msra.mxu0 0.0
    %3320 = vmatprep.subr.mxu0 0.0
    %3321 = vmatpush1.msra.mxu0 0.0
    %3322 = vmatprep.subr.mxu0 0.0
    %3323 = vmatpush1.msra.mxu0 0.0
    %3324 = vmatprep.subr.mxu0 0.0
    %3325 = vmatpush1.msra.mxu0 0.0
    %3326 = vmatprep.subr.mxu0 0.0
    %3327 = vmatpush1.msra.mxu0 0.0
    %3328 = vmatprep.subr.mxu0 0.0
    %3329 = vmatpush1.msra.mxu0 0.0
    %3330 = vmatprep.subr.mxu0 0.0
    %3331 = vmatpush1.msra.mxu0 0.0
    %3332 = vmatprep.subr.mxu0 0.0
    %3333 = vmatpush1.msra.mxu0 0.0
    %3334 = vmatprep.mubr.f32.mxu0 0.0
    %3335 = vmatmul.mubr.f32.gmra.mrb[0].mxu0 %v3269
    %v3336 = vpop.f32.mrb[0].mxu0
    %v3337 = vadd.f32 0.0, %v3336
    %v3338 = vpop.f32.mrb[0].mxu0
    %v3339 = vadd.f32 0.0, %v3338
    %3340 = vdwg.mxu0
    %3341 = vmatprep.subr.mxu0 %v337
    %3342 = vmatpush1.msra.mxu0 %v336
    %3343 = vmatprep.subr.mxu0 %v341
    %3344 = vmatpush1.msra.mxu0 %v340
    %3345 = vmatprep.subr.mxu0 %v345
    %3346 = vmatpush1.msra.mxu0 %v344
    %3347 = vmatprep.subr.mxu0 %v349
    %3348 = vmatpush1.msra.mxu0 %v348
    %3349 = vmatprep.subr.mxu0 %v353
    %3350 = vmatpush1.msra.mxu0 %v352
    %3351 = vmatprep.subr.mxu0 %v357
    %3352 = vmatpush1.msra.mxu0 %v356
    %3353 = vmatprep.subr.mxu0 %v361
    %3354 = vmatpush1.msra.mxu0 %v360
    %3355 = vmatprep.subr.mxu0 %v365
    %3356 = vmatpush1.msra.mxu0 %v364
    %3357 = vmatprep.subr.mxu0 %v369
    %3358 = vmatpush1.msra.mxu0 %v368
    %3359 = vmatprep.subr.mxu0 %v373
    %3360 = vmatpush1.msra.mxu0 %v372
    %3361 = vmatprep.subr.mxu0 %v377
    %3362 = vmatpush1.msra.mxu0 %v376
    %3363 = vmatprep.subr.mxu0 %v381
    %3364 = vmatpush1.msra.mxu0 %v380
    %3365 = vmatprep.subr.mxu0 %v385
    %3366 = vmatpush1.msra.mxu0 %v384
    %3367 = vmatprep.subr.mxu0 %v389
    %3368 = vmatpush1.msra.mxu0 %v388
    %3369 = vmatprep.subr.mxu0 %v393
    %3370 = vmatpush1.msra.mxu0 %v392
    %3371 = vmatprep.subr.mxu0 %v397
    %3372 = vmatpush1.msra.mxu0 %v396
    %3373 = vmatprep.subr.mxu0 0.0
    %3374 = vmatpush1.msra.mxu0 0.0
    %3375 = vmatprep.subr.mxu0 0.0
    %3376 = vmatpush1.msra.mxu0 0.0
    %3377 = vmatprep.subr.mxu0 0.0
    %3378 = vmatpush1.msra.mxu0 0.0
    %3379 = vmatprep.subr.mxu0 0.0
    %3380 = vmatpush1.msra.mxu0 0.0
    %3381 = vmatprep.subr.mxu0 0.0
    %3382 = vmatpush1.msra.mxu0 0.0
    %3383 = vmatprep.subr.mxu0 0.0
    %3384 = vmatpush1.msra.mxu0 0.0
    %3385 = vmatprep.subr.mxu0 0.0
    %3386 = vmatpush1.msra.mxu0 0.0
    %3387 = vmatprep.subr.mxu0 0.0
    %3388 = vmatpush1.msra.mxu0 0.0
    %3389 = vmatprep.subr.mxu0 0.0
    %3390 = vmatpush1.msra.mxu0 0.0
    %3391 = vmatprep.subr.mxu0 0.0
    %3392 = vmatpush1.msra.mxu0 0.0
    %3393 = vmatprep.subr.mxu0 0.0
    %3394 = vmatpush1.msra.mxu0 0.0
    %3395 = vmatprep.subr.mxu0 0.0
    %3396 = vmatpush1.msra.mxu0 0.0
    %3397 = vmatprep.subr.mxu0 0.0
    %3398 = vmatpush1.msra.mxu0 0.0
    %3399 = vmatprep.subr.mxu0 0.0
    %3400 = vmatpush1.msra.mxu0 0.0
    %3401 = vmatprep.subr.mxu0 0.0
    %3402 = vmatpush1.msra.mxu0 0.0
    %3403 = vmatprep.subr.mxu0 0.0
    %3404 = vmatpush1.msra.mxu0 0.0
    %3405 = vmatprep.mubr.f32.mxu0 0.0
    %3406 = vmatmul.mubr.f32.gmra.mrb[0].mxu0 %v3269
    %v3407 = vpop.f32.mrb[0].mxu0
    %v3408 = vadd.f32 0.0, %v3407
    %v3409 = vpop.f32.mrb[0].mxu0
    %v3410 = vadd.f32 0.0, %v3409
    %3411 = vdwg.mxu0
    %v3412 = vadd.f32 %v555, %v3337
    %v3413 = vadd.f32 %v557, %v3339
    %v3414 = vadd.f32 %v716, %v3408
    %v3415 = vadd.f32 %v718, %v3410
    %v3416 = vxor.u32 %v3412, 2147483648
    %v3417 = vmul.f32 %v3416, 1.442695
    %v3418 = vpow.pop %v3417
    %v3419 = vadd.f32 %v3418, 1.0
    %v3420 = vrcp.pop %v3419
    %v3421 = vmul.f32 1.0, %v3420
    %v3422 = vxor.u32 %v3413, 2147483648
    %v3423 = vmul.f32 %v3422, 1.442695
    %v3424 = vpow.pop %v3423
    %v3425 = vadd.f32 %v3424, 1.0
    %v3426 = vrcp.pop %v3425
    %v3427 = vmul.f32 1.0, %v3426
    %v3428 = vxor.u32 %v3414, 2147483648
    %v3429 = vmul.f32 %v3428, 1.442695
    %v3430 = vpow.pop %v3429
    %v3431 = vadd.f32 %v3430, 1.0
    %v3432 = vrcp.pop %v3431
    %v3433 = vmul.f32 1.0, %v3432
    %v3434 = vtanh.pop %v3415
    %v3435 = vmul.f32 %v3427, %v3267
    %v3436 = vmul.f32 %v3421, %v3434
    %v3437 = vadd.f32 %v3435, %v3436
    %v3438 = vtanh.pop %v3437
    %v3439 = vmul.f32 %v3433, %v3438
    %v3440 = vld [vmem:[#allocation5 + $0x8] sm:$0xff]
    %v3441 = vld [vmem:[#allocation5 + $0x10] sm:$0xff]
    %v3442 = vld [vmem:[#allocation5 + $0x18] sm:$0xff]
    %v3443 = vld [vmem:[#allocation5 + $0x20] sm:$0xff]
    %v3444 = vld [vmem:[#allocation5 + $0x28] sm:$0xff]
    %v3445 = vld [vmem:[#allocation5 + $0x30] sm:$0xff]
    %v3446 = vld [vmem:[#allocation5 + $0x38] sm:$0xff]
    %v3447 = vld [vmem:[#allocation5 + $0x40] sm:$0xff]
    %v3448 = vld [vmem:[#allocation5 + $0x48] sm:$0xff]
    %v3449 = vld [vmem:[#allocation5 + $0x50] sm:$0xff]
    %v3450 = vld [vmem:[#allocation5 + $0x58] sm:$0xff]
    %v3451 = vld [vmem:[#allocation5 + $0x60] sm:$0xff]
    %v3452 = vld [vmem:[#allocation5 + $0x68] sm:$0xff]
    %v3453 = vld [vmem:[#allocation5 + $0x70] sm:$0xff]
    %v3454 = vld [vmem:[#allocation5 + $0x78] sm:$0xff]
    %v3455 = vld [vmem:[#allocation5 + $0x80] sm:$0xff]
    %v3456 = vld [vmem:[#allocation5 + $0x88] sm:$0x1]
    %v3457 = vlaneseq
    %v3458 = vshrl.u32 %v3457, 7
    %v3459 = vsub.s32 0, %v3458
    %v3460 = vrot.slane %v3456, %v3459
    %3461 = vmatprep.subr.mxu0 0.0
    %3462 = vmatpush1.msra.mxu0 %v3440
    %3463 = vmatprep.subr.mxu0 0.0
    %3464 = vmatpush1.msra.mxu0 %v3441
    %3465 = vmatprep.subr.mxu0 0.0
    %3466 = vmatpush1.msra.mxu0 %v3442
    %3467 = vmatprep.subr.mxu0 0.0
    %3468 = vmatpush1.msra.mxu0 %v3443
    %3469 = vmatprep.subr.mxu0 0.0
    %3470 = vmatpush1.msra.mxu0 %v3444
    %3471 = vmatprep.subr.mxu0 0.0
    %3472 = vmatpush1.msra.mxu0 %v3445
    %3473 = vmatprep.subr.mxu0 0.0
    %3474 = vmatpush1.msra.mxu0 %v3446
    %3475 = vmatprep.subr.mxu0 0.0
    %3476 = vmatpush1.msra.mxu0 %v3447
    %3477 = vmatprep.subr.mxu0 0.0
    %3478 = vmatpush1.msra.mxu0 %v3448
    %3479 = vmatprep.subr.mxu0 0.0
    %3480 = vmatpush1.msra.mxu0 %v3449
    %3481 = vmatprep.subr.mxu0 0.0
    %3482 = vmatpush1.msra.mxu0 %v3450
    %3483 = vmatprep.subr.mxu0 0.0
    %3484 = vmatpush1.msra.mxu0 %v3451
    %3485 = vmatprep.subr.mxu0 0.0
    %3486 = vmatpush1.msra.mxu0 %v3452
    %3487 = vmatprep.subr.mxu0 0.0
    %3488 = vmatpush1.msra.mxu0 %v3453
    %3489 = vmatprep.subr.mxu0 0.0
    %3490 = vmatpush1.msra.mxu0 %v3454
    %3491 = vmatprep.subr.mxu0 0.0
    %3492 = vmatpush1.msra.mxu0 %v3455
    %3493 = vmatprep.subr.mxu0 0.0
    %3494 = vmatpush1.msra.mxu0 0.0
    %3495 = vmatprep.subr.mxu0 0.0
    %3496 = vmatpush1.msra.mxu0 0.0
    %3497 = vmatprep.subr.mxu0 0.0
    %3498 = vmatpush1.msra.mxu0 0.0
    %3499 = vmatprep.subr.mxu0 0.0
    %3500 = vmatpush1.msra.mxu0 0.0
    %3501 = vmatprep.subr.mxu0 0.0
    %3502 = vmatpush1.msra.mxu0 0.0
    %3503 = vmatprep.subr.mxu0 0.0
    %3504 = vmatpush1.msra.mxu0 0.0
    %3505 = vmatprep.subr.mxu0 0.0
    %3506 = vmatpush1.msra.mxu0 0.0
    %3507 = vmatprep.subr.mxu0 0.0
    %3508 = vmatpush1.msra.mxu0 0.0
    %3509 = vmatprep.subr.mxu0 0.0
    %3510 = vmatpush1.msra.mxu0 0.0
    %3511 = vmatprep.subr.mxu0 0.0
    %3512 = vmatpush1.msra.mxu0 0.0
    %3513 = vmatprep.subr.mxu0 0.0
    %3514 = vmatpush1.msra.mxu0 0.0
    %3515 = vmatprep.subr.mxu0 0.0
    %3516 = vmatpush1.msra.mxu0 0.0
    %3517 = vmatprep.subr.mxu0 0.0
    %3518 = vmatpush1.msra.mxu0 0.0
    %3519 = vmatprep.subr.mxu0 0.0
    %3520 = vmatpush1.msra.mxu0 0.0
    %3521 = vmatprep.subr.mxu0 0.0
    %3522 = vmatpush1.msra.mxu0 0.0
    %3523 = vmatprep.subr.mxu0 0.0
    %3524 = vmatpush1.msra.mxu0 0.0
    %3525 = vmatprep.mubr.f32.mxu0 0.0
    %3526 = vmatmul.mubr.f32.gmra.mrb[0].mxu0 %v3439
    %v3527 = vpop.f32.mrb[0].mxu0
    %v3528 = vadd.f32 %v3460, %v3527
    %v3529 = vpop.f32.mrb[0].mxu0
    %3530 = vdwg.mxu0
    %3531 = vst [vmem:[#allocation7] sm:$0xff] %v3528
    // Predicated region
    $region22: #{tpu_custom_call.1} parent=1 // pred_check
      _
    $region23: #{tpu_custom_call.1} parent=1 // pred_check_branch
      %3533 = sbr.rel (0) target = $region25
    $region24: #{tpu_custom_call.1} parent=1 // pred_region
      %s3535 = ssub.s32 128, 128
      %3536 = vsyncadd [#allocation4], %s3535
      %s3538 = sshll.u32 [#allocation7], 4
      %s3539 = int_to_ptr.vmem [resolvable:$true] %s3538
      %3541 = dma.vmem_to_hbm [thread:$0]  %s3539, 128, %s3, [#allocation4]
    $region25: #{tpu_custom_call.1} parent=1 // pred_fallthru
      _
    // Predicated region
    $region26: #{tpu_custom_call.1} parent=1 // pred_check
      _
    $region27: #{tpu_custom_call.1} parent=1 // pred_check_branch
      %3543 = sbr.rel (0) target = $region29
    $region28: #{tpu_custom_call.1} parent=1 // pred_region
      %3544 = dma.done [#allocation4], 128
    $region29: #{tpu_custom_call.1} parent=1 // pred_fallthru
      _
    %3545 = vsyncpa [#allocation3], 1
    %3546 = vsyncpa [#allocation6], 1
    %3547 = vsyncpa [#allocation4], 1

</llo_original>
